<compile_context>
chip_gen: v5e
topology: v5e:2x2
jax: 0.10.0
libtpu: 0.0.40
codegen_flags: <defaults>
</compile_context>

<pallas_src>
import functools

import numpy as np
import jax
import jax.numpy as jnp
from jax.experimental import pallas as pl
from jax.experimental.pallas import tpu as pltpu

# ---------------- small config consistent with the module ----------------
B = 2
IN_CHANS = 3
NUM_FRAMES = 2
IMG = 16
PATCH = 8
ENC_DIM = 32
ENC_DEPTH = 2
ENC_HEADS = 4
DEC_DIM = 32
DEC_DEPTH = 2
DEC_HEADS = 4
MLP_RATIO = 4
TUBELET = 1
DEC_NUM_CLASSES = 3 * TUBELET * PATCH * PATCH      # 192, satisfies decoder assert
PPF = (IMG // PATCH) ** 2                          # patches per frame (2x2=4)
NUM_PATCHES = NUM_FRAMES * PPF                     # 8

_BLOCK_KEYS = ('ln1_g', 'ln1_b', 'qkv_w', 'qkv_b', 'proj_w', 'proj_b',
               'ln2_g', 'ln2_b', 'fc1_w', 'fc1_b', 'fc2_w', 'fc2_b')


# --------------------------- in-kernel helpers ----------------------------
def _layernorm(x, g, b, eps):
    mu = jnp.mean(x, axis=-1, keepdims=True)
    var = jnp.mean(jnp.square(x - mu), axis=-1, keepdims=True)
    return (x - mu) * jax.lax.rsqrt(var + eps) * g + b


def _erf_approx(z):
    # Abramowitz-Stegun 7.1.26 (max abs err ~1.5e-7) — matches nn.GELU's exact erf in f32.
    # The divide goes through the EUP reciprocal slot instead of the VALU.
    a1, a2, a3, a4, a5 = 0.254829592, -0.284496736, 1.421413741, -1.453152027, 1.061405429
    pp = 0.3275911
    az = jnp.abs(z)
    t = pl.reciprocal(1.0 + pp * az, approx=True)
    poly = ((((a5 * t + a4) * t + a3) * t + a2) * t + a1) * t
    y = 1.0 - poly * jnp.exp(-az * az)
    return jnp.where(z >= 0, y, -y)


def _gelu_exact(z):
    return 0.5 * z * (1.0 + _erf_approx(z * 0.7071067811865476))


def _bf16(z):
    return z.astype(jnp.bfloat16)


def _block(x, ln1g, ln1b, qkvw, qkvb, projw, projb,
           ln2g, ln2b, fc1w, fc1b, fc2w, fc2b, *, num_heads, eps):
    """Pre-LN transformer block on a resident (N, D) activation.  Head-batched MHA."""
    n_tok, dim = x.shape
    dh = dim // num_heads
    scale = dh ** -0.5

    # ---- multi-head self-attention ----
    h = _layernorm(x, ln1g, ln1b, eps)
    qkv = jnp.dot(_bf16(h), qkvw, preferred_element_type=jnp.float32) + qkvb   # (N, 3D) f32

    def split_heads(m):  # (N, D) -> (H, N, dh) using only unit-dim reshape + major-axis concat
        return jnp.concatenate(
            [m[:, hd * dh:(hd + 1) * dh].reshape(1, n_tok, dh) for hd in range(num_heads)],
            axis=0)

    q = split_heads(qkv[:, :dim]) * scale
    k = split_heads(qkv[:, dim:2 * dim])
    v = split_heads(qkv[:, 2 * dim:])

    s = jnp.einsum('hqd,hkd->hqk', _bf16(q), _bf16(k),
                   preferred_element_type=jnp.float32)                          # (H, N, N)
    s = s - jnp.max(s, axis=-1, keepdims=True)
    p = jnp.exp(s)
    inv = pl.reciprocal(jnp.sum(p, axis=-1, keepdims=True), approx=True)        # (H, N, 1)
    o = jnp.einsum('hqk,hkd->hqd', _bf16(p), _bf16(v),
                   preferred_element_type=jnp.float32) * inv                    # (H, N, dh)
    o2d = jnp.concatenate([o[hd] for hd in range(num_heads)], axis=-1)          # (N, D)
    x = x + jnp.dot(_bf16(o2d), projw, preferred_element_type=jnp.float32) + projb

    # ---- MLP ----
    h2 = _layernorm(x, ln2g, ln2b, eps)
    hid = jnp.dot(_bf16(h2), fc1w, preferred_element_type=jnp.float32) + fc1b
    hid = _gelu_exact(hid)
    out = jnp.dot(_bf16(hid), fc2w, preferred_element_type=jnp.float32) + fc2b
    return x + out


# ------------------------- single fused forward kernel ---------------------
def _forward_kernel(*refs, enc_depth, dec_depth, enc_heads, dec_heads, n_vis):
    (patch_ref, pos_enc_ref, posv_ref, posm_ref,
     conv1_w, ln_pre_g, ln_pre_b,
     e_ln1g, e_ln1b, e_qkvw, e_qkvb, e_projw, e_projb,
     e_ln2g, e_ln2b, e_fc1w, e_fc1b, e_fc2w, e_fc2b,
     ln_post_g, ln_post_b, enc2dec_w, mask_tok,
     d_ln1g, d_ln1b, d_qkvw, d_qkvb, d_projw, d_projb,
     d_ln2g, d_ln2b, d_fc1w, d_fc1b, d_fc2w, d_fc2b,
     dec_norm_g, dec_norm_b, head_w, head_b,
     o_ref) = refs

    # ---- embed: conv1 (im2col matmul) + cls/pos/temporal embedding + ln_pre ----
    # Row 0 of patch_ref is all-zero (cls token); its pos row holds class_embedding + pos[0].
    tok = jnp.dot(_bf16(patch_ref[0]), conv1_w[...],
                  preferred_element_type=jnp.float32) + pos_enc_ref[0]          # (1+Nv, De)
    x = _layernorm(tok, ln_pre_g[...], ln_pre_b[...], 1e-6)

    # ---- encoder blocks (CLIP-style, eps=1e-6) ----
    for l in range(enc_depth):
        x = _block(x,
                   e_ln1g[l], e_ln1b[l], e_qkvw[l], e_qkvb[l], e_projw[l], e_projb[l],
                   e_ln2g[l], e_ln2b[l], e_fc1w[l], e_fc1b[l], e_fc2w[l], e_fc2b[l],
                   num_heads=enc_heads, eps=1e-6)

    # ---- decoder prep: drop cls, ln_post, encoder_to_decoder, pos-embed assembly ----
    xv = x[1:, :]                                                               # (Nv, De)
    hv = _layernorm(xv, ln_post_g[...], ln_post_b[...], 1e-6)
    yv = jnp.dot(_bf16(hv), enc2dec_w[...], preferred_element_type=jnp.float32) # (Nv, Dd)
    x_full = jnp.concatenate([yv + posv_ref[0],
                              mask_tok[...] + posm_ref[0]], axis=0)             # (Nv+Nm, Dd)

    # ---- decoder blocks (MAE Block, eps=1e-5, init_values=0 -> no layer scale) ----
    for l in range(dec_depth):
        x_full = _block(x_full,
                        d_ln1g[l], d_ln1b[l], d_qkvw[l], d_qkvb[l], d_projw[l], d_projb[l],
                        d_ln2g[l], d_ln2b[l], d_fc1w[l], d_fc1b[l], d_fc2w[l], d_fc2b[l],
                        num_heads=dec_heads, eps=1e-5)

    # ---- decoder norm + head on the masked (last Nm) tokens ----
    xm = x_full[n_vis:, :]
    hm = _layernorm(xm, dec_norm_g[...], dec_norm_b[...], 1e-5)
    o_ref[0] = jnp.dot(_bf16(hm), head_w[...],
                       preferred_element_type=jnp.float32) + head_b[...]


# ------------------------------ kernel wrapper ------------------------------
def _rep_spec(shape):
    zeros = (0,) * len(shape)
    return pl.BlockSpec(shape, lambda b, z=zeros: z)


def fused_forward(patches_in, pos_in, pos_vis_dec, pos_msk_dec, params):
    bsz, np1, k = patches_in.shape
    de = pos_in.shape[-1]
    dd = pos_vis_dec.shape[-1]
    n_vis = pos_vis_dec.shape[1]
    n_msk = pos_msk_dec.shape[1]
    ncls = params['head_w'].shape[1]

    weight_args = (
        [params['conv1_w'], params['ln_pre_g'], params['ln_pre_b']]
        + [params['enc_blocks'][key] for key in _BLOCK_KEYS]
        + [params['ln_post_g'], params['ln_post_b'], params['enc2dec_w'], params['mask_token']]
        + [params['dec_blocks'][key] for key in _BLOCK_KEYS]
        + [params['dec_norm_g'], params['dec_norm_b'], params['head_w'], params['head_b']]
    )

    in_specs = [
        pl.BlockSpec((1, np1, k), lambda b: (b, 0, 0)),
        pl.BlockSpec((1, np1, de), lambda b: (b, 0, 0)),
        pl.BlockSpec((1, n_vis, dd), lambda b: (b, 0, 0)),
        pl.BlockSpec((1, n_msk, dd), lambda b: (b, 0, 0)),
    ] + [_rep_spec(w.shape) for w in weight_args]

    return pl.pallas_call(
        functools.partial(_forward_kernel,
                          enc_depth=ENC_DEPTH, dec_depth=DEC_DEPTH,
                          enc_heads=ENC_HEADS, dec_heads=DEC_HEADS,
                          n_vis=n_vis),
        grid=(bsz,),
        in_specs=in_specs,
        out_specs=pl.BlockSpec((1, n_msk, ncls), lambda b: (b, 0, 0)),
        out_shape=jax.ShapeDtypeStruct((bsz, n_msk, ncls), jnp.float32),
        compiler_params=pltpu.CompilerParams(
            dimension_semantics=("parallel",),
            vmem_limit_bytes=32 * 1024 * 1024),
    )(patches_in, pos_in, pos_vis_dec, pos_msk_dec, *weight_args)


# -------------------------- parameters / tables ----------------------------
def get_sinusoid_encoding_table(n_position, d_hid):
    def angle_vec(pos):
        return [pos / np.power(10000, 2 * (j // 2) / d_hid) for j in range(d_hid)]
    table = np.array([angle_vec(p) for p in range(n_position)], dtype=np.float64)
    table[:, 0::2] = np.sin(table[:, 0::2])
    table[:, 1::2] = np.cos(table[:, 1::2])
    return table.astype(np.float32)                         # (n_position, d_hid), numpy (static)


def init_params(key):
    ks = iter(jax.random.split(key, 64))

    def nrm(shape, std=0.02):
        return std * jax.random.normal(next(ks), shape, jnp.float32)

    def stacked_blocks(depth, dim, hidden):
        # Weights stacked along a leading DEPTH axis; proj_w kept (dim, dim) (single MXU tile).
        return dict(
            ln1_g=jnp.ones((depth, 1, dim), jnp.float32),
            ln1_b=jnp.zeros((depth, 1, dim), jnp.float32),
            qkv_w=nrm((depth, dim, 3 * dim)).astype(jnp.bfloat16),
            qkv_b=jnp.zeros((depth, 1, 3 * dim), jnp.float32),   # zeros == PyTorch init; also
                                                                 # covers the bias-less decoder qkv
            proj_w=nrm((depth, dim, dim)).astype(jnp.bfloat16),
            proj_b=jnp.zeros((depth, 1, dim), jnp.float32),
            ln2_g=jnp.ones((depth, 1, dim), jnp.float32),
            ln2_b=jnp.zeros((depth, 1, dim), jnp.float32),
            fc1_w=nrm((depth, dim, hidden)).astype(jnp.bfloat16),
            fc1_b=jnp.zeros((depth, 1, hidden), jnp.float32),
            fc2_w=nrm((depth, hidden, dim)).astype(jnp.bfloat16),
            fc2_b=jnp.zeros((depth, 1, dim), jnp.float32),
        )

    return dict(
        # encoder (CLIP-style ViT, eps=1e-6)
        conv1_w=nrm((IN_CHANS * PATCH * PATCH, ENC_DIM)).astype(jnp.bfloat16),
        class_embedding=nrm((1, ENC_DIM)),
        pos_embed_enc=nrm((PPF + 1, ENC_DIM)),
        temporal_embedding=nrm((NUM_FRAMES, ENC_DIM)),
        ln_pre_g=jnp.ones((1, ENC_DIM), jnp.float32),
        ln_pre_b=jnp.zeros((1, ENC_DIM), jnp.float32),
        enc_blocks=stacked_blocks(ENC_DEPTH, ENC_DIM, MLP_RATIO * ENC_DIM),
        # main module glue
        ln_post_g=jnp.ones((1, ENC_DIM), jnp.float32),
        ln_post_b=jnp.zeros((1, ENC_DIM), jnp.float32),
        enc2dec_w=nrm((ENC_DIM, DEC_DIM)).astype(jnp.bfloat16),   # Linear(enc, dec, bias=False)
        mask_token=nrm((1, DEC_DIM)),
        # decoder (MAE Block, eps=1e-5)
        dec_blocks=stacked_blocks(DEC_DEPTH, DEC_DIM, MLP_RATIO * DEC_DIM),
        dec_norm_g=jnp.ones((1, DEC_DIM), jnp.float32),
        dec_norm_b=jnp.zeros((1, DEC_DIM), jnp.float32),
        head_w=nrm((DEC_DIM, DEC_NUM_CLASSES)).astype(jnp.bfloat16),
        head_b=jnp.zeros((1, DEC_NUM_CLASSES), jnp.float32),
    )


# ------------------------------ forward pass -------------------------------
def model_forward(x, mask_np, params):
    """PretrainVisionTransformerCLIP2MAE.forward (num_frames>1, use_fast_conv1=False)."""
    bsz, chans, t, hgt, wid = x.shape
    p = PATCH
    hh, ww = hgt // p, wid // p

    # static visible / masked patch indices (mask is (B, 1+num_patches); cls never masked)
    patch_mask = np.asarray(mask_np)[:, 1:]
    vis_idx = np.stack([np.nonzero(~patch_mask[b])[0] for b in range(bsz)])   # (B, Nv)
    msk_idx = np.stack([np.nonzero(patch_mask[b])[0] for b in range(bsz)])    # (B, Nm)
    batch_ar = np.arange(bsz)[:, None]

    # conv1 as im2col: tokens ordered (t, hh, ww); patch vector ordering (c, sh, sw)
    xp = x.reshape(bsz, chans, t, hh, p, ww, p)
    xp = xp.transpose(0, 2, 3, 5, 1, 4, 6).reshape(bsz, t * hh * ww, chans * p * p)

    # gather only the VISIBLE patches (all ops before the original gather are row-wise, so this
    # is exactly equivalent to embedding all tokens and gathering afterwards).
    patches_vis = xp[batch_ar, vis_idx]                                        # (B, Nv, K)
    cls_zero = jnp.zeros((bsz, 1, patches_vis.shape[-1]), jnp.float32)
    patches_in = jnp.concatenate([cls_zero, patches_vis], axis=1)              # (B, 1+Nv, K)

    # learnable positional embeddings (cls row carries class_embedding + pos[0])
    cls_row = params['class_embedding'] + params['pos_embed_enc'][0:1]         # (1, De)
    tile_pos = jnp.tile(params['pos_embed_enc'][1:], (t, 1))                   # (num_patches, De)
    tile_temp = jnp.repeat(params['temporal_embedding'], hh * ww, axis=0)
    patch_pe = tile_pos + tile_temp                                            # (num_patches, De)
    pos_vis_enc = patch_pe[vis_idx]                                            # (B, Nv, De)
    pos_in = jnp.concatenate(
        [jnp.broadcast_to(cls_row[None], (bsz, 1, ENC_DIM)), pos_vis_enc], axis=1)

    # decoder sinusoid pos-embed: pure numpy constants (static gather at trace time)
    pos_dec_np = get_sinusoid_encoding_table(NUM_PATCHES, DEC_DIM)             # (num_patches, Dd)
    pos_vis_dec = jnp.asarray(pos_dec_np[vis_idx])                             # (B, Nv, Dd) const
    pos_msk_dec = jnp.asarray(pos_dec_np[msk_idx])                             # (B, Nm, Dd) const

    # whole forward in ONE fused pallas_call
    return fused_forward(patches_in, pos_in, pos_vis_dec, pos_msk_dec, params)  # (B, Nm, 192)


if __name__ == "__main__":
    key = jax.random.PRNGKey(0)
    kx, kp = jax.random.split(key)

    x = jax.random.normal(kx, (B, IN_CHANS, NUM_FRAMES, IMG, IMG), jnp.float32)

    # mask over (cls + patches): cls never masked; same #masked per sample (required for reshape)
    mask_np = np.zeros((B, 1 + NUM_PATCHES), dtype=bool)
    mask_np[0, [2, 4, 6, 8]] = True
    mask_np[1, [1, 3, 5, 7]] = True
    assert mask_np[:, 0].sum() == 0 and len(set(mask_np.sum(1).tolist())) == 1

    params = init_params(kp)
    fwd = jax.jit(functools.partial(model_forward, mask_np=mask_np))
    out = jax.block_until_ready(fwd(x, params=params))
    assert out.shape == (B, 4, DEC_NUM_CLASSES), out.shape
    assert bool(jnp.all(jnp.isfinite(out)))
    print("KERNEL_OK")
</pallas_src>

<mosaic_0001>
module attributes {stable_mosaic.version = 11 : i64} {
  func.func @_forward_kernel(%arg0: i32, %arg1: memref<1x5x192xf32, #tpu.memory_space<vmem>>, %arg2: memref<1x5x32xf32, #tpu.memory_space<vmem>>, %arg3: memref<1x4x32xf32, #tpu.memory_space<vmem>>, %arg4: memref<1x4x32xf32, #tpu.memory_space<vmem>>, %arg5: memref<192x32xbf16, #tpu.memory_space<vmem>>, %arg6: memref<1x32xf32, #tpu.memory_space<vmem>>, %arg7: memref<1x32xf32, #tpu.memory_space<vmem>>, %arg8: memref<2x1x32xf32, #tpu.memory_space<vmem>>, %arg9: memref<2x1x32xf32, #tpu.memory_space<vmem>>, %arg10: memref<2x32x96xbf16, #tpu.memory_space<vmem>>, %arg11: memref<2x1x96xf32, #tpu.memory_space<vmem>>, %arg12: memref<2x32x32xbf16, #tpu.memory_space<vmem>>, %arg13: memref<2x1x32xf32, #tpu.memory_space<vmem>>, %arg14: memref<2x1x32xf32, #tpu.memory_space<vmem>>, %arg15: memref<2x1x32xf32, #tpu.memory_space<vmem>>, %arg16: memref<2x32x128xbf16, #tpu.memory_space<vmem>>, %arg17: memref<2x1x128xf32, #tpu.memory_space<vmem>>, %arg18: memref<2x128x32xbf16, #tpu.memory_space<vmem>>, %arg19: memref<2x1x32xf32, #tpu.memory_space<vmem>>, %arg20: memref<1x32xf32, #tpu.memory_space<vmem>>, %arg21: memref<1x32xf32, #tpu.memory_space<vmem>>, %arg22: memref<32x32xbf16, #tpu.memory_space<vmem>>, %arg23: memref<1x32xf32, #tpu.memory_space<vmem>>, %arg24: memref<2x1x32xf32, #tpu.memory_space<vmem>>, %arg25: memref<2x1x32xf32, #tpu.memory_space<vmem>>, %arg26: memref<2x32x96xbf16, #tpu.memory_space<vmem>>, %arg27: memref<2x1x96xf32, #tpu.memory_space<vmem>>, %arg28: memref<2x32x32xbf16, #tpu.memory_space<vmem>>, %arg29: memref<2x1x32xf32, #tpu.memory_space<vmem>>, %arg30: memref<2x1x32xf32, #tpu.memory_space<vmem>>, %arg31: memref<2x1x32xf32, #tpu.memory_space<vmem>>, %arg32: memref<2x32x128xbf16, #tpu.memory_space<vmem>>, %arg33: memref<2x1x128xf32, #tpu.memory_space<vmem>>, %arg34: memref<2x128x32xbf16, #tpu.memory_space<vmem>>, %arg35: memref<2x1x32xf32, #tpu.memory_space<vmem>>, %arg36: memref<1x32xf32, #tpu.memory_space<vmem>>, %arg37: memref<1x32xf32, #tpu.memory_space<vmem>>, %arg38: memref<32x192xbf16, #tpu.memory_space<vmem>>, %arg39: memref<1x192xf32, #tpu.memory_space<vmem>>, %arg40: memref<1x4x192xf32, #tpu.memory_space<vmem>>) attributes {dimension_semantics = [#tpu.dimension_semantics<parallel>], iteration_bounds = array<i64: 2>, scalar_prefetch = 0 : i64, scratch_operands = 0 : i64, tpu.core_type = #tpu.core_type<tc>, window_params = [{transform_indices = @transform_0, window_bounds = array<i64: 1, 5, 192>}, {transform_indices = @transform_1, window_bounds = array<i64: 1, 5, 32>}, {transform_indices = @transform_2, window_bounds = array<i64: 1, 4, 32>}, {transform_indices = @transform_3, window_bounds = array<i64: 1, 4, 32>}, {pipeline_mode = #tpu.pipeline_mode<synchronous>, transform_indices = @transform_4, window_bounds = array<i64: 192, 32>}, {pipeline_mode = #tpu.pipeline_mode<synchronous>, transform_indices = @transform_5, window_bounds = array<i64: 1, 32>}, {pipeline_mode = #tpu.pipeline_mode<synchronous>, transform_indices = @transform_6, window_bounds = array<i64: 1, 32>}, {pipeline_mode = #tpu.pipeline_mode<synchronous>, transform_indices = @transform_7, window_bounds = array<i64: 2, 1, 32>}, {pipeline_mode = #tpu.pipeline_mode<synchronous>, transform_indices = @transform_8, window_bounds = array<i64: 2, 1, 32>}, {pipeline_mode = #tpu.pipeline_mode<synchronous>, transform_indices = @transform_9, window_bounds = array<i64: 2, 32, 96>}, {pipeline_mode = #tpu.pipeline_mode<synchronous>, transform_indices = @transform_10, window_bounds = array<i64: 2, 1, 96>}, {pipeline_mode = #tpu.pipeline_mode<synchronous>, transform_indices = @transform_11, window_bounds = array<i64: 2, 32, 32>}, {pipeline_mode = #tpu.pipeline_mode<synchronous>, transform_indices = @transform_12, window_bounds = array<i64: 2, 1, 32>}, {pipeline_mode = #tpu.pipeline_mode<synchronous>, transform_indices = @transform_13, window_bounds = array<i64: 2, 1, 32>}, {pipeline_mode = #tpu.pipeline_mode<synchronous>, transform_indices = @transform_14, window_bounds = array<i64: 2, 1, 32>}, {pipeline_mode = #tpu.pipeline_mode<synchronous>, transform_indices = @transform_15, window_bounds = array<i64: 2, 32, 128>}, {pipeline_mode = #tpu.pipeline_mode<synchronous>, transform_indices = @transform_16, window_bounds = array<i64: 2, 1, 128>}, {pipeline_mode = #tpu.pipeline_mode<synchronous>, transform_indices = @transform_17, window_bounds = array<i64: 2, 128, 32>}, {pipeline_mode = #tpu.pipeline_mode<synchronous>, transform_indices = @transform_18, window_bounds = array<i64: 2, 1, 32>}, {pipeline_mode = #tpu.pipeline_mode<synchronous>, transform_indices = @transform_19, window_bounds = array<i64: 1, 32>}, {pipeline_mode = #tpu.pipeline_mode<synchronous>, transform_indices = @transform_20, window_bounds = array<i64: 1, 32>}, {pipeline_mode = #tpu.pipeline_mode<synchronous>, transform_indices = @transform_21, window_bounds = array<i64: 32, 32>}, {pipeline_mode = #tpu.pipeline_mode<synchronous>, transform_indices = @transform_22, window_bounds = array<i64: 1, 32>}, {pipeline_mode = #tpu.pipeline_mode<synchronous>, transform_indices = @transform_23, window_bounds = array<i64: 2, 1, 32>}, {pipeline_mode = #tpu.pipeline_mode<synchronous>, transform_indices = @transform_24, window_bounds = array<i64: 2, 1, 32>}, {pipeline_mode = #tpu.pipeline_mode<synchronous>, transform_indices = @transform_25, window_bounds = array<i64: 2, 32, 96>}, {pipeline_mode = #tpu.pipeline_mode<synchronous>, transform_indices = @transform_26, window_bounds = array<i64: 2, 1, 96>}, {pipeline_mode = #tpu.pipeline_mode<synchronous>, transform_indices = @transform_27, window_bounds = array<i64: 2, 32, 32>}, {pipeline_mode = #tpu.pipeline_mode<synchronous>, transform_indices = @transform_28, window_bounds = array<i64: 2, 1, 32>}, {pipeline_mode = #tpu.pipeline_mode<synchronous>, transform_indices = @transform_29, window_bounds = array<i64: 2, 1, 32>}, {pipeline_mode = #tpu.pipeline_mode<synchronous>, transform_indices = @transform_30, window_bounds = array<i64: 2, 1, 32>}, {pipeline_mode = #tpu.pipeline_mode<synchronous>, transform_indices = @transform_31, window_bounds = array<i64: 2, 32, 128>}, {pipeline_mode = #tpu.pipeline_mode<synchronous>, transform_indices = @transform_32, window_bounds = array<i64: 2, 1, 128>}, {pipeline_mode = #tpu.pipeline_mode<synchronous>, transform_indices = @transform_33, window_bounds = array<i64: 2, 128, 32>}, {pipeline_mode = #tpu.pipeline_mode<synchronous>, transform_indices = @transform_34, window_bounds = array<i64: 2, 1, 32>}, {pipeline_mode = #tpu.pipeline_mode<synchronous>, transform_indices = @transform_35, window_bounds = array<i64: 1, 32>}, {pipeline_mode = #tpu.pipeline_mode<synchronous>, transform_indices = @transform_36, window_bounds = array<i64: 1, 32>}, {pipeline_mode = #tpu.pipeline_mode<synchronous>, transform_indices = @transform_37, window_bounds = array<i64: 32, 192>}, {pipeline_mode = #tpu.pipeline_mode<synchronous>, transform_indices = @transform_38, window_bounds = array<i64: 1, 192>}, {transform_indices = @transform_39, window_bounds = array<i64: 1, 4, 192>}]} {
    %c0 = arith.constant 0 : index
    %c0_0 = arith.constant 0 : index
    %c0_1 = arith.constant 0 : index
    %0 = vector.load %arg1[%c0, %c0_0, %c0_1] : memref<1x5x192xf32, #tpu.memory_space<vmem>>, vector<1x5x192xf32>
    %1 = vector.shape_cast %0 : vector<1x5x192xf32> to vector<5x192xf32>
    %2 = arith.truncf %1 : vector<5x192xf32> to vector<5x192xbf16>
    %c0_2 = arith.constant 0 : index
    %c0_3 = arith.constant 0 : index
    %3 = vector.load %arg5[%c0_2, %c0_3] : memref<192x32xbf16, #tpu.memory_space<vmem>>, vector<192x32xbf16>
    %cst = arith.constant dense<0.000000e+00> : vector<5x32xf32>
    %4 = tpu.matmul %2, %3, %cst {dimension_numbers = #tpu.dot_dimension_numbers<[1], [0], [0], [1], [0, 0, 1, 1], [], []>} : vector<5x192xbf16>, vector<192x32xbf16>, vector<5x32xf32> -> vector<5x32xf32>
    %c0_4 = arith.constant 0 : index
    %c0_5 = arith.constant 0 : index
    %c0_6 = arith.constant 0 : index
    %5 = vector.load %arg2[%c0_4, %c0_5, %c0_6] : memref<1x5x32xf32, #tpu.memory_space<vmem>>, vector<1x5x32xf32>
    %6 = vector.shape_cast %5 : vector<1x5x32xf32> to vector<5x32xf32>
    %7 = arith.addf %4, %6 : vector<5x32xf32>
    %c0_7 = arith.constant 0 : index
    %c0_8 = arith.constant 0 : index
    %8 = vector.load %arg6[%c0_7, %c0_8] : memref<1x32xf32, #tpu.memory_space<vmem>>, vector<1x32xf32>
    %c0_9 = arith.constant 0 : index
    %c0_10 = arith.constant 0 : index
    %9 = vector.load %arg7[%c0_9, %c0_10] : memref<1x32xf32, #tpu.memory_space<vmem>>, vector<1x32xf32>
    %cst_11 = arith.constant dense<0.000000e+00> : vector<5xf32>
    %10 = vector.multi_reduction <add>, %7, %cst_11 [1] : vector<5x32xf32> to vector<5xf32>
    %11 = vector.shape_cast %10 : vector<5xf32> to vector<5x1xf32>
    %cst_12 = arith.constant 3.200000e+01 : f32
    %12 = vector.broadcast %cst_12 : f32 to vector<5x1xf32>
    %13 = arith.divf %11, %12 : vector<5x1xf32>
    %14 = vector.broadcast %13 : vector<5x1xf32> to vector<5x32xf32>
    %15 = arith.subf %7, %14 : vector<5x32xf32>
    %16 = arith.mulf %15, %15 : vector<5x32xf32>
    %cst_13 = arith.constant dense<0.000000e+00> : vector<5xf32>
    %17 = vector.multi_reduction <add>, %16, %cst_13 [1] : vector<5x32xf32> to vector<5xf32>
    %18 = vector.shape_cast %17 : vector<5xf32> to vector<5x1xf32>
    %cst_14 = arith.constant 3.200000e+01 : f32
    %19 = vector.broadcast %cst_14 : f32 to vector<5x1xf32>
    %20 = arith.divf %18, %19 : vector<5x1xf32>
    %21 = vector.broadcast %13 : vector<5x1xf32> to vector<5x32xf32>
    %22 = arith.subf %7, %21 : vector<5x32xf32>
    %cst_15 = arith.constant 9.99999997E-7 : f32
    %23 = vector.broadcast %cst_15 : f32 to vector<5x1xf32>
    %24 = arith.addf %20, %23 : vector<5x1xf32>
    %25 = math.rsqrt %24 : vector<5x1xf32>
    %26 = vector.broadcast %25 : vector<5x1xf32> to vector<5x32xf32>
    %27 = arith.mulf %22, %26 : vector<5x32xf32>
    %28 = vector.broadcast %8 : vector<1x32xf32> to vector<5x32xf32>
    %29 = arith.mulf %27, %28 : vector<5x32xf32>
    %30 = vector.broadcast %9 : vector<1x32xf32> to vector<5x32xf32>
    %31 = arith.addf %29, %30 : vector<5x32xf32>
    %c0_16 = arith.constant 0 : index
    %c0_17 = arith.constant 0 : index
    %c0_18 = arith.constant 0 : index
    %32 = vector.load %arg8[%c0_16, %c0_17, %c0_18] : memref<2x1x32xf32, #tpu.memory_space<vmem>>, vector<1x1x32xf32>
    %33 = vector.shape_cast %32 : vector<1x1x32xf32> to vector<1x32xf32>
    %c0_19 = arith.constant 0 : index
    %c0_20 = arith.constant 0 : index
    %c0_21 = arith.constant 0 : index
    %34 = vector.load %arg9[%c0_19, %c0_20, %c0_21] : memref<2x1x32xf32, #tpu.memory_space<vmem>>, vector<1x1x32xf32>
    %35 = vector.shape_cast %34 : vector<1x1x32xf32> to vector<1x32xf32>
    %c0_22 = arith.constant 0 : index
    %c0_23 = arith.constant 0 : index
    %c0_24 = arith.constant 0 : index
    %36 = vector.load %arg10[%c0_22, %c0_23, %c0_24] : memref<2x32x96xbf16, #tpu.memory_space<vmem>>, vector<1x32x96xbf16>
    %37 = vector.shape_cast %36 : vector<1x32x96xbf16> to vector<32x96xbf16>
    %c0_25 = arith.constant 0 : index
    %c0_26 = arith.constant 0 : index
    %c0_27 = arith.constant 0 : index
    %38 = vector.load %arg11[%c0_25, %c0_26, %c0_27] : memref<2x1x96xf32, #tpu.memory_space<vmem>>, vector<1x1x96xf32>
    %39 = vector.shape_cast %38 : vector<1x1x96xf32> to vector<1x96xf32>
    %c0_28 = arith.constant 0 : index
    %c0_29 = arith.constant 0 : index
    %c0_30 = arith.constant 0 : index
    %40 = vector.load %arg12[%c0_28, %c0_29, %c0_30] : memref<2x32x32xbf16, #tpu.memory_space<vmem>>, vector<1x32x32xbf16>
    %41 = vector.shape_cast %40 : vector<1x32x32xbf16> to vector<32x32xbf16>
    %c0_31 = arith.constant 0 : index
    %c0_32 = arith.constant 0 : index
    %c0_33 = arith.constant 0 : index
    %42 = vector.load %arg13[%c0_31, %c0_32, %c0_33] : memref<2x1x32xf32, #tpu.memory_space<vmem>>, vector<1x1x32xf32>
    %43 = vector.shape_cast %42 : vector<1x1x32xf32> to vector<1x32xf32>
    %c0_34 = arith.constant 0 : index
    %c0_35 = arith.constant 0 : index
    %c0_36 = arith.constant 0 : index
    %44 = vector.load %arg14[%c0_34, %c0_35, %c0_36] : memref<2x1x32xf32, #tpu.memory_space<vmem>>, vector<1x1x32xf32>
    %45 = vector.shape_cast %44 : vector<1x1x32xf32> to vector<1x32xf32>
    %c0_37 = arith.constant 0 : index
    %c0_38 = arith.constant 0 : index
    %c0_39 = arith.constant 0 : index
    %46 = vector.load %arg15[%c0_37, %c0_38, %c0_39] : memref<2x1x32xf32, #tpu.memory_space<vmem>>, vector<1x1x32xf32>
    %47 = vector.shape_cast %46 : vector<1x1x32xf32> to vector<1x32xf32>
    %c0_40 = arith.constant 0 : index
    %c0_41 = arith.constant 0 : index
    %c0_42 = arith.constant 0 : index
    %48 = vector.load %arg16[%c0_40, %c0_41, %c0_42] : memref<2x32x128xbf16, #tpu.memory_space<vmem>>, vector<1x32x128xbf16>
    %49 = vector.shape_cast %48 : vector<1x32x128xbf16> to vector<32x128xbf16>
    %c0_43 = arith.constant 0 : index
    %c0_44 = arith.constant 0 : index
    %c0_45 = arith.constant 0 : index
    %50 = vector.load %arg17[%c0_43, %c0_44, %c0_45] : memref<2x1x128xf32, #tpu.memory_space<vmem>>, vector<1x1x128xf32>
    %51 = vector.shape_cast %50 : vector<1x1x128xf32> to vector<1x128xf32>
    %c0_46 = arith.constant 0 : index
    %c0_47 = arith.constant 0 : index
    %c0_48 = arith.constant 0 : index
    %52 = vector.load %arg18[%c0_46, %c0_47, %c0_48] : memref<2x128x32xbf16, #tpu.memory_space<vmem>>, vector<1x128x32xbf16>
    %53 = vector.shape_cast %52 : vector<1x128x32xbf16> to vector<128x32xbf16>
    %c0_49 = arith.constant 0 : index
    %c0_50 = arith.constant 0 : index
    %c0_51 = arith.constant 0 : index
    %54 = vector.load %arg19[%c0_49, %c0_50, %c0_51] : memref<2x1x32xf32, #tpu.memory_space<vmem>>, vector<1x1x32xf32>
    %55 = vector.shape_cast %54 : vector<1x1x32xf32> to vector<1x32xf32>
    %cst_52 = arith.constant dense<0.000000e+00> : vector<5xf32>
    %56 = vector.multi_reduction <add>, %31, %cst_52 [1] : vector<5x32xf32> to vector<5xf32>
    %57 = vector.shape_cast %56 : vector<5xf32> to vector<5x1xf32>
    %cst_53 = arith.constant 3.200000e+01 : f32
    %58 = vector.broadcast %cst_53 : f32 to vector<5x1xf32>
    %59 = arith.divf %57, %58 : vector<5x1xf32>
    %60 = vector.broadcast %59 : vector<5x1xf32> to vector<5x32xf32>
    %61 = arith.subf %31, %60 : vector<5x32xf32>
    %62 = arith.mulf %61, %61 : vector<5x32xf32>
    %cst_54 = arith.constant dense<0.000000e+00> : vector<5xf32>
    %63 = vector.multi_reduction <add>, %62, %cst_54 [1] : vector<5x32xf32> to vector<5xf32>
    %64 = vector.shape_cast %63 : vector<5xf32> to vector<5x1xf32>
    %cst_55 = arith.constant 3.200000e+01 : f32
    %65 = vector.broadcast %cst_55 : f32 to vector<5x1xf32>
    %66 = arith.divf %64, %65 : vector<5x1xf32>
    %67 = vector.broadcast %59 : vector<5x1xf32> to vector<5x32xf32>
    %68 = arith.subf %31, %67 : vector<5x32xf32>
    %cst_56 = arith.constant 9.99999997E-7 : f32
    %69 = vector.broadcast %cst_56 : f32 to vector<5x1xf32>
    %70 = arith.addf %66, %69 : vector<5x1xf32>
    %71 = math.rsqrt %70 : vector<5x1xf32>
    %72 = vector.broadcast %71 : vector<5x1xf32> to vector<5x32xf32>
    %73 = arith.mulf %68, %72 : vector<5x32xf32>
    %74 = vector.broadcast %33 : vector<1x32xf32> to vector<5x32xf32>
    %75 = arith.mulf %73, %74 : vector<5x32xf32>
    %76 = vector.broadcast %35 : vector<1x32xf32> to vector<5x32xf32>
    %77 = arith.addf %75, %76 : vector<5x32xf32>
    %78 = arith.truncf %77 : vector<5x32xf32> to vector<5x32xbf16>
    %cst_57 = arith.constant dense<0.000000e+00> : vector<5x96xf32>
    %79 = tpu.matmul %78, %37, %cst_57 {dimension_numbers = #tpu.dot_dimension_numbers<[1], [0], [0], [1], [0, 0, 1, 1], [], []>} : vector<5x32xbf16>, vector<32x96xbf16>, vector<5x96xf32> -> vector<5x96xf32>
    %80 = vector.broadcast %39 : vector<1x96xf32> to vector<5x96xf32>
    %81 = arith.addf %79, %80 : vector<5x96xf32>
    %82 = vector.extract_strided_slice %81 {offsets = [0, 0], sizes = [5, 32], strides = [1, 1]} : vector<5x96xf32> to vector<5x32xf32>
    %83 = vector.extract_strided_slice %82 {offsets = [0, 0], sizes = [5, 8], strides = [1, 1]} : vector<5x32xf32> to vector<5x8xf32>
    %84 = vector.shape_cast %83 : vector<5x8xf32> to vector<1x5x8xf32>
    %85 = vector.extract_strided_slice %82 {offsets = [0, 8], sizes = [5, 8], strides = [1, 1]} : vector<5x32xf32> to vector<5x8xf32>
    %86 = vector.shape_cast %85 : vector<5x8xf32> to vector<1x5x8xf32>
    %87 = vector.extract_strided_slice %82 {offsets = [0, 16], sizes = [5, 8], strides = [1, 1]} : vector<5x32xf32> to vector<5x8xf32>
    %88 = vector.shape_cast %87 : vector<5x8xf32> to vector<1x5x8xf32>
    %89 = vector.extract_strided_slice %82 {offsets = [0, 24], sizes = [5, 8], strides = [1, 1]} : vector<5x32xf32> to vector<5x8xf32>
    %90 = vector.shape_cast %89 : vector<5x8xf32> to vector<1x5x8xf32>
    %91 = tpu.concatenate %84, %86, %88, %90 in 0 : vector<1x5x8xf32>, vector<1x5x8xf32>, vector<1x5x8xf32>, vector<1x5x8xf32> -> vector<4x5x8xf32>
    %cst_58 = arith.constant 0.353553385 : f32
    %92 = vector.broadcast %cst_58 : f32 to vector<4x5x8xf32>
    %93 = arith.mulf %91, %92 : vector<4x5x8xf32>
    %94 = vector.extract_strided_slice %81 {offsets = [0, 32], sizes = [5, 32], strides = [1, 1]} : vector<5x96xf32> to vector<5x32xf32>
    %95 = vector.extract_strided_slice %94 {offsets = [0, 0], sizes = [5, 8], strides = [1, 1]} : vector<5x32xf32> to vector<5x8xf32>
    %96 = vector.shape_cast %95 : vector<5x8xf32> to vector<1x5x8xf32>
    %97 = vector.extract_strided_slice %94 {offsets = [0, 8], sizes = [5, 8], strides = [1, 1]} : vector<5x32xf32> to vector<5x8xf32>
    %98 = vector.shape_cast %97 : vector<5x8xf32> to vector<1x5x8xf32>
    %99 = vector.extract_strided_slice %94 {offsets = [0, 16], sizes = [5, 8], strides = [1, 1]} : vector<5x32xf32> to vector<5x8xf32>
    %100 = vector.shape_cast %99 : vector<5x8xf32> to vector<1x5x8xf32>
    %101 = vector.extract_strided_slice %94 {offsets = [0, 24], sizes = [5, 8], strides = [1, 1]} : vector<5x32xf32> to vector<5x8xf32>
    %102 = vector.shape_cast %101 : vector<5x8xf32> to vector<1x5x8xf32>
    %103 = tpu.concatenate %96, %98, %100, %102 in 0 : vector<1x5x8xf32>, vector<1x5x8xf32>, vector<1x5x8xf32>, vector<1x5x8xf32> -> vector<4x5x8xf32>
    %104 = vector.extract_strided_slice %81 {offsets = [0, 64], sizes = [5, 32], strides = [1, 1]} : vector<5x96xf32> to vector<5x32xf32>
    %105 = vector.extract_strided_slice %104 {offsets = [0, 0], sizes = [5, 8], strides = [1, 1]} : vector<5x32xf32> to vector<5x8xf32>
    %106 = vector.shape_cast %105 : vector<5x8xf32> to vector<1x5x8xf32>
    %107 = vector.extract_strided_slice %104 {offsets = [0, 8], sizes = [5, 8], strides = [1, 1]} : vector<5x32xf32> to vector<5x8xf32>
    %108 = vector.shape_cast %107 : vector<5x8xf32> to vector<1x5x8xf32>
    %109 = vector.extract_strided_slice %104 {offsets = [0, 16], sizes = [5, 8], strides = [1, 1]} : vector<5x32xf32> to vector<5x8xf32>
    %110 = vector.shape_cast %109 : vector<5x8xf32> to vector<1x5x8xf32>
    %111 = vector.extract_strided_slice %104 {offsets = [0, 24], sizes = [5, 8], strides = [1, 1]} : vector<5x32xf32> to vector<5x8xf32>
    %112 = vector.shape_cast %111 : vector<5x8xf32> to vector<1x5x8xf32>
    %113 = tpu.concatenate %106, %108, %110, %112 in 0 : vector<1x5x8xf32>, vector<1x5x8xf32>, vector<1x5x8xf32>, vector<1x5x8xf32> -> vector<4x5x8xf32>
    %114 = arith.truncf %93 : vector<4x5x8xf32> to vector<4x5x8xbf16>
    %115 = arith.truncf %103 : vector<4x5x8xf32> to vector<4x5x8xbf16>
    "tpu.trace_start"() <{level = 10 : i32, message = "hqd,hkd->hqk"}> : () -> ()
    %cst_59 = arith.constant dense<0.000000e+00> : vector<4x5x5xf32>
    %116 = tpu.matmul %114, %115, %cst_59 {dimension_numbers = #tpu.dot_dimension_numbers<[2], [2], [1], [1], [0, 0, 0, 1, 1, 1], [0], [0]>} : vector<4x5x8xbf16>, vector<4x5x8xbf16>, vector<4x5x5xf32> -> vector<4x5x5xf32>
    "tpu.trace_stop"() : () -> ()
    %cst_60 = arith.constant dense<0xFF800000> : vector<4x5xf32>
    %117 = vector.multi_reduction <maximumf>, %116, %cst_60 [2] : vector<4x5x5xf32> to vector<4x5xf32>
    %118 = vector.shape_cast %117 : vector<4x5xf32> to vector<4x5x1xf32>
    %119 = vector.broadcast %118 : vector<4x5x1xf32> to vector<4x5x5xf32>
    %120 = arith.subf %116, %119 : vector<4x5x5xf32>
    %121 = math.exp %120 : vector<4x5x5xf32>
    %cst_61 = arith.constant dense<0.000000e+00> : vector<4x5xf32>
    %122 = vector.multi_reduction <add>, %121, %cst_61 [2] : vector<4x5x5xf32> to vector<4x5xf32>
    %123 = vector.shape_cast %122 : vector<4x5xf32> to vector<4x5x1xf32>
    %124 = tpu.reciprocal %123 {approx = true} : vector<4x5x1xf32> -> vector<4x5x1xf32>
    %125 = arith.truncf %121 : vector<4x5x5xf32> to vector<4x5x5xbf16>
    %126 = arith.truncf %113 : vector<4x5x8xf32> to vector<4x5x8xbf16>
    "tpu.trace_start"() <{level = 10 : i32, message = "hqk,hkd->hqd"}> : () -> ()
    %cst_62 = arith.constant dense<0.000000e+00> : vector<4x5x8xf32>
    %127 = tpu.matmul %125, %126, %cst_62 {dimension_numbers = #tpu.dot_dimension_numbers<[2], [1], [1], [2], [0, 0, 0, 1, 1, 2], [0], [0]>} : vector<4x5x5xbf16>, vector<4x5x8xbf16>, vector<4x5x8xf32> -> vector<4x5x8xf32>
    "tpu.trace_stop"() : () -> ()
    %128 = vector.broadcast %124 : vector<4x5x1xf32> to vector<4x5x8xf32>
    %129 = arith.mulf %127, %128 : vector<4x5x8xf32>
    %130 = vector.extract_strided_slice %129 {offsets = [0, 0, 0], sizes = [1, 5, 8], strides = [1, 1, 1]} : vector<4x5x8xf32> to vector<1x5x8xf32>
    %131 = vector.shape_cast %130 : vector<1x5x8xf32> to vector<5x8xf32>
    %132 = vector.extract_strided_slice %129 {offsets = [1, 0, 0], sizes = [1, 5, 8], strides = [1, 1, 1]} : vector<4x5x8xf32> to vector<1x5x8xf32>
    %133 = vector.shape_cast %132 : vector<1x5x8xf32> to vector<5x8xf32>
    %134 = vector.extract_strided_slice %129 {offsets = [2, 0, 0], sizes = [1, 5, 8], strides = [1, 1, 1]} : vector<4x5x8xf32> to vector<1x5x8xf32>
    %135 = vector.shape_cast %134 : vector<1x5x8xf32> to vector<5x8xf32>
    %136 = vector.extract_strided_slice %129 {offsets = [3, 0, 0], sizes = [1, 5, 8], strides = [1, 1, 1]} : vector<4x5x8xf32> to vector<1x5x8xf32>
    %137 = vector.shape_cast %136 : vector<1x5x8xf32> to vector<5x8xf32>
    %138 = tpu.concatenate %131, %133, %135, %137 in 1 : vector<5x8xf32>, vector<5x8xf32>, vector<5x8xf32>, vector<5x8xf32> -> vector<5x32xf32>
    %139 = arith.truncf %138 : vector<5x32xf32> to vector<5x32xbf16>
    %cst_63 = arith.constant dense<0.000000e+00> : vector<5x32xf32>
    %140 = tpu.matmul %139, %41, %cst_63 {dimension_numbers = #tpu.dot_dimension_numbers<[1], [0], [0], [1], [0, 0, 1, 1], [], []>} : vector<5x32xbf16>, vector<32x32xbf16>, vector<5x32xf32> -> vector<5x32xf32>
    %141 = arith.addf %31, %140 : vector<5x32xf32>
    %142 = vector.broadcast %43 : vector<1x32xf32> to vector<5x32xf32>
    %143 = arith.addf %141, %142 : vector<5x32xf32>
    %cst_64 = arith.constant dense<0.000000e+00> : vector<5xf32>
    %144 = vector.multi_reduction <add>, %143, %cst_64 [1] : vector<5x32xf32> to vector<5xf32>
    %145 = vector.shape_cast %144 : vector<5xf32> to vector<5x1xf32>
    %cst_65 = arith.constant 3.200000e+01 : f32
    %146 = vector.broadcast %cst_65 : f32 to vector<5x1xf32>
    %147 = arith.divf %145, %146 : vector<5x1xf32>
    %148 = vector.broadcast %147 : vector<5x1xf32> to vector<5x32xf32>
    %149 = arith.subf %143, %148 : vector<5x32xf32>
    %150 = arith.mulf %149, %149 : vector<5x32xf32>
    %cst_66 = arith.constant dense<0.000000e+00> : vector<5xf32>
    %151 = vector.multi_reduction <add>, %150, %cst_66 [1] : vector<5x32xf32> to vector<5xf32>
    %152 = vector.shape_cast %151 : vector<5xf32> to vector<5x1xf32>
    %cst_67 = arith.constant 3.200000e+01 : f32
    %153 = vector.broadcast %cst_67 : f32 to vector<5x1xf32>
    %154 = arith.divf %152, %153 : vector<5x1xf32>
    %155 = vector.broadcast %147 : vector<5x1xf32> to vector<5x32xf32>
    %156 = arith.subf %143, %155 : vector<5x32xf32>
    %cst_68 = arith.constant 9.99999997E-7 : f32
    %157 = vector.broadcast %cst_68 : f32 to vector<5x1xf32>
    %158 = arith.addf %154, %157 : vector<5x1xf32>
    %159 = math.rsqrt %158 : vector<5x1xf32>
    %160 = vector.broadcast %159 : vector<5x1xf32> to vector<5x32xf32>
    %161 = arith.mulf %156, %160 : vector<5x32xf32>
    %162 = vector.broadcast %45 : vector<1x32xf32> to vector<5x32xf32>
    %163 = arith.mulf %161, %162 : vector<5x32xf32>
    %164 = vector.broadcast %47 : vector<1x32xf32> to vector<5x32xf32>
    %165 = arith.addf %163, %164 : vector<5x32xf32>
    %166 = arith.truncf %165 : vector<5x32xf32> to vector<5x32xbf16>
    %cst_69 = arith.constant dense<0.000000e+00> : vector<5x128xf32>
    %167 = tpu.matmul %166, %49, %cst_69 {dimension_numbers = #tpu.dot_dimension_numbers<[1], [0], [0], [1], [0, 0, 1, 1], [], []>} : vector<5x32xbf16>, vector<32x128xbf16>, vector<5x128xf32> -> vector<5x128xf32>
    %168 = vector.broadcast %51 : vector<1x128xf32> to vector<5x128xf32>
    %169 = arith.addf %167, %168 : vector<5x128xf32>
    %cst_70 = arith.constant 5.000000e-01 : f32
    %170 = vector.broadcast %cst_70 : f32 to vector<5x128xf32>
    %171 = arith.mulf %170, %169 : vector<5x128xf32>
    %cst_71 = arith.constant 0.707106769 : f32
    %172 = vector.broadcast %cst_71 : f32 to vector<5x128xf32>
    %173 = arith.mulf %169, %172 : vector<5x128xf32>
    %174 = math.absf %173 : vector<5x128xf32>
    %cst_72 = arith.constant 0.327591091 : f32
    %175 = vector.broadcast %cst_72 : f32 to vector<5x128xf32>
    %176 = arith.mulf %175, %174 : vector<5x128xf32>
    %cst_73 = arith.constant 1.000000e+00 : f32
    %177 = vector.broadcast %cst_73 : f32 to vector<5x128xf32>
    %178 = arith.addf %177, %176 : vector<5x128xf32>
    %179 = tpu.reciprocal %178 {approx = true} : vector<5x128xf32> -> vector<5x128xf32>
    %cst_74 = arith.constant 1.06140542 : f32
    %180 = vector.broadcast %cst_74 : f32 to vector<5x128xf32>
    %181 = arith.mulf %180, %179 : vector<5x128xf32>
    %cst_75 = arith.constant -1.45315206 : f32
    %182 = vector.broadcast %cst_75 : f32 to vector<5x128xf32>
    %183 = arith.addf %181, %182 : vector<5x128xf32>
    %184 = arith.mulf %183, %179 : vector<5x128xf32>
    %cst_76 = arith.constant 1.42141378 : f32
    %185 = vector.broadcast %cst_76 : f32 to vector<5x128xf32>
    %186 = arith.addf %184, %185 : vector<5x128xf32>
    %187 = arith.mulf %186, %179 : vector<5x128xf32>
    %cst_77 = arith.constant -0.284496725 : f32
    %188 = vector.broadcast %cst_77 : f32 to vector<5x128xf32>
    %189 = arith.addf %187, %188 : vector<5x128xf32>
    %190 = arith.mulf %189, %179 : vector<5x128xf32>
    %cst_78 = arith.constant 0.254829586 : f32
    %191 = vector.broadcast %cst_78 : f32 to vector<5x128xf32>
    %192 = arith.addf %190, %191 : vector<5x128xf32>
    %193 = arith.mulf %192, %179 : vector<5x128xf32>
    %cst_79 = arith.constant 0.000000e+00 : f32
    %194 = vector.broadcast %cst_79 : f32 to vector<5x128xf32>
    %195 = arith.subf %194, %174 : vector<5x128xf32>
    %196 = arith.mulf %195, %174 : vector<5x128xf32>
    %197 = math.exp %196 : vector<5x128xf32>
    %198 = arith.mulf %193, %197 : vector<5x128xf32>
    %cst_80 = arith.constant 1.000000e+00 : f32
    %199 = vector.broadcast %cst_80 : f32 to vector<5x128xf32>
    %200 = arith.subf %199, %198 : vector<5x128xf32>
    %cst_81 = arith.constant 0.000000e+00 : f32
    %201 = vector.broadcast %cst_81 : f32 to vector<5x128xf32>
    %202 = arith.cmpf oge, %173, %201 : vector<5x128xf32>
    %cst_82 = arith.constant 0.000000e+00 : f32
    %203 = vector.broadcast %cst_82 : f32 to vector<5x128xf32>
    %204 = arith.subf %203, %200 : vector<5x128xf32>
    %205 = arith.select %202, %200, %204 : vector<5x128xi1>, vector<5x128xf32>
    %cst_83 = arith.constant 1.000000e+00 : f32
    %206 = vector.broadcast %cst_83 : f32 to vector<5x128xf32>
    %207 = arith.addf %206, %205 : vector<5x128xf32>
    %208 = arith.mulf %171, %207 : vector<5x128xf32>
    %209 = arith.truncf %208 : vector<5x128xf32> to vector<5x128xbf16>
    %cst_84 = arith.constant dense<0.000000e+00> : vector<5x32xf32>
    %210 = tpu.matmul %209, %53, %cst_84 {dimension_numbers = #tpu.dot_dimension_numbers<[1], [0], [0], [1], [0, 0, 1, 1], [], []>} : vector<5x128xbf16>, vector<128x32xbf16>, vector<5x32xf32> -> vector<5x32xf32>
    %211 = vector.broadcast %55 : vector<1x32xf32> to vector<5x32xf32>
    %212 = arith.addf %210, %211 : vector<5x32xf32>
    %213 = arith.addf %143, %212 : vector<5x32xf32>
    %c1 = arith.constant 1 : index
    %c0_85 = arith.constant 0 : index
    %c0_86 = arith.constant 0 : index
    %214 = vector.load %arg8[%c1, %c0_85, %c0_86] : memref<2x1x32xf32, #tpu.memory_space<vmem>>, vector<1x1x32xf32>
    %215 = vector.shape_cast %214 : vector<1x1x32xf32> to vector<1x32xf32>
    %c1_87 = arith.constant 1 : index
    %c0_88 = arith.constant 0 : index
    %c0_89 = arith.constant 0 : index
    %216 = vector.load %arg9[%c1_87, %c0_88, %c0_89] : memref<2x1x32xf32, #tpu.memory_space<vmem>>, vector<1x1x32xf32>
    %217 = vector.shape_cast %216 : vector<1x1x32xf32> to vector<1x32xf32>
    %c1_90 = arith.constant 1 : index
    %c0_91 = arith.constant 0 : index
    %c0_92 = arith.constant 0 : index
    %218 = vector.load %arg10[%c1_90, %c0_91, %c0_92] : memref<2x32x96xbf16, #tpu.memory_space<vmem>>, vector<1x32x96xbf16>
    %219 = vector.shape_cast %218 : vector<1x32x96xbf16> to vector<32x96xbf16>
    %c1_93 = arith.constant 1 : index
    %c0_94 = arith.constant 0 : index
    %c0_95 = arith.constant 0 : index
    %220 = vector.load %arg11[%c1_93, %c0_94, %c0_95] : memref<2x1x96xf32, #tpu.memory_space<vmem>>, vector<1x1x96xf32>
    %221 = vector.shape_cast %220 : vector<1x1x96xf32> to vector<1x96xf32>
    %c1_96 = arith.constant 1 : index
    %c0_97 = arith.constant 0 : index
    %c0_98 = arith.constant 0 : index
    %222 = vector.load %arg12[%c1_96, %c0_97, %c0_98] : memref<2x32x32xbf16, #tpu.memory_space<vmem>>, vector<1x32x32xbf16>
    %223 = vector.shape_cast %222 : vector<1x32x32xbf16> to vector<32x32xbf16>
    %c1_99 = arith.constant 1 : index
    %c0_100 = arith.constant 0 : index
    %c0_101 = arith.constant 0 : index
    %224 = vector.load %arg13[%c1_99, %c0_100, %c0_101] : memref<2x1x32xf32, #tpu.memory_space<vmem>>, vector<1x1x32xf32>
    %225 = vector.shape_cast %224 : vector<1x1x32xf32> to vector<1x32xf32>
    %c1_102 = arith.constant 1 : index
    %c0_103 = arith.constant 0 : index
    %c0_104 = arith.constant 0 : index
    %226 = vector.load %arg14[%c1_102, %c0_103, %c0_104] : memref<2x1x32xf32, #tpu.memory_space<vmem>>, vector<1x1x32xf32>
    %227 = vector.shape_cast %226 : vector<1x1x32xf32> to vector<1x32xf32>
    %c1_105 = arith.constant 1 : index
    %c0_106 = arith.constant 0 : index
    %c0_107 = arith.constant 0 : index
    %228 = vector.load %arg15[%c1_105, %c0_106, %c0_107] : memref<2x1x32xf32, #tpu.memory_space<vmem>>, vector<1x1x32xf32>
    %229 = vector.shape_cast %228 : vector<1x1x32xf32> to vector<1x32xf32>
    %c1_108 = arith.constant 1 : index
    %c0_109 = arith.constant 0 : index
    %c0_110 = arith.constant 0 : index
    %230 = vector.load %arg16[%c1_108, %c0_109, %c0_110] : memref<2x32x128xbf16, #tpu.memory_space<vmem>>, vector<1x32x128xbf16>
    %231 = vector.shape_cast %230 : vector<1x32x128xbf16> to vector<32x128xbf16>
    %c1_111 = arith.constant 1 : index
    %c0_112 = arith.constant 0 : index
    %c0_113 = arith.constant 0 : index
    %232 = vector.load %arg17[%c1_111, %c0_112, %c0_113] : memref<2x1x128xf32, #tpu.memory_space<vmem>>, vector<1x1x128xf32>
    %233 = vector.shape_cast %232 : vector<1x1x128xf32> to vector<1x128xf32>
    %c1_114 = arith.constant 1 : index
    %c0_115 = arith.constant 0 : index
    %c0_116 = arith.constant 0 : index
    %234 = vector.load %arg18[%c1_114, %c0_115, %c0_116] : memref<2x128x32xbf16, #tpu.memory_space<vmem>>, vector<1x128x32xbf16>
    %235 = vector.shape_cast %234 : vector<1x128x32xbf16> to vector<128x32xbf16>
    %c1_117 = arith.constant 1 : index
    %c0_118 = arith.constant 0 : index
    %c0_119 = arith.constant 0 : index
    %236 = vector.load %arg19[%c1_117, %c0_118, %c0_119] : memref<2x1x32xf32, #tpu.memory_space<vmem>>, vector<1x1x32xf32>
    %237 = vector.shape_cast %236 : vector<1x1x32xf32> to vector<1x32xf32>
    %cst_120 = arith.constant dense<0.000000e+00> : vector<5xf32>
    %238 = vector.multi_reduction <add>, %213, %cst_120 [1] : vector<5x32xf32> to vector<5xf32>
    %239 = vector.shape_cast %238 : vector<5xf32> to vector<5x1xf32>
    %cst_121 = arith.constant 3.200000e+01 : f32
    %240 = vector.broadcast %cst_121 : f32 to vector<5x1xf32>
    %241 = arith.divf %239, %240 : vector<5x1xf32>
    %242 = vector.broadcast %241 : vector<5x1xf32> to vector<5x32xf32>
    %243 = arith.subf %213, %242 : vector<5x32xf32>
    %244 = arith.mulf %243, %243 : vector<5x32xf32>
    %cst_122 = arith.constant dense<0.000000e+00> : vector<5xf32>
    %245 = vector.multi_reduction <add>, %244, %cst_122 [1] : vector<5x32xf32> to vector<5xf32>
    %246 = vector.shape_cast %245 : vector<5xf32> to vector<5x1xf32>
    %cst_123 = arith.constant 3.200000e+01 : f32
    %247 = vector.broadcast %cst_123 : f32 to vector<5x1xf32>
    %248 = arith.divf %246, %247 : vector<5x1xf32>
    %249 = vector.broadcast %241 : vector<5x1xf32> to vector<5x32xf32>
    %250 = arith.subf %213, %249 : vector<5x32xf32>
    %cst_124 = arith.constant 9.99999997E-7 : f32
    %251 = vector.broadcast %cst_124 : f32 to vector<5x1xf32>
    %252 = arith.addf %248, %251 : vector<5x1xf32>
    %253 = math.rsqrt %252 : vector<5x1xf32>
    %254 = vector.broadcast %253 : vector<5x1xf32> to vector<5x32xf32>
    %255 = arith.mulf %250, %254 : vector<5x32xf32>
    %256 = vector.broadcast %215 : vector<1x32xf32> to vector<5x32xf32>
    %257 = arith.mulf %255, %256 : vector<5x32xf32>
    %258 = vector.broadcast %217 : vector<1x32xf32> to vector<5x32xf32>
    %259 = arith.addf %257, %258 : vector<5x32xf32>
    %260 = arith.truncf %259 : vector<5x32xf32> to vector<5x32xbf16>
    %cst_125 = arith.constant dense<0.000000e+00> : vector<5x96xf32>
    %261 = tpu.matmul %260, %219, %cst_125 {dimension_numbers = #tpu.dot_dimension_numbers<[1], [0], [0], [1], [0, 0, 1, 1], [], []>} : vector<5x32xbf16>, vector<32x96xbf16>, vector<5x96xf32> -> vector<5x96xf32>
    %262 = vector.broadcast %221 : vector<1x96xf32> to vector<5x96xf32>
    %263 = arith.addf %261, %262 : vector<5x96xf32>
    %264 = vector.extract_strided_slice %263 {offsets = [0, 0], sizes = [5, 32], strides = [1, 1]} : vector<5x96xf32> to vector<5x32xf32>
    %265 = vector.extract_strided_slice %264 {offsets = [0, 0], sizes = [5, 8], strides = [1, 1]} : vector<5x32xf32> to vector<5x8xf32>
    %266 = vector.shape_cast %265 : vector<5x8xf32> to vector<1x5x8xf32>
    %267 = vector.extract_strided_slice %264 {offsets = [0, 8], sizes = [5, 8], strides = [1, 1]} : vector<5x32xf32> to vector<5x8xf32>
    %268 = vector.shape_cast %267 : vector<5x8xf32> to vector<1x5x8xf32>
    %269 = vector.extract_strided_slice %264 {offsets = [0, 16], sizes = [5, 8], strides = [1, 1]} : vector<5x32xf32> to vector<5x8xf32>
    %270 = vector.shape_cast %269 : vector<5x8xf32> to vector<1x5x8xf32>
    %271 = vector.extract_strided_slice %264 {offsets = [0, 24], sizes = [5, 8], strides = [1, 1]} : vector<5x32xf32> to vector<5x8xf32>
    %272 = vector.shape_cast %271 : vector<5x8xf32> to vector<1x5x8xf32>
    %273 = tpu.concatenate %266, %268, %270, %272 in 0 : vector<1x5x8xf32>, vector<1x5x8xf32>, vector<1x5x8xf32>, vector<1x5x8xf32> -> vector<4x5x8xf32>
    %cst_126 = arith.constant 0.353553385 : f32
    %274 = vector.broadcast %cst_126 : f32 to vector<4x5x8xf32>
    %275 = arith.mulf %273, %274 : vector<4x5x8xf32>
    %276 = vector.extract_strided_slice %263 {offsets = [0, 32], sizes = [5, 32], strides = [1, 1]} : vector<5x96xf32> to vector<5x32xf32>
    %277 = vector.extract_strided_slice %276 {offsets = [0, 0], sizes = [5, 8], strides = [1, 1]} : vector<5x32xf32> to vector<5x8xf32>
    %278 = vector.shape_cast %277 : vector<5x8xf32> to vector<1x5x8xf32>
    %279 = vector.extract_strided_slice %276 {offsets = [0, 8], sizes = [5, 8], strides = [1, 1]} : vector<5x32xf32> to vector<5x8xf32>
    %280 = vector.shape_cast %279 : vector<5x8xf32> to vector<1x5x8xf32>
    %281 = vector.extract_strided_slice %276 {offsets = [0, 16], sizes = [5, 8], strides = [1, 1]} : vector<5x32xf32> to vector<5x8xf32>
    %282 = vector.shape_cast %281 : vector<5x8xf32> to vector<1x5x8xf32>
    %283 = vector.extract_strided_slice %276 {offsets = [0, 24], sizes = [5, 8], strides = [1, 1]} : vector<5x32xf32> to vector<5x8xf32>
    %284 = vector.shape_cast %283 : vector<5x8xf32> to vector<1x5x8xf32>
    %285 = tpu.concatenate %278, %280, %282, %284 in 0 : vector<1x5x8xf32>, vector<1x5x8xf32>, vector<1x5x8xf32>, vector<1x5x8xf32> -> vector<4x5x8xf32>
    %286 = vector.extract_strided_slice %263 {offsets = [0, 64], sizes = [5, 32], strides = [1, 1]} : vector<5x96xf32> to vector<5x32xf32>
    %287 = vector.extract_strided_slice %286 {offsets = [0, 0], sizes = [5, 8], strides = [1, 1]} : vector<5x32xf32> to vector<5x8xf32>
    %288 = vector.shape_cast %287 : vector<5x8xf32> to vector<1x5x8xf32>
    %289 = vector.extract_strided_slice %286 {offsets = [0, 8], sizes = [5, 8], strides = [1, 1]} : vector<5x32xf32> to vector<5x8xf32>
    %290 = vector.shape_cast %289 : vector<5x8xf32> to vector<1x5x8xf32>
    %291 = vector.extract_strided_slice %286 {offsets = [0, 16], sizes = [5, 8], strides = [1, 1]} : vector<5x32xf32> to vector<5x8xf32>
    %292 = vector.shape_cast %291 : vector<5x8xf32> to vector<1x5x8xf32>
    %293 = vector.extract_strided_slice %286 {offsets = [0, 24], sizes = [5, 8], strides = [1, 1]} : vector<5x32xf32> to vector<5x8xf32>
    %294 = vector.shape_cast %293 : vector<5x8xf32> to vector<1x5x8xf32>
    %295 = tpu.concatenate %288, %290, %292, %294 in 0 : vector<1x5x8xf32>, vector<1x5x8xf32>, vector<1x5x8xf32>, vector<1x5x8xf32> -> vector<4x5x8xf32>
    %296 = arith.truncf %275 : vector<4x5x8xf32> to vector<4x5x8xbf16>
    %297 = arith.truncf %285 : vector<4x5x8xf32> to vector<4x5x8xbf16>
    "tpu.trace_start"() <{level = 10 : i32, message = "hqd,hkd->hqk"}> : () -> ()
    %cst_127 = arith.constant dense<0.000000e+00> : vector<4x5x5xf32>
    %298 = tpu.matmul %296, %297, %cst_127 {dimension_numbers = #tpu.dot_dimension_numbers<[2], [2], [1], [1], [0, 0, 0, 1, 1, 1], [0], [0]>} : vector<4x5x8xbf16>, vector<4x5x8xbf16>, vector<4x5x5xf32> -> vector<4x5x5xf32>
    "tpu.trace_stop"() : () -> ()
    %cst_128 = arith.constant dense<0xFF800000> : vector<4x5xf32>
    %299 = vector.multi_reduction <maximumf>, %298, %cst_128 [2] : vector<4x5x5xf32> to vector<4x5xf32>
    %300 = vector.shape_cast %299 : vector<4x5xf32> to vector<4x5x1xf32>
    %301 = vector.broadcast %300 : vector<4x5x1xf32> to vector<4x5x5xf32>
    %302 = arith.subf %298, %301 : vector<4x5x5xf32>
    %303 = math.exp %302 : vector<4x5x5xf32>
    %cst_129 = arith.constant dense<0.000000e+00> : vector<4x5xf32>
    %304 = vector.multi_reduction <add>, %303, %cst_129 [2] : vector<4x5x5xf32> to vector<4x5xf32>
    %305 = vector.shape_cast %304 : vector<4x5xf32> to vector<4x5x1xf32>
    %306 = tpu.reciprocal %305 {approx = true} : vector<4x5x1xf32> -> vector<4x5x1xf32>
    %307 = arith.truncf %303 : vector<4x5x5xf32> to vector<4x5x5xbf16>
    %308 = arith.truncf %295 : vector<4x5x8xf32> to vector<4x5x8xbf16>
    "tpu.trace_start"() <{level = 10 : i32, message = "hqk,hkd->hqd"}> : () -> ()
    %cst_130 = arith.constant dense<0.000000e+00> : vector<4x5x8xf32>
    %309 = tpu.matmul %307, %308, %cst_130 {dimension_numbers = #tpu.dot_dimension_numbers<[2], [1], [1], [2], [0, 0, 0, 1, 1, 2], [0], [0]>} : vector<4x5x5xbf16>, vector<4x5x8xbf16>, vector<4x5x8xf32> -> vector<4x5x8xf32>
    "tpu.trace_stop"() : () -> ()
    %310 = vector.broadcast %306 : vector<4x5x1xf32> to vector<4x5x8xf32>
    %311 = arith.mulf %309, %310 : vector<4x5x8xf32>
    %312 = vector.extract_strided_slice %311 {offsets = [0, 0, 0], sizes = [1, 5, 8], strides = [1, 1, 1]} : vector<4x5x8xf32> to vector<1x5x8xf32>
    %313 = vector.shape_cast %312 : vector<1x5x8xf32> to vector<5x8xf32>
    %314 = vector.extract_strided_slice %311 {offsets = [1, 0, 0], sizes = [1, 5, 8], strides = [1, 1, 1]} : vector<4x5x8xf32> to vector<1x5x8xf32>
    %315 = vector.shape_cast %314 : vector<1x5x8xf32> to vector<5x8xf32>
    %316 = vector.extract_strided_slice %311 {offsets = [2, 0, 0], sizes = [1, 5, 8], strides = [1, 1, 1]} : vector<4x5x8xf32> to vector<1x5x8xf32>
    %317 = vector.shape_cast %316 : vector<1x5x8xf32> to vector<5x8xf32>
    %318 = vector.extract_strided_slice %311 {offsets = [3, 0, 0], sizes = [1, 5, 8], strides = [1, 1, 1]} : vector<4x5x8xf32> to vector<1x5x8xf32>
    %319 = vector.shape_cast %318 : vector<1x5x8xf32> to vector<5x8xf32>
    %320 = tpu.concatenate %313, %315, %317, %319 in 1 : vector<5x8xf32>, vector<5x8xf32>, vector<5x8xf32>, vector<5x8xf32> -> vector<5x32xf32>
    %321 = arith.truncf %320 : vector<5x32xf32> to vector<5x32xbf16>
    %cst_131 = arith.constant dense<0.000000e+00> : vector<5x32xf32>
    %322 = tpu.matmul %321, %223, %cst_131 {dimension_numbers = #tpu.dot_dimension_numbers<[1], [0], [0], [1], [0, 0, 1, 1], [], []>} : vector<5x32xbf16>, vector<32x32xbf16>, vector<5x32xf32> -> vector<5x32xf32>
    %323 = arith.addf %213, %322 : vector<5x32xf32>
    %324 = vector.broadcast %225 : vector<1x32xf32> to vector<5x32xf32>
    %325 = arith.addf %323, %324 : vector<5x32xf32>
    %cst_132 = arith.constant dense<0.000000e+00> : vector<5xf32>
    %326 = vector.multi_reduction <add>, %325, %cst_132 [1] : vector<5x32xf32> to vector<5xf32>
    %327 = vector.shape_cast %326 : vector<5xf32> to vector<5x1xf32>
    %cst_133 = arith.constant 3.200000e+01 : f32
    %328 = vector.broadcast %cst_133 : f32 to vector<5x1xf32>
    %329 = arith.divf %327, %328 : vector<5x1xf32>
    %330 = vector.broadcast %329 : vector<5x1xf32> to vector<5x32xf32>
    %331 = arith.subf %325, %330 : vector<5x32xf32>
    %332 = arith.mulf %331, %331 : vector<5x32xf32>
    %cst_134 = arith.constant dense<0.000000e+00> : vector<5xf32>
    %333 = vector.multi_reduction <add>, %332, %cst_134 [1] : vector<5x32xf32> to vector<5xf32>
    %334 = vector.shape_cast %333 : vector<5xf32> to vector<5x1xf32>
    %cst_135 = arith.constant 3.200000e+01 : f32
    %335 = vector.broadcast %cst_135 : f32 to vector<5x1xf32>
    %336 = arith.divf %334, %335 : vector<5x1xf32>
    %337 = vector.broadcast %329 : vector<5x1xf32> to vector<5x32xf32>
    %338 = arith.subf %325, %337 : vector<5x32xf32>
    %cst_136 = arith.constant 9.99999997E-7 : f32
    %339 = vector.broadcast %cst_136 : f32 to vector<5x1xf32>
    %340 = arith.addf %336, %339 : vector<5x1xf32>
    %341 = math.rsqrt %340 : vector<5x1xf32>
    %342 = vector.broadcast %341 : vector<5x1xf32> to vector<5x32xf32>
    %343 = arith.mulf %338, %342 : vector<5x32xf32>
    %344 = vector.broadcast %227 : vector<1x32xf32> to vector<5x32xf32>
    %345 = arith.mulf %343, %344 : vector<5x32xf32>
    %346 = vector.broadcast %229 : vector<1x32xf32> to vector<5x32xf32>
    %347 = arith.addf %345, %346 : vector<5x32xf32>
    %348 = arith.truncf %347 : vector<5x32xf32> to vector<5x32xbf16>
    %cst_137 = arith.constant dense<0.000000e+00> : vector<5x128xf32>
    %349 = tpu.matmul %348, %231, %cst_137 {dimension_numbers = #tpu.dot_dimension_numbers<[1], [0], [0], [1], [0, 0, 1, 1], [], []>} : vector<5x32xbf16>, vector<32x128xbf16>, vector<5x128xf32> -> vector<5x128xf32>
    %350 = vector.broadcast %233 : vector<1x128xf32> to vector<5x128xf32>
    %351 = arith.addf %349, %350 : vector<5x128xf32>
    %cst_138 = arith.constant 5.000000e-01 : f32
    %352 = vector.broadcast %cst_138 : f32 to vector<5x128xf32>
    %353 = arith.mulf %352, %351 : vector<5x128xf32>
    %cst_139 = arith.constant 0.707106769 : f32
    %354 = vector.broadcast %cst_139 : f32 to vector<5x128xf32>
    %355 = arith.mulf %351, %354 : vector<5x128xf32>
    %356 = math.absf %355 : vector<5x128xf32>
    %cst_140 = arith.constant 0.327591091 : f32
    %357 = vector.broadcast %cst_140 : f32 to vector<5x128xf32>
    %358 = arith.mulf %357, %356 : vector<5x128xf32>
    %cst_141 = arith.constant 1.000000e+00 : f32
    %359 = vector.broadcast %cst_141 : f32 to vector<5x128xf32>
    %360 = arith.addf %359, %358 : vector<5x128xf32>
    %361 = tpu.reciprocal %360 {approx = true} : vector<5x128xf32> -> vector<5x128xf32>
    %cst_142 = arith.constant 1.06140542 : f32
    %362 = vector.broadcast %cst_142 : f32 to vector<5x128xf32>
    %363 = arith.mulf %362, %361 : vector<5x128xf32>
    %cst_143 = arith.constant -1.45315206 : f32
    %364 = vector.broadcast %cst_143 : f32 to vector<5x128xf32>
    %365 = arith.addf %363, %364 : vector<5x128xf32>
    %366 = arith.mulf %365, %361 : vector<5x128xf32>
    %cst_144 = arith.constant 1.42141378 : f32
    %367 = vector.broadcast %cst_144 : f32 to vector<5x128xf32>
    %368 = arith.addf %366, %367 : vector<5x128xf32>
    %369 = arith.mulf %368, %361 : vector<5x128xf32>
    %cst_145 = arith.constant -0.284496725 : f32
    %370 = vector.broadcast %cst_145 : f32 to vector<5x128xf32>
    %371 = arith.addf %369, %370 : vector<5x128xf32>
    %372 = arith.mulf %371, %361 : vector<5x128xf32>
    %cst_146 = arith.constant 0.254829586 : f32
    %373 = vector.broadcast %cst_146 : f32 to vector<5x128xf32>
    %374 = arith.addf %372, %373 : vector<5x128xf32>
    %375 = arith.mulf %374, %361 : vector<5x128xf32>
    %cst_147 = arith.constant 0.000000e+00 : f32
    %376 = vector.broadcast %cst_147 : f32 to vector<5x128xf32>
    %377 = arith.subf %376, %356 : vector<5x128xf32>
    %378 = arith.mulf %377, %356 : vector<5x128xf32>
    %379 = math.exp %378 : vector<5x128xf32>
    %380 = arith.mulf %375, %379 : vector<5x128xf32>
    %cst_148 = arith.constant 1.000000e+00 : f32
    %381 = vector.broadcast %cst_148 : f32 to vector<5x128xf32>
    %382 = arith.subf %381, %380 : vector<5x128xf32>
    %cst_149 = arith.constant 0.000000e+00 : f32
    %383 = vector.broadcast %cst_149 : f32 to vector<5x128xf32>
    %384 = arith.cmpf oge, %355, %383 : vector<5x128xf32>
    %cst_150 = arith.constant 0.000000e+00 : f32
    %385 = vector.broadcast %cst_150 : f32 to vector<5x128xf32>
    %386 = arith.subf %385, %382 : vector<5x128xf32>
    %387 = arith.select %384, %382, %386 : vector<5x128xi1>, vector<5x128xf32>
    %cst_151 = arith.constant 1.000000e+00 : f32
    %388 = vector.broadcast %cst_151 : f32 to vector<5x128xf32>
    %389 = arith.addf %388, %387 : vector<5x128xf32>
    %390 = arith.mulf %353, %389 : vector<5x128xf32>
    %391 = arith.truncf %390 : vector<5x128xf32> to vector<5x128xbf16>
    %cst_152 = arith.constant dense<0.000000e+00> : vector<5x32xf32>
    %392 = tpu.matmul %391, %235, %cst_152 {dimension_numbers = #tpu.dot_dimension_numbers<[1], [0], [0], [1], [0, 0, 1, 1], [], []>} : vector<5x128xbf16>, vector<128x32xbf16>, vector<5x32xf32> -> vector<5x32xf32>
    %393 = vector.broadcast %237 : vector<1x32xf32> to vector<5x32xf32>
    %394 = arith.addf %392, %393 : vector<5x32xf32>
    %395 = arith.addf %325, %394 : vector<5x32xf32>
    %396 = vector.extract_strided_slice %395 {offsets = [1, 0], sizes = [4, 32], strides = [1, 1]} : vector<5x32xf32> to vector<4x32xf32>
    %c0_153 = arith.constant 0 : index
    %c0_154 = arith.constant 0 : index
    %397 = vector.load %arg20[%c0_153, %c0_154] : memref<1x32xf32, #tpu.memory_space<vmem>>, vector<1x32xf32>
    %c0_155 = arith.constant 0 : index
    %c0_156 = arith.constant 0 : index
    %398 = vector.load %arg21[%c0_155, %c0_156] : memref<1x32xf32, #tpu.memory_space<vmem>>, vector<1x32xf32>
    %cst_157 = arith.constant dense<0.000000e+00> : vector<4xf32>
    %399 = vector.multi_reduction <add>, %396, %cst_157 [1] : vector<4x32xf32> to vector<4xf32>
    %400 = vector.shape_cast %399 : vector<4xf32> to vector<4x1xf32>
    %cst_158 = arith.constant 3.200000e+01 : f32
    %401 = vector.broadcast %cst_158 : f32 to vector<4x1xf32>
    %402 = arith.divf %400, %401 : vector<4x1xf32>
    %403 = vector.broadcast %402 : vector<4x1xf32> to vector<4x32xf32>
    %404 = arith.subf %396, %403 : vector<4x32xf32>
    %405 = arith.mulf %404, %404 : vector<4x32xf32>
    %cst_159 = arith.constant dense<0.000000e+00> : vector<4xf32>
    %406 = vector.multi_reduction <add>, %405, %cst_159 [1] : vector<4x32xf32> to vector<4xf32>
    %407 = vector.shape_cast %406 : vector<4xf32> to vector<4x1xf32>
    %cst_160 = arith.constant 3.200000e+01 : f32
    %408 = vector.broadcast %cst_160 : f32 to vector<4x1xf32>
    %409 = arith.divf %407, %408 : vector<4x1xf32>
    %410 = vector.broadcast %402 : vector<4x1xf32> to vector<4x32xf32>
    %411 = arith.subf %396, %410 : vector<4x32xf32>
    %cst_161 = arith.constant 9.99999997E-7 : f32
    %412 = vector.broadcast %cst_161 : f32 to vector<4x1xf32>
    %413 = arith.addf %409, %412 : vector<4x1xf32>
    %414 = math.rsqrt %413 : vector<4x1xf32>
    %415 = vector.broadcast %414 : vector<4x1xf32> to vector<4x32xf32>
    %416 = arith.mulf %411, %415 : vector<4x32xf32>
    %417 = vector.broadcast %397 : vector<1x32xf32> to vector<4x32xf32>
    %418 = arith.mulf %416, %417 : vector<4x32xf32>
    %419 = vector.broadcast %398 : vector<1x32xf32> to vector<4x32xf32>
    %420 = arith.addf %418, %419 : vector<4x32xf32>
    %421 = arith.truncf %420 : vector<4x32xf32> to vector<4x32xbf16>
    %c0_162 = arith.constant 0 : index
    %c0_163 = arith.constant 0 : index
    %422 = vector.load %arg22[%c0_162, %c0_163] : memref<32x32xbf16, #tpu.memory_space<vmem>>, vector<32x32xbf16>
    %cst_164 = arith.constant dense<0.000000e+00> : vector<4x32xf32>
    %423 = tpu.matmul %421, %422, %cst_164 {dimension_numbers = #tpu.dot_dimension_numbers<[1], [0], [0], [1], [0, 0, 1, 1], [], []>} : vector<4x32xbf16>, vector<32x32xbf16>, vector<4x32xf32> -> vector<4x32xf32>
    %c0_165 = arith.constant 0 : index
    %c0_166 = arith.constant 0 : index
    %c0_167 = arith.constant 0 : index
    %424 = vector.load %arg3[%c0_165, %c0_166, %c0_167] : memref<1x4x32xf32, #tpu.memory_space<vmem>>, vector<1x4x32xf32>
    %425 = vector.shape_cast %424 : vector<1x4x32xf32> to vector<4x32xf32>
    %426 = arith.addf %423, %425 : vector<4x32xf32>
    %c0_168 = arith.constant 0 : index
    %c0_169 = arith.constant 0 : index
    %427 = vector.load %arg23[%c0_168, %c0_169] : memref<1x32xf32, #tpu.memory_space<vmem>>, vector<1x32xf32>
    %c0_170 = arith.constant 0 : index
    %c0_171 = arith.constant 0 : index
    %c0_172 = arith.constant 0 : index
    %428 = vector.load %arg4[%c0_170, %c0_171, %c0_172] : memref<1x4x32xf32, #tpu.memory_space<vmem>>, vector<1x4x32xf32>
    %429 = vector.shape_cast %428 : vector<1x4x32xf32> to vector<4x32xf32>
    %430 = vector.broadcast %427 : vector<1x32xf32> to vector<4x32xf32>
    %431 = arith.addf %430, %429 : vector<4x32xf32>
    %432 = tpu.concatenate %426, %431 in 0 : vector<4x32xf32>, vector<4x32xf32> -> vector<8x32xf32>
    %c0_173 = arith.constant 0 : index
    %c0_174 = arith.constant 0 : index
    %c0_175 = arith.constant 0 : index
    %433 = vector.load %arg24[%c0_173, %c0_174, %c0_175] : memref<2x1x32xf32, #tpu.memory_space<vmem>>, vector<1x1x32xf32>
    %434 = vector.shape_cast %433 : vector<1x1x32xf32> to vector<1x32xf32>
    %c0_176 = arith.constant 0 : index
    %c0_177 = arith.constant 0 : index
    %c0_178 = arith.constant 0 : index
    %435 = vector.load %arg25[%c0_176, %c0_177, %c0_178] : memref<2x1x32xf32, #tpu.memory_space<vmem>>, vector<1x1x32xf32>
    %436 = vector.shape_cast %435 : vector<1x1x32xf32> to vector<1x32xf32>
    %c0_179 = arith.constant 0 : index
    %c0_180 = arith.constant 0 : index
    %c0_181 = arith.constant 0 : index
    %437 = vector.load %arg26[%c0_179, %c0_180, %c0_181] : memref<2x32x96xbf16, #tpu.memory_space<vmem>>, vector<1x32x96xbf16>
    %438 = vector.shape_cast %437 : vector<1x32x96xbf16> to vector<32x96xbf16>
    %c0_182 = arith.constant 0 : index
    %c0_183 = arith.constant 0 : index
    %c0_184 = arith.constant 0 : index
    %439 = vector.load %arg27[%c0_182, %c0_183, %c0_184] : memref<2x1x96xf32, #tpu.memory_space<vmem>>, vector<1x1x96xf32>
    %440 = vector.shape_cast %439 : vector<1x1x96xf32> to vector<1x96xf32>
    %c0_185 = arith.constant 0 : index
    %c0_186 = arith.constant 0 : index
    %c0_187 = arith.constant 0 : index
    %441 = vector.load %arg28[%c0_185, %c0_186, %c0_187] : memref<2x32x32xbf16, #tpu.memory_space<vmem>>, vector<1x32x32xbf16>
    %442 = vector.shape_cast %441 : vector<1x32x32xbf16> to vector<32x32xbf16>
    %c0_188 = arith.constant 0 : index
    %c0_189 = arith.constant 0 : index
    %c0_190 = arith.constant 0 : index
    %443 = vector.load %arg29[%c0_188, %c0_189, %c0_190] : memref<2x1x32xf32, #tpu.memory_space<vmem>>, vector<1x1x32xf32>
    %444 = vector.shape_cast %443 : vector<1x1x32xf32> to vector<1x32xf32>
    %c0_191 = arith.constant 0 : index
    %c0_192 = arith.constant 0 : index
    %c0_193 = arith.constant 0 : index
    %445 = vector.load %arg30[%c0_191, %c0_192, %c0_193] : memref<2x1x32xf32, #tpu.memory_space<vmem>>, vector<1x1x32xf32>
    %446 = vector.shape_cast %445 : vector<1x1x32xf32> to vector<1x32xf32>
    %c0_194 = arith.constant 0 : index
    %c0_195 = arith.constant 0 : index
    %c0_196 = arith.constant 0 : index
    %447 = vector.load %arg31[%c0_194, %c0_195, %c0_196] : memref<2x1x32xf32, #tpu.memory_space<vmem>>, vector<1x1x32xf32>
    %448 = vector.shape_cast %447 : vector<1x1x32xf32> to vector<1x32xf32>
    %c0_197 = arith.constant 0 : index
    %c0_198 = arith.constant 0 : index
    %c0_199 = arith.constant 0 : index
    %449 = vector.load %arg32[%c0_197, %c0_198, %c0_199] : memref<2x32x128xbf16, #tpu.memory_space<vmem>>, vector<1x32x128xbf16>
    %450 = vector.shape_cast %449 : vector<1x32x128xbf16> to vector<32x128xbf16>
    %c0_200 = arith.constant 0 : index
    %c0_201 = arith.constant 0 : index
    %c0_202 = arith.constant 0 : index
    %451 = vector.load %arg33[%c0_200, %c0_201, %c0_202] : memref<2x1x128xf32, #tpu.memory_space<vmem>>, vector<1x1x128xf32>
    %452 = vector.shape_cast %451 : vector<1x1x128xf32> to vector<1x128xf32>
    %c0_203 = arith.constant 0 : index
    %c0_204 = arith.constant 0 : index
    %c0_205 = arith.constant 0 : index
    %453 = vector.load %arg34[%c0_203, %c0_204, %c0_205] : memref<2x128x32xbf16, #tpu.memory_space<vmem>>, vector<1x128x32xbf16>
    %454 = vector.shape_cast %453 : vector<1x128x32xbf16> to vector<128x32xbf16>
    %c0_206 = arith.constant 0 : index
    %c0_207 = arith.constant 0 : index
    %c0_208 = arith.constant 0 : index
    %455 = vector.load %arg35[%c0_206, %c0_207, %c0_208] : memref<2x1x32xf32, #tpu.memory_space<vmem>>, vector<1x1x32xf32>
    %456 = vector.shape_cast %455 : vector<1x1x32xf32> to vector<1x32xf32>
    %cst_209 = arith.constant dense<0.000000e+00> : vector<8xf32>
    %457 = vector.multi_reduction <add>, %432, %cst_209 [1] : vector<8x32xf32> to vector<8xf32>
    %458 = vector.shape_cast %457 : vector<8xf32> to vector<8x1xf32>
    %cst_210 = arith.constant 3.200000e+01 : f32
    %459 = vector.broadcast %cst_210 : f32 to vector<8x1xf32>
    %460 = arith.divf %458, %459 : vector<8x1xf32>
    %461 = vector.broadcast %460 : vector<8x1xf32> to vector<8x32xf32>
    %462 = arith.subf %432, %461 : vector<8x32xf32>
    %463 = arith.mulf %462, %462 : vector<8x32xf32>
    %cst_211 = arith.constant dense<0.000000e+00> : vector<8xf32>
    %464 = vector.multi_reduction <add>, %463, %cst_211 [1] : vector<8x32xf32> to vector<8xf32>
    %465 = vector.shape_cast %464 : vector<8xf32> to vector<8x1xf32>
    %cst_212 = arith.constant 3.200000e+01 : f32
    %466 = vector.broadcast %cst_212 : f32 to vector<8x1xf32>
    %467 = arith.divf %465, %466 : vector<8x1xf32>
    %468 = vector.broadcast %460 : vector<8x1xf32> to vector<8x32xf32>
    %469 = arith.subf %432, %468 : vector<8x32xf32>
    %cst_213 = arith.constant 9.99999974E-6 : f32
    %470 = vector.broadcast %cst_213 : f32 to vector<8x1xf32>
    %471 = arith.addf %467, %470 : vector<8x1xf32>
    %472 = math.rsqrt %471 : vector<8x1xf32>
    %473 = vector.broadcast %472 : vector<8x1xf32> to vector<8x32xf32>
    %474 = arith.mulf %469, %473 : vector<8x32xf32>
    %475 = vector.broadcast %434 : vector<1x32xf32> to vector<8x32xf32>
    %476 = arith.mulf %474, %475 : vector<8x32xf32>
    %477 = vector.broadcast %436 : vector<1x32xf32> to vector<8x32xf32>
    %478 = arith.addf %476, %477 : vector<8x32xf32>
    %479 = arith.truncf %478 : vector<8x32xf32> to vector<8x32xbf16>
    %cst_214 = arith.constant dense<0.000000e+00> : vector<8x96xf32>
    %480 = tpu.matmul %479, %438, %cst_214 {dimension_numbers = #tpu.dot_dimension_numbers<[1], [0], [0], [1], [0, 0, 1, 1], [], []>} : vector<8x32xbf16>, vector<32x96xbf16>, vector<8x96xf32> -> vector<8x96xf32>
    %481 = vector.broadcast %440 : vector<1x96xf32> to vector<8x96xf32>
    %482 = arith.addf %480, %481 : vector<8x96xf32>
    %483 = vector.extract_strided_slice %482 {offsets = [0, 0], sizes = [8, 32], strides = [1, 1]} : vector<8x96xf32> to vector<8x32xf32>
    %484 = vector.extract_strided_slice %483 {offsets = [0, 0], sizes = [8, 8], strides = [1, 1]} : vector<8x32xf32> to vector<8x8xf32>
    %485 = vector.shape_cast %484 : vector<8x8xf32> to vector<1x8x8xf32>
    %486 = vector.extract_strided_slice %483 {offsets = [0, 8], sizes = [8, 8], strides = [1, 1]} : vector<8x32xf32> to vector<8x8xf32>
    %487 = vector.shape_cast %486 : vector<8x8xf32> to vector<1x8x8xf32>
    %488 = vector.extract_strided_slice %483 {offsets = [0, 16], sizes = [8, 8], strides = [1, 1]} : vector<8x32xf32> to vector<8x8xf32>
    %489 = vector.shape_cast %488 : vector<8x8xf32> to vector<1x8x8xf32>
    %490 = vector.extract_strided_slice %483 {offsets = [0, 24], sizes = [8, 8], strides = [1, 1]} : vector<8x32xf32> to vector<8x8xf32>
    %491 = vector.shape_cast %490 : vector<8x8xf32> to vector<1x8x8xf32>
    %492 = tpu.concatenate %485, %487, %489, %491 in 0 : vector<1x8x8xf32>, vector<1x8x8xf32>, vector<1x8x8xf32>, vector<1x8x8xf32> -> vector<4x8x8xf32>
    %cst_215 = arith.constant 0.353553385 : f32
    %493 = vector.broadcast %cst_215 : f32 to vector<4x8x8xf32>
    %494 = arith.mulf %492, %493 : vector<4x8x8xf32>
    %495 = vector.extract_strided_slice %482 {offsets = [0, 32], sizes = [8, 32], strides = [1, 1]} : vector<8x96xf32> to vector<8x32xf32>
    %496 = vector.extract_strided_slice %495 {offsets = [0, 0], sizes = [8, 8], strides = [1, 1]} : vector<8x32xf32> to vector<8x8xf32>
    %497 = vector.shape_cast %496 : vector<8x8xf32> to vector<1x8x8xf32>
    %498 = vector.extract_strided_slice %495 {offsets = [0, 8], sizes = [8, 8], strides = [1, 1]} : vector<8x32xf32> to vector<8x8xf32>
    %499 = vector.shape_cast %498 : vector<8x8xf32> to vector<1x8x8xf32>
    %500 = vector.extract_strided_slice %495 {offsets = [0, 16], sizes = [8, 8], strides = [1, 1]} : vector<8x32xf32> to vector<8x8xf32>
    %501 = vector.shape_cast %500 : vector<8x8xf32> to vector<1x8x8xf32>
    %502 = vector.extract_strided_slice %495 {offsets = [0, 24], sizes = [8, 8], strides = [1, 1]} : vector<8x32xf32> to vector<8x8xf32>
    %503 = vector.shape_cast %502 : vector<8x8xf32> to vector<1x8x8xf32>
    %504 = tpu.concatenate %497, %499, %501, %503 in 0 : vector<1x8x8xf32>, vector<1x8x8xf32>, vector<1x8x8xf32>, vector<1x8x8xf32> -> vector<4x8x8xf32>
    %505 = vector.extract_strided_slice %482 {offsets = [0, 64], sizes = [8, 32], strides = [1, 1]} : vector<8x96xf32> to vector<8x32xf32>
    %506 = vector.extract_strided_slice %505 {offsets = [0, 0], sizes = [8, 8], strides = [1, 1]} : vector<8x32xf32> to vector<8x8xf32>
    %507 = vector.shape_cast %506 : vector<8x8xf32> to vector<1x8x8xf32>
    %508 = vector.extract_strided_slice %505 {offsets = [0, 8], sizes = [8, 8], strides = [1, 1]} : vector<8x32xf32> to vector<8x8xf32>
    %509 = vector.shape_cast %508 : vector<8x8xf32> to vector<1x8x8xf32>
    %510 = vector.extract_strided_slice %505 {offsets = [0, 16], sizes = [8, 8], strides = [1, 1]} : vector<8x32xf32> to vector<8x8xf32>
    %511 = vector.shape_cast %510 : vector<8x8xf32> to vector<1x8x8xf32>
    %512 = vector.extract_strided_slice %505 {offsets = [0, 24], sizes = [8, 8], strides = [1, 1]} : vector<8x32xf32> to vector<8x8xf32>
    %513 = vector.shape_cast %512 : vector<8x8xf32> to vector<1x8x8xf32>
    %514 = tpu.concatenate %507, %509, %511, %513 in 0 : vector<1x8x8xf32>, vector<1x8x8xf32>, vector<1x8x8xf32>, vector<1x8x8xf32> -> vector<4x8x8xf32>
    %515 = arith.truncf %494 : vector<4x8x8xf32> to vector<4x8x8xbf16>
    %516 = arith.truncf %504 : vector<4x8x8xf32> to vector<4x8x8xbf16>
    "tpu.trace_start"() <{level = 10 : i32, message = "hqd,hkd->hqk"}> : () -> ()
    %cst_216 = arith.constant dense<0.000000e+00> : vector<4x8x8xf32>
    %517 = tpu.matmul %515, %516, %cst_216 {dimension_numbers = #tpu.dot_dimension_numbers<[2], [2], [1], [1], [0, 0, 0, 1, 1, 1], [0], [0]>} : vector<4x8x8xbf16>, vector<4x8x8xbf16>, vector<4x8x8xf32> -> vector<4x8x8xf32>
    "tpu.trace_stop"() : () -> ()
    %cst_217 = arith.constant dense<0xFF800000> : vector<4x8xf32>
    %518 = vector.multi_reduction <maximumf>, %517, %cst_217 [2] : vector<4x8x8xf32> to vector<4x8xf32>
    %519 = vector.shape_cast %518 : vector<4x8xf32> to vector<4x8x1xf32>
    %520 = vector.broadcast %519 : vector<4x8x1xf32> to vector<4x8x8xf32>
    %521 = arith.subf %517, %520 : vector<4x8x8xf32>
    %522 = math.exp %521 : vector<4x8x8xf32>
    %cst_218 = arith.constant dense<0.000000e+00> : vector<4x8xf32>
    %523 = vector.multi_reduction <add>, %522, %cst_218 [2] : vector<4x8x8xf32> to vector<4x8xf32>
    %524 = vector.shape_cast %523 : vector<4x8xf32> to vector<4x8x1xf32>
    %525 = tpu.reciprocal %524 {approx = true} : vector<4x8x1xf32> -> vector<4x8x1xf32>
    %526 = arith.truncf %522 : vector<4x8x8xf32> to vector<4x8x8xbf16>
    %527 = arith.truncf %514 : vector<4x8x8xf32> to vector<4x8x8xbf16>
    "tpu.trace_start"() <{level = 10 : i32, message = "hqk,hkd->hqd"}> : () -> ()
    %cst_219 = arith.constant dense<0.000000e+00> : vector<4x8x8xf32>
    %528 = tpu.matmul %526, %527, %cst_219 {dimension_numbers = #tpu.dot_dimension_numbers<[2], [1], [1], [2], [0, 0, 0, 1, 1, 2], [0], [0]>} : vector<4x8x8xbf16>, vector<4x8x8xbf16>, vector<4x8x8xf32> -> vector<4x8x8xf32>
    "tpu.trace_stop"() : () -> ()
    %529 = vector.broadcast %525 : vector<4x8x1xf32> to vector<4x8x8xf32>
    %530 = arith.mulf %528, %529 : vector<4x8x8xf32>
    %531 = vector.extract_strided_slice %530 {offsets = [0, 0, 0], sizes = [1, 8, 8], strides = [1, 1, 1]} : vector<4x8x8xf32> to vector<1x8x8xf32>
    %532 = vector.shape_cast %531 : vector<1x8x8xf32> to vector<8x8xf32>
    %533 = vector.extract_strided_slice %530 {offsets = [1, 0, 0], sizes = [1, 8, 8], strides = [1, 1, 1]} : vector<4x8x8xf32> to vector<1x8x8xf32>
    %534 = vector.shape_cast %533 : vector<1x8x8xf32> to vector<8x8xf32>
    %535 = vector.extract_strided_slice %530 {offsets = [2, 0, 0], sizes = [1, 8, 8], strides = [1, 1, 1]} : vector<4x8x8xf32> to vector<1x8x8xf32>
    %536 = vector.shape_cast %535 : vector<1x8x8xf32> to vector<8x8xf32>
    %537 = vector.extract_strided_slice %530 {offsets = [3, 0, 0], sizes = [1, 8, 8], strides = [1, 1, 1]} : vector<4x8x8xf32> to vector<1x8x8xf32>
    %538 = vector.shape_cast %537 : vector<1x8x8xf32> to vector<8x8xf32>
    %539 = tpu.concatenate %532, %534, %536, %538 in 1 : vector<8x8xf32>, vector<8x8xf32>, vector<8x8xf32>, vector<8x8xf32> -> vector<8x32xf32>
    %540 = arith.truncf %539 : vector<8x32xf32> to vector<8x32xbf16>
    %cst_220 = arith.constant dense<0.000000e+00> : vector<8x32xf32>
    %541 = tpu.matmul %540, %442, %cst_220 {dimension_numbers = #tpu.dot_dimension_numbers<[1], [0], [0], [1], [0, 0, 1, 1], [], []>} : vector<8x32xbf16>, vector<32x32xbf16>, vector<8x32xf32> -> vector<8x32xf32>
    %542 = arith.addf %432, %541 : vector<8x32xf32>
    %543 = vector.broadcast %444 : vector<1x32xf32> to vector<8x32xf32>
    %544 = arith.addf %542, %543 : vector<8x32xf32>
    %cst_221 = arith.constant dense<0.000000e+00> : vector<8xf32>
    %545 = vector.multi_reduction <add>, %544, %cst_221 [1] : vector<8x32xf32> to vector<8xf32>
    %546 = vector.shape_cast %545 : vector<8xf32> to vector<8x1xf32>
    %cst_222 = arith.constant 3.200000e+01 : f32
    %547 = vector.broadcast %cst_222 : f32 to vector<8x1xf32>
    %548 = arith.divf %546, %547 : vector<8x1xf32>
    %549 = vector.broadcast %548 : vector<8x1xf32> to vector<8x32xf32>
    %550 = arith.subf %544, %549 : vector<8x32xf32>
    %551 = arith.mulf %550, %550 : vector<8x32xf32>
    %cst_223 = arith.constant dense<0.000000e+00> : vector<8xf32>
    %552 = vector.multi_reduction <add>, %551, %cst_223 [1] : vector<8x32xf32> to vector<8xf32>
    %553 = vector.shape_cast %552 : vector<8xf32> to vector<8x1xf32>
    %cst_224 = arith.constant 3.200000e+01 : f32
    %554 = vector.broadcast %cst_224 : f32 to vector<8x1xf32>
    %555 = arith.divf %553, %554 : vector<8x1xf32>
    %556 = vector.broadcast %548 : vector<8x1xf32> to vector<8x32xf32>
    %557 = arith.subf %544, %556 : vector<8x32xf32>
    %cst_225 = arith.constant 9.99999974E-6 : f32
    %558 = vector.broadcast %cst_225 : f32 to vector<8x1xf32>
    %559 = arith.addf %555, %558 : vector<8x1xf32>
    %560 = math.rsqrt %559 : vector<8x1xf32>
    %561 = vector.broadcast %560 : vector<8x1xf32> to vector<8x32xf32>
    %562 = arith.mulf %557, %561 : vector<8x32xf32>
    %563 = vector.broadcast %446 : vector<1x32xf32> to vector<8x32xf32>
    %564 = arith.mulf %562, %563 : vector<8x32xf32>
    %565 = vector.broadcast %448 : vector<1x32xf32> to vector<8x32xf32>
    %566 = arith.addf %564, %565 : vector<8x32xf32>
    %567 = arith.truncf %566 : vector<8x32xf32> to vector<8x32xbf16>
    %cst_226 = arith.constant dense<0.000000e+00> : vector<8x128xf32>
    %568 = tpu.matmul %567, %450, %cst_226 {dimension_numbers = #tpu.dot_dimension_numbers<[1], [0], [0], [1], [0, 0, 1, 1], [], []>} : vector<8x32xbf16>, vector<32x128xbf16>, vector<8x128xf32> -> vector<8x128xf32>
    %569 = vector.broadcast %452 : vector<1x128xf32> to vector<8x128xf32>
    %570 = arith.addf %568, %569 : vector<8x128xf32>
    %cst_227 = arith.constant 5.000000e-01 : f32
    %571 = vector.broadcast %cst_227 : f32 to vector<8x128xf32>
    %572 = arith.mulf %571, %570 : vector<8x128xf32>
    %cst_228 = arith.constant 0.707106769 : f32
    %573 = vector.broadcast %cst_228 : f32 to vector<8x128xf32>
    %574 = arith.mulf %570, %573 : vector<8x128xf32>
    %575 = math.absf %574 : vector<8x128xf32>
    %cst_229 = arith.constant 0.327591091 : f32
    %576 = vector.broadcast %cst_229 : f32 to vector<8x128xf32>
    %577 = arith.mulf %576, %575 : vector<8x128xf32>
    %cst_230 = arith.constant 1.000000e+00 : f32
    %578 = vector.broadcast %cst_230 : f32 to vector<8x128xf32>
    %579 = arith.addf %578, %577 : vector<8x128xf32>
    %580 = tpu.reciprocal %579 {approx = true} : vector<8x128xf32> -> vector<8x128xf32>
    %cst_231 = arith.constant 1.06140542 : f32
    %581 = vector.broadcast %cst_231 : f32 to vector<8x128xf32>
    %582 = arith.mulf %581, %580 : vector<8x128xf32>
    %cst_232 = arith.constant -1.45315206 : f32
    %583 = vector.broadcast %cst_232 : f32 to vector<8x128xf32>
    %584 = arith.addf %582, %583 : vector<8x128xf32>
    %585 = arith.mulf %584, %580 : vector<8x128xf32>
    %cst_233 = arith.constant 1.42141378 : f32
    %586 = vector.broadcast %cst_233 : f32 to vector<8x128xf32>
    %587 = arith.addf %585, %586 : vector<8x128xf32>
    %588 = arith.mulf %587, %580 : vector<8x128xf32>
    %cst_234 = arith.constant -0.284496725 : f32
    %589 = vector.broadcast %cst_234 : f32 to vector<8x128xf32>
    %590 = arith.addf %588, %589 : vector<8x128xf32>
    %591 = arith.mulf %590, %580 : vector<8x128xf32>
    %cst_235 = arith.constant 0.254829586 : f32
    %592 = vector.broadcast %cst_235 : f32 to vector<8x128xf32>
    %593 = arith.addf %591, %592 : vector<8x128xf32>
    %594 = arith.mulf %593, %580 : vector<8x128xf32>
    %cst_236 = arith.constant 0.000000e+00 : f32
    %595 = vector.broadcast %cst_236 : f32 to vector<8x128xf32>
    %596 = arith.subf %595, %575 : vector<8x128xf32>
    %597 = arith.mulf %596, %575 : vector<8x128xf32>
    %598 = math.exp %597 : vector<8x128xf32>
    %599 = arith.mulf %594, %598 : vector<8x128xf32>
    %cst_237 = arith.constant 1.000000e+00 : f32
    %600 = vector.broadcast %cst_237 : f32 to vector<8x128xf32>
    %601 = arith.subf %600, %599 : vector<8x128xf32>
    %cst_238 = arith.constant 0.000000e+00 : f32
    %602 = vector.broadcast %cst_238 : f32 to vector<8x128xf32>
    %603 = arith.cmpf oge, %574, %602 : vector<8x128xf32>
    %cst_239 = arith.constant 0.000000e+00 : f32
    %604 = vector.broadcast %cst_239 : f32 to vector<8x128xf32>
    %605 = arith.subf %604, %601 : vector<8x128xf32>
    %606 = arith.select %603, %601, %605 : vector<8x128xi1>, vector<8x128xf32>
    %cst_240 = arith.constant 1.000000e+00 : f32
    %607 = vector.broadcast %cst_240 : f32 to vector<8x128xf32>
    %608 = arith.addf %607, %606 : vector<8x128xf32>
    %609 = arith.mulf %572, %608 : vector<8x128xf32>
    %610 = arith.truncf %609 : vector<8x128xf32> to vector<8x128xbf16>
    %cst_241 = arith.constant dense<0.000000e+00> : vector<8x32xf32>
    %611 = tpu.matmul %610, %454, %cst_241 {dimension_numbers = #tpu.dot_dimension_numbers<[1], [0], [0], [1], [0, 0, 1, 1], [], []>} : vector<8x128xbf16>, vector<128x32xbf16>, vector<8x32xf32> -> vector<8x32xf32>
    %612 = vector.broadcast %456 : vector<1x32xf32> to vector<8x32xf32>
    %613 = arith.addf %611, %612 : vector<8x32xf32>
    %614 = arith.addf %544, %613 : vector<8x32xf32>
    %c1_242 = arith.constant 1 : index
    %c0_243 = arith.constant 0 : index
    %c0_244 = arith.constant 0 : index
    %615 = vector.load %arg24[%c1_242, %c0_243, %c0_244] : memref<2x1x32xf32, #tpu.memory_space<vmem>>, vector<1x1x32xf32>
    %616 = vector.shape_cast %615 : vector<1x1x32xf32> to vector<1x32xf32>
    %c1_245 = arith.constant 1 : index
    %c0_246 = arith.constant 0 : index
    %c0_247 = arith.constant 0 : index
    %617 = vector.load %arg25[%c1_245, %c0_246, %c0_247] : memref<2x1x32xf32, #tpu.memory_space<vmem>>, vector<1x1x32xf32>
    %618 = vector.shape_cast %617 : vector<1x1x32xf32> to vector<1x32xf32>
    %c1_248 = arith.constant 1 : index
    %c0_249 = arith.constant 0 : index
    %c0_250 = arith.constant 0 : index
    %619 = vector.load %arg26[%c1_248, %c0_249, %c0_250] : memref<2x32x96xbf16, #tpu.memory_space<vmem>>, vector<1x32x96xbf16>
    %620 = vector.shape_cast %619 : vector<1x32x96xbf16> to vector<32x96xbf16>
    %c1_251 = arith.constant 1 : index
    %c0_252 = arith.constant 0 : index
    %c0_253 = arith.constant 0 : index
    %621 = vector.load %arg27[%c1_251, %c0_252, %c0_253] : memref<2x1x96xf32, #tpu.memory_space<vmem>>, vector<1x1x96xf32>
    %622 = vector.shape_cast %621 : vector<1x1x96xf32> to vector<1x96xf32>
    %c1_254 = arith.constant 1 : index
    %c0_255 = arith.constant 0 : index
    %c0_256 = arith.constant 0 : index
    %623 = vector.load %arg28[%c1_254, %c0_255, %c0_256] : memref<2x32x32xbf16, #tpu.memory_space<vmem>>, vector<1x32x32xbf16>
    %624 = vector.shape_cast %623 : vector<1x32x32xbf16> to vector<32x32xbf16>
    %c1_257 = arith.constant 1 : index
    %c0_258 = arith.constant 0 : index
    %c0_259 = arith.constant 0 : index
    %625 = vector.load %arg29[%c1_257, %c0_258, %c0_259] : memref<2x1x32xf32, #tpu.memory_space<vmem>>, vector<1x1x32xf32>
    %626 = vector.shape_cast %625 : vector<1x1x32xf32> to vector<1x32xf32>
    %c1_260 = arith.constant 1 : index
    %c0_261 = arith.constant 0 : index
    %c0_262 = arith.constant 0 : index
    %627 = vector.load %arg30[%c1_260, %c0_261, %c0_262] : memref<2x1x32xf32, #tpu.memory_space<vmem>>, vector<1x1x32xf32>
    %628 = vector.shape_cast %627 : vector<1x1x32xf32> to vector<1x32xf32>
    %c1_263 = arith.constant 1 : index
    %c0_264 = arith.constant 0 : index
    %c0_265 = arith.constant 0 : index
    %629 = vector.load %arg31[%c1_263, %c0_264, %c0_265] : memref<2x1x32xf32, #tpu.memory_space<vmem>>, vector<1x1x32xf32>
    %630 = vector.shape_cast %629 : vector<1x1x32xf32> to vector<1x32xf32>
    %c1_266 = arith.constant 1 : index
    %c0_267 = arith.constant 0 : index
    %c0_268 = arith.constant 0 : index
    %631 = vector.load %arg32[%c1_266, %c0_267, %c0_268] : memref<2x32x128xbf16, #tpu.memory_space<vmem>>, vector<1x32x128xbf16>
    %632 = vector.shape_cast %631 : vector<1x32x128xbf16> to vector<32x128xbf16>
    %c1_269 = arith.constant 1 : index
    %c0_270 = arith.constant 0 : index
    %c0_271 = arith.constant 0 : index
    %633 = vector.load %arg33[%c1_269, %c0_270, %c0_271] : memref<2x1x128xf32, #tpu.memory_space<vmem>>, vector<1x1x128xf32>
    %634 = vector.shape_cast %633 : vector<1x1x128xf32> to vector<1x128xf32>
    %c1_272 = arith.constant 1 : index
    %c0_273 = arith.constant 0 : index
    %c0_274 = arith.constant 0 : index
    %635 = vector.load %arg34[%c1_272, %c0_273, %c0_274] : memref<2x128x32xbf16, #tpu.memory_space<vmem>>, vector<1x128x32xbf16>
    %636 = vector.shape_cast %635 : vector<1x128x32xbf16> to vector<128x32xbf16>
    %c1_275 = arith.constant 1 : index
    %c0_276 = arith.constant 0 : index
    %c0_277 = arith.constant 0 : index
    %637 = vector.load %arg35[%c1_275, %c0_276, %c0_277] : memref<2x1x32xf32, #tpu.memory_space<vmem>>, vector<1x1x32xf32>
    %638 = vector.shape_cast %637 : vector<1x1x32xf32> to vector<1x32xf32>
    %cst_278 = arith.constant dense<0.000000e+00> : vector<8xf32>
    %639 = vector.multi_reduction <add>, %614, %cst_278 [1] : vector<8x32xf32> to vector<8xf32>
    %640 = vector.shape_cast %639 : vector<8xf32> to vector<8x1xf32>
    %cst_279 = arith.constant 3.200000e+01 : f32
    %641 = vector.broadcast %cst_279 : f32 to vector<8x1xf32>
    %642 = arith.divf %640, %641 : vector<8x1xf32>
    %643 = vector.broadcast %642 : vector<8x1xf32> to vector<8x32xf32>
    %644 = arith.subf %614, %643 : vector<8x32xf32>
    %645 = arith.mulf %644, %644 : vector<8x32xf32>
    %cst_280 = arith.constant dense<0.000000e+00> : vector<8xf32>
    %646 = vector.multi_reduction <add>, %645, %cst_280 [1] : vector<8x32xf32> to vector<8xf32>
    %647 = vector.shape_cast %646 : vector<8xf32> to vector<8x1xf32>
    %cst_281 = arith.constant 3.200000e+01 : f32
    %648 = vector.broadcast %cst_281 : f32 to vector<8x1xf32>
    %649 = arith.divf %647, %648 : vector<8x1xf32>
    %650 = vector.broadcast %642 : vector<8x1xf32> to vector<8x32xf32>
    %651 = arith.subf %614, %650 : vector<8x32xf32>
    %cst_282 = arith.constant 9.99999974E-6 : f32
    %652 = vector.broadcast %cst_282 : f32 to vector<8x1xf32>
    %653 = arith.addf %649, %652 : vector<8x1xf32>
    %654 = math.rsqrt %653 : vector<8x1xf32>
    %655 = vector.broadcast %654 : vector<8x1xf32> to vector<8x32xf32>
    %656 = arith.mulf %651, %655 : vector<8x32xf32>
    %657 = vector.broadcast %616 : vector<1x32xf32> to vector<8x32xf32>
    %658 = arith.mulf %656, %657 : vector<8x32xf32>
    %659 = vector.broadcast %618 : vector<1x32xf32> to vector<8x32xf32>
    %660 = arith.addf %658, %659 : vector<8x32xf32>
    %661 = arith.truncf %660 : vector<8x32xf32> to vector<8x32xbf16>
    %cst_283 = arith.constant dense<0.000000e+00> : vector<8x96xf32>
    %662 = tpu.matmul %661, %620, %cst_283 {dimension_numbers = #tpu.dot_dimension_numbers<[1], [0], [0], [1], [0, 0, 1, 1], [], []>} : vector<8x32xbf16>, vector<32x96xbf16>, vector<8x96xf32> -> vector<8x96xf32>
    %663 = vector.broadcast %622 : vector<1x96xf32> to vector<8x96xf32>
    %664 = arith.addf %662, %663 : vector<8x96xf32>
    %665 = vector.extract_strided_slice %664 {offsets = [0, 0], sizes = [8, 32], strides = [1, 1]} : vector<8x96xf32> to vector<8x32xf32>
    %666 = vector.extract_strided_slice %665 {offsets = [0, 0], sizes = [8, 8], strides = [1, 1]} : vector<8x32xf32> to vector<8x8xf32>
    %667 = vector.shape_cast %666 : vector<8x8xf32> to vector<1x8x8xf32>
    %668 = vector.extract_strided_slice %665 {offsets = [0, 8], sizes = [8, 8], strides = [1, 1]} : vector<8x32xf32> to vector<8x8xf32>
    %669 = vector.shape_cast %668 : vector<8x8xf32> to vector<1x8x8xf32>
    %670 = vector.extract_strided_slice %665 {offsets = [0, 16], sizes = [8, 8], strides = [1, 1]} : vector<8x32xf32> to vector<8x8xf32>
    %671 = vector.shape_cast %670 : vector<8x8xf32> to vector<1x8x8xf32>
    %672 = vector.extract_strided_slice %665 {offsets = [0, 24], sizes = [8, 8], strides = [1, 1]} : vector<8x32xf32> to vector<8x8xf32>
    %673 = vector.shape_cast %672 : vector<8x8xf32> to vector<1x8x8xf32>
    %674 = tpu.concatenate %667, %669, %671, %673 in 0 : vector<1x8x8xf32>, vector<1x8x8xf32>, vector<1x8x8xf32>, vector<1x8x8xf32> -> vector<4x8x8xf32>
    %cst_284 = arith.constant 0.353553385 : f32
    %675 = vector.broadcast %cst_284 : f32 to vector<4x8x8xf32>
    %676 = arith.mulf %674, %675 : vector<4x8x8xf32>
    %677 = vector.extract_strided_slice %664 {offsets = [0, 32], sizes = [8, 32], strides = [1, 1]} : vector<8x96xf32> to vector<8x32xf32>
    %678 = vector.extract_strided_slice %677 {offsets = [0, 0], sizes = [8, 8], strides = [1, 1]} : vector<8x32xf32> to vector<8x8xf32>
    %679 = vector.shape_cast %678 : vector<8x8xf32> to vector<1x8x8xf32>
    %680 = vector.extract_strided_slice %677 {offsets = [0, 8], sizes = [8, 8], strides = [1, 1]} : vector<8x32xf32> to vector<8x8xf32>
    %681 = vector.shape_cast %680 : vector<8x8xf32> to vector<1x8x8xf32>
    %682 = vector.extract_strided_slice %677 {offsets = [0, 16], sizes = [8, 8], strides = [1, 1]} : vector<8x32xf32> to vector<8x8xf32>
    %683 = vector.shape_cast %682 : vector<8x8xf32> to vector<1x8x8xf32>
    %684 = vector.extract_strided_slice %677 {offsets = [0, 24], sizes = [8, 8], strides = [1, 1]} : vector<8x32xf32> to vector<8x8xf32>
    %685 = vector.shape_cast %684 : vector<8x8xf32> to vector<1x8x8xf32>
    %686 = tpu.concatenate %679, %681, %683, %685 in 0 : vector<1x8x8xf32>, vector<1x8x8xf32>, vector<1x8x8xf32>, vector<1x8x8xf32> -> vector<4x8x8xf32>
    %687 = vector.extract_strided_slice %664 {offsets = [0, 64], sizes = [8, 32], strides = [1, 1]} : vector<8x96xf32> to vector<8x32xf32>
    %688 = vector.extract_strided_slice %687 {offsets = [0, 0], sizes = [8, 8], strides = [1, 1]} : vector<8x32xf32> to vector<8x8xf32>
    %689 = vector.shape_cast %688 : vector<8x8xf32> to vector<1x8x8xf32>
    %690 = vector.extract_strided_slice %687 {offsets = [0, 8], sizes = [8, 8], strides = [1, 1]} : vector<8x32xf32> to vector<8x8xf32>
    %691 = vector.shape_cast %690 : vector<8x8xf32> to vector<1x8x8xf32>
    %692 = vector.extract_strided_slice %687 {offsets = [0, 16], sizes = [8, 8], strides = [1, 1]} : vector<8x32xf32> to vector<8x8xf32>
    %693 = vector.shape_cast %692 : vector<8x8xf32> to vector<1x8x8xf32>
    %694 = vector.extract_strided_slice %687 {offsets = [0, 24], sizes = [8, 8], strides = [1, 1]} : vector<8x32xf32> to vector<8x8xf32>
    %695 = vector.shape_cast %694 : vector<8x8xf32> to vector<1x8x8xf32>
    %696 = tpu.concatenate %689, %691, %693, %695 in 0 : vector<1x8x8xf32>, vector<1x8x8xf32>, vector<1x8x8xf32>, vector<1x8x8xf32> -> vector<4x8x8xf32>
    %697 = arith.truncf %676 : vector<4x8x8xf32> to vector<4x8x8xbf16>
    %698 = arith.truncf %686 : vector<4x8x8xf32> to vector<4x8x8xbf16>
    "tpu.trace_start"() <{level = 10 : i32, message = "hqd,hkd->hqk"}> : () -> ()
    %cst_285 = arith.constant dense<0.000000e+00> : vector<4x8x8xf32>
    %699 = tpu.matmul %697, %698, %cst_285 {dimension_numbers = #tpu.dot_dimension_numbers<[2], [2], [1], [1], [0, 0, 0, 1, 1, 1], [0], [0]>} : vector<4x8x8xbf16>, vector<4x8x8xbf16>, vector<4x8x8xf32> -> vector<4x8x8xf32>
    "tpu.trace_stop"() : () -> ()
    %cst_286 = arith.constant dense<0xFF800000> : vector<4x8xf32>
    %700 = vector.multi_reduction <maximumf>, %699, %cst_286 [2] : vector<4x8x8xf32> to vector<4x8xf32>
    %701 = vector.shape_cast %700 : vector<4x8xf32> to vector<4x8x1xf32>
    %702 = vector.broadcast %701 : vector<4x8x1xf32> to vector<4x8x8xf32>
    %703 = arith.subf %699, %702 : vector<4x8x8xf32>
    %704 = math.exp %703 : vector<4x8x8xf32>
    %cst_287 = arith.constant dense<0.000000e+00> : vector<4x8xf32>
    %705 = vector.multi_reduction <add>, %704, %cst_287 [2] : vector<4x8x8xf32> to vector<4x8xf32>
    %706 = vector.shape_cast %705 : vector<4x8xf32> to vector<4x8x1xf32>
    %707 = tpu.reciprocal %706 {approx = true} : vector<4x8x1xf32> -> vector<4x8x1xf32>
    %708 = arith.truncf %704 : vector<4x8x8xf32> to vector<4x8x8xbf16>
    %709 = arith.truncf %696 : vector<4x8x8xf32> to vector<4x8x8xbf16>
    "tpu.trace_start"() <{level = 10 : i32, message = "hqk,hkd->hqd"}> : () -> ()
    %cst_288 = arith.constant dense<0.000000e+00> : vector<4x8x8xf32>
    %710 = tpu.matmul %708, %709, %cst_288 {dimension_numbers = #tpu.dot_dimension_numbers<[2], [1], [1], [2], [0, 0, 0, 1, 1, 2], [0], [0]>} : vector<4x8x8xbf16>, vector<4x8x8xbf16>, vector<4x8x8xf32> -> vector<4x8x8xf32>
    "tpu.trace_stop"() : () -> ()
    %711 = vector.broadcast %707 : vector<4x8x1xf32> to vector<4x8x8xf32>
    %712 = arith.mulf %710, %711 : vector<4x8x8xf32>
    %713 = vector.extract_strided_slice %712 {offsets = [0, 0, 0], sizes = [1, 8, 8], strides = [1, 1, 1]} : vector<4x8x8xf32> to vector<1x8x8xf32>
    %714 = vector.shape_cast %713 : vector<1x8x8xf32> to vector<8x8xf32>
    %715 = vector.extract_strided_slice %712 {offsets = [1, 0, 0], sizes = [1, 8, 8], strides = [1, 1, 1]} : vector<4x8x8xf32> to vector<1x8x8xf32>
    %716 = vector.shape_cast %715 : vector<1x8x8xf32> to vector<8x8xf32>
    %717 = vector.extract_strided_slice %712 {offsets = [2, 0, 0], sizes = [1, 8, 8], strides = [1, 1, 1]} : vector<4x8x8xf32> to vector<1x8x8xf32>
    %718 = vector.shape_cast %717 : vector<1x8x8xf32> to vector<8x8xf32>
    %719 = vector.extract_strided_slice %712 {offsets = [3, 0, 0], sizes = [1, 8, 8], strides = [1, 1, 1]} : vector<4x8x8xf32> to vector<1x8x8xf32>
    %720 = vector.shape_cast %719 : vector<1x8x8xf32> to vector<8x8xf32>
    %721 = tpu.concatenate %714, %716, %718, %720 in 1 : vector<8x8xf32>, vector<8x8xf32>, vector<8x8xf32>, vector<8x8xf32> -> vector<8x32xf32>
    %722 = arith.truncf %721 : vector<8x32xf32> to vector<8x32xbf16>
    %cst_289 = arith.constant dense<0.000000e+00> : vector<8x32xf32>
    %723 = tpu.matmul %722, %624, %cst_289 {dimension_numbers = #tpu.dot_dimension_numbers<[1], [0], [0], [1], [0, 0, 1, 1], [], []>} : vector<8x32xbf16>, vector<32x32xbf16>, vector<8x32xf32> -> vector<8x32xf32>
    %724 = arith.addf %614, %723 : vector<8x32xf32>
    %725 = vector.broadcast %626 : vector<1x32xf32> to vector<8x32xf32>
    %726 = arith.addf %724, %725 : vector<8x32xf32>
    %cst_290 = arith.constant dense<0.000000e+00> : vector<8xf32>
    %727 = vector.multi_reduction <add>, %726, %cst_290 [1] : vector<8x32xf32> to vector<8xf32>
    %728 = vector.shape_cast %727 : vector<8xf32> to vector<8x1xf32>
    %cst_291 = arith.constant 3.200000e+01 : f32
    %729 = vector.broadcast %cst_291 : f32 to vector<8x1xf32>
    %730 = arith.divf %728, %729 : vector<8x1xf32>
    %731 = vector.broadcast %730 : vector<8x1xf32> to vector<8x32xf32>
    %732 = arith.subf %726, %731 : vector<8x32xf32>
    %733 = arith.mulf %732, %732 : vector<8x32xf32>
    %cst_292 = arith.constant dense<0.000000e+00> : vector<8xf32>
    %734 = vector.multi_reduction <add>, %733, %cst_292 [1] : vector<8x32xf32> to vector<8xf32>
    %735 = vector.shape_cast %734 : vector<8xf32> to vector<8x1xf32>
    %cst_293 = arith.constant 3.200000e+01 : f32
    %736 = vector.broadcast %cst_293 : f32 to vector<8x1xf32>
    %737 = arith.divf %735, %736 : vector<8x1xf32>
    %738 = vector.broadcast %730 : vector<8x1xf32> to vector<8x32xf32>
    %739 = arith.subf %726, %738 : vector<8x32xf32>
    %cst_294 = arith.constant 9.99999974E-6 : f32
    %740 = vector.broadcast %cst_294 : f32 to vector<8x1xf32>
    %741 = arith.addf %737, %740 : vector<8x1xf32>
    %742 = math.rsqrt %741 : vector<8x1xf32>
    %743 = vector.broadcast %742 : vector<8x1xf32> to vector<8x32xf32>
    %744 = arith.mulf %739, %743 : vector<8x32xf32>
    %745 = vector.broadcast %628 : vector<1x32xf32> to vector<8x32xf32>
    %746 = arith.mulf %744, %745 : vector<8x32xf32>
    %747 = vector.broadcast %630 : vector<1x32xf32> to vector<8x32xf32>
    %748 = arith.addf %746, %747 : vector<8x32xf32>
    %749 = arith.truncf %748 : vector<8x32xf32> to vector<8x32xbf16>
    %cst_295 = arith.constant dense<0.000000e+00> : vector<8x128xf32>
    %750 = tpu.matmul %749, %632, %cst_295 {dimension_numbers = #tpu.dot_dimension_numbers<[1], [0], [0], [1], [0, 0, 1, 1], [], []>} : vector<8x32xbf16>, vector<32x128xbf16>, vector<8x128xf32> -> vector<8x128xf32>
    %751 = vector.broadcast %634 : vector<1x128xf32> to vector<8x128xf32>
    %752 = arith.addf %750, %751 : vector<8x128xf32>
    %cst_296 = arith.constant 5.000000e-01 : f32
    %753 = vector.broadcast %cst_296 : f32 to vector<8x128xf32>
    %754 = arith.mulf %753, %752 : vector<8x128xf32>
    %cst_297 = arith.constant 0.707106769 : f32
    %755 = vector.broadcast %cst_297 : f32 to vector<8x128xf32>
    %756 = arith.mulf %752, %755 : vector<8x128xf32>
    %757 = math.absf %756 : vector<8x128xf32>
    %cst_298 = arith.constant 0.327591091 : f32
    %758 = vector.broadcast %cst_298 : f32 to vector<8x128xf32>
    %759 = arith.mulf %758, %757 : vector<8x128xf32>
    %cst_299 = arith.constant 1.000000e+00 : f32
    %760 = vector.broadcast %cst_299 : f32 to vector<8x128xf32>
    %761 = arith.addf %760, %759 : vector<8x128xf32>
    %762 = tpu.reciprocal %761 {approx = true} : vector<8x128xf32> -> vector<8x128xf32>
    %cst_300 = arith.constant 1.06140542 : f32
    %763 = vector.broadcast %cst_300 : f32 to vector<8x128xf32>
    %764 = arith.mulf %763, %762 : vector<8x128xf32>
    %cst_301 = arith.constant -1.45315206 : f32
    %765 = vector.broadcast %cst_301 : f32 to vector<8x128xf32>
    %766 = arith.addf %764, %765 : vector<8x128xf32>
    %767 = arith.mulf %766, %762 : vector<8x128xf32>
    %cst_302 = arith.constant 1.42141378 : f32
    %768 = vector.broadcast %cst_302 : f32 to vector<8x128xf32>
    %769 = arith.addf %767, %768 : vector<8x128xf32>
    %770 = arith.mulf %769, %762 : vector<8x128xf32>
    %cst_303 = arith.constant -0.284496725 : f32
    %771 = vector.broadcast %cst_303 : f32 to vector<8x128xf32>
    %772 = arith.addf %770, %771 : vector<8x128xf32>
    %773 = arith.mulf %772, %762 : vector<8x128xf32>
    %cst_304 = arith.constant 0.254829586 : f32
    %774 = vector.broadcast %cst_304 : f32 to vector<8x128xf32>
    %775 = arith.addf %773, %774 : vector<8x128xf32>
    %776 = arith.mulf %775, %762 : vector<8x128xf32>
    %cst_305 = arith.constant 0.000000e+00 : f32
    %777 = vector.broadcast %cst_305 : f32 to vector<8x128xf32>
    %778 = arith.subf %777, %757 : vector<8x128xf32>
    %779 = arith.mulf %778, %757 : vector<8x128xf32>
    %780 = math.exp %779 : vector<8x128xf32>
    %781 = arith.mulf %776, %780 : vector<8x128xf32>
    %cst_306 = arith.constant 1.000000e+00 : f32
    %782 = vector.broadcast %cst_306 : f32 to vector<8x128xf32>
    %783 = arith.subf %782, %781 : vector<8x128xf32>
    %cst_307 = arith.constant 0.000000e+00 : f32
    %784 = vector.broadcast %cst_307 : f32 to vector<8x128xf32>
    %785 = arith.cmpf oge, %756, %784 : vector<8x128xf32>
    %cst_308 = arith.constant 0.000000e+00 : f32
    %786 = vector.broadcast %cst_308 : f32 to vector<8x128xf32>
    %787 = arith.subf %786, %783 : vector<8x128xf32>
    %788 = arith.select %785, %783, %787 : vector<8x128xi1>, vector<8x128xf32>
    %cst_309 = arith.constant 1.000000e+00 : f32
    %789 = vector.broadcast %cst_309 : f32 to vector<8x128xf32>
    %790 = arith.addf %789, %788 : vector<8x128xf32>
    %791 = arith.mulf %754, %790 : vector<8x128xf32>
    %792 = arith.truncf %791 : vector<8x128xf32> to vector<8x128xbf16>
    %cst_310 = arith.constant dense<0.000000e+00> : vector<8x32xf32>
    %793 = tpu.matmul %792, %636, %cst_310 {dimension_numbers = #tpu.dot_dimension_numbers<[1], [0], [0], [1], [0, 0, 1, 1], [], []>} : vector<8x128xbf16>, vector<128x32xbf16>, vector<8x32xf32> -> vector<8x32xf32>
    %794 = vector.broadcast %638 : vector<1x32xf32> to vector<8x32xf32>
    %795 = arith.addf %793, %794 : vector<8x32xf32>
    %796 = arith.addf %726, %795 : vector<8x32xf32>
    %797 = vector.extract_strided_slice %796 {offsets = [4, 0], sizes = [4, 32], strides = [1, 1]} : vector<8x32xf32> to vector<4x32xf32>
    %c0_311 = arith.constant 0 : index
    %c0_312 = arith.constant 0 : index
    %798 = vector.load %arg36[%c0_311, %c0_312] : memref<1x32xf32, #tpu.memory_space<vmem>>, vector<1x32xf32>
    %c0_313 = arith.constant 0 : index
    %c0_314 = arith.constant 0 : index
    %799 = vector.load %arg37[%c0_313, %c0_314] : memref<1x32xf32, #tpu.memory_space<vmem>>, vector<1x32xf32>
    %cst_315 = arith.constant dense<0.000000e+00> : vector<4xf32>
    %800 = vector.multi_reduction <add>, %797, %cst_315 [1] : vector<4x32xf32> to vector<4xf32>
    %801 = vector.shape_cast %800 : vector<4xf32> to vector<4x1xf32>
    %cst_316 = arith.constant 3.200000e+01 : f32
    %802 = vector.broadcast %cst_316 : f32 to vector<4x1xf32>
    %803 = arith.divf %801, %802 : vector<4x1xf32>
    %804 = vector.broadcast %803 : vector<4x1xf32> to vector<4x32xf32>
    %805 = arith.subf %797, %804 : vector<4x32xf32>
    %806 = arith.mulf %805, %805 : vector<4x32xf32>
    %cst_317 = arith.constant dense<0.000000e+00> : vector<4xf32>
    %807 = vector.multi_reduction <add>, %806, %cst_317 [1] : vector<4x32xf32> to vector<4xf32>
    %808 = vector.shape_cast %807 : vector<4xf32> to vector<4x1xf32>
    %cst_318 = arith.constant 3.200000e+01 : f32
    %809 = vector.broadcast %cst_318 : f32 to vector<4x1xf32>
    %810 = arith.divf %808, %809 : vector<4x1xf32>
    %811 = vector.broadcast %803 : vector<4x1xf32> to vector<4x32xf32>
    %812 = arith.subf %797, %811 : vector<4x32xf32>
    %cst_319 = arith.constant 9.99999974E-6 : f32
    %813 = vector.broadcast %cst_319 : f32 to vector<4x1xf32>
    %814 = arith.addf %810, %813 : vector<4x1xf32>
    %815 = math.rsqrt %814 : vector<4x1xf32>
    %816 = vector.broadcast %815 : vector<4x1xf32> to vector<4x32xf32>
    %817 = arith.mulf %812, %816 : vector<4x32xf32>
    %818 = vector.broadcast %798 : vector<1x32xf32> to vector<4x32xf32>
    %819 = arith.mulf %817, %818 : vector<4x32xf32>
    %820 = vector.broadcast %799 : vector<1x32xf32> to vector<4x32xf32>
    %821 = arith.addf %819, %820 : vector<4x32xf32>
    %822 = arith.truncf %821 : vector<4x32xf32> to vector<4x32xbf16>
    %c0_320 = arith.constant 0 : index
    %c0_321 = arith.constant 0 : index
    %823 = vector.load %arg38[%c0_320, %c0_321] : memref<32x192xbf16, #tpu.memory_space<vmem>>, vector<32x192xbf16>
    %cst_322 = arith.constant dense<0.000000e+00> : vector<4x192xf32>
    %824 = tpu.matmul %822, %823, %cst_322 {dimension_numbers = #tpu.dot_dimension_numbers<[1], [0], [0], [1], [0, 0, 1, 1], [], []>} : vector<4x32xbf16>, vector<32x192xbf16>, vector<4x192xf32> -> vector<4x192xf32>
    %c0_323 = arith.constant 0 : index
    %c0_324 = arith.constant 0 : index
    %825 = vector.load %arg39[%c0_323, %c0_324] : memref<1x192xf32, #tpu.memory_space<vmem>>, vector<1x192xf32>
    %826 = vector.broadcast %825 : vector<1x192xf32> to vector<4x192xf32>
    %827 = arith.addf %824, %826 : vector<4x192xf32>
    %c0_325 = arith.constant 0 : index
    %c0_326 = arith.constant 0 : index
    %c0_327 = arith.constant 0 : index
    %828 = vector.load %arg40[%c0_325, %c0_326, %c0_327] : memref<1x4x192xf32, #tpu.memory_space<vmem>>, vector<1x4x192xf32>
    %829 = vector.shape_cast %828 : vector<1x4x192xf32> to vector<4x192xf32>
    %830 = vector.shape_cast %827 : vector<4x192xf32> to vector<1x4x192xf32>
    tpu.vector_store %arg40[%c0_325, %c0_326, %c0_327], %830 {strides = array<i32>} : memref<1x4x192xf32, #tpu.memory_space<vmem>>, vector<1x4x192xf32>,
    return
  }
  func.func @transform_0(%arg0: i32) -> (i32, i32, i32) {
    %c0_i32 = arith.constant 0 : i32
    %c0_i32_0 = arith.constant 0 : i32
    %c0_i32_1 = arith.constant 0 : i32
    return %arg0, %c0_i32, %c0_i32_0 : i32, i32, i32
  }
  func.func @transform_1(%arg0: i32) -> (i32, i32, i32) {
    %c0_i32 = arith.constant 0 : i32
    %c0_i32_0 = arith.constant 0 : i32
    %c0_i32_1 = arith.constant 0 : i32
    return %arg0, %c0_i32, %c0_i32_0 : i32, i32, i32
  }
  func.func @transform_2(%arg0: i32) -> (i32, i32, i32) {
    %c0_i32 = arith.constant 0 : i32
    %c0_i32_0 = arith.constant 0 : i32
    %c0_i32_1 = arith.constant 0 : i32
    return %arg0, %c0_i32, %c0_i32_0 : i32, i32, i32
  }
  func.func @transform_3(%arg0: i32) -> (i32, i32, i32) {
    %c0_i32 = arith.constant 0 : i32
    %c0_i32_0 = arith.constant 0 : i32
    %c0_i32_1 = arith.constant 0 : i32
    return %arg0, %c0_i32, %c0_i32_0 : i32, i32, i32
  }
  func.func @transform_4(%arg0: i32) -> (i32, i32) {
    %c0_i32 = arith.constant 0 : i32
    %c0_i32_0 = arith.constant 0 : i32
    %c0_i32_1 = arith.constant 0 : i32
    return %c0_i32, %c0_i32_0 : i32, i32
  }
  func.func @transform_5(%arg0: i32) -> (i32, i32) {
    %c0_i32 = arith.constant 0 : i32
    %c0_i32_0 = arith.constant 0 : i32
    %c0_i32_1 = arith.constant 0 : i32
    return %c0_i32, %c0_i32_0 : i32, i32
  }
  func.func @transform_6(%arg0: i32) -> (i32, i32) {
    %c0_i32 = arith.constant 0 : i32
    %c0_i32_0 = arith.constant 0 : i32
    %c0_i32_1 = arith.constant 0 : i32
    return %c0_i32, %c0_i32_0 : i32, i32
  }
  func.func @transform_7(%arg0: i32) -> (i32, i32, i32) {
    %c0_i32 = arith.constant 0 : i32
    %c0_i32_0 = arith.constant 0 : i32
    %c0_i32_1 = arith.constant 0 : i32
    %c0_i32_2 = arith.constant 0 : i32
    return %c0_i32, %c0_i32_0, %c0_i32_1 : i32, i32, i32
  }
  func.func @transform_8(%arg0: i32) -> (i32, i32, i32) {
    %c0_i32 = arith.constant 0 : i32
    %c0_i32_0 = arith.constant 0 : i32
    %c0_i32_1 = arith.constant 0 : i32
    %c0_i32_2 = arith.constant 0 : i32
    return %c0_i32, %c0_i32_0, %c0_i32_1 : i32, i32, i32
  }
  func.func @transform_9(%arg0: i32) -> (i32, i32, i32) {
    %c0_i32 = arith.constant 0 : i32
    %c0_i32_0 = arith.constant 0 : i32
    %c0_i32_1 = arith.constant 0 : i32
    %c0_i32_2 = arith.constant 0 : i32
    return %c0_i32, %c0_i32_0, %c0_i32_1 : i32, i32, i32
  }
  func.func @transform_10(%arg0: i32) -> (i32, i32, i32) {
    %c0_i32 = arith.constant 0 : i32
    %c0_i32_0 = arith.constant 0 : i32
    %c0_i32_1 = arith.constant 0 : i32
    %c0_i32_2 = arith.constant 0 : i32
    return %c0_i32, %c0_i32_0, %c0_i32_1 : i32, i32, i32
  }
  func.func @transform_11(%arg0: i32) -> (i32, i32, i32) {
    %c0_i32 = arith.constant 0 : i32
    %c0_i32_0 = arith.constant 0 : i32
    %c0_i32_1 = arith.constant 0 : i32
    %c0_i32_2 = arith.constant 0 : i32
    return %c0_i32, %c0_i32_0, %c0_i32_1 : i32, i32, i32
  }
  func.func @transform_12(%arg0: i32) -> (i32, i32, i32) {
    %c0_i32 = arith.constant 0 : i32
    %c0_i32_0 = arith.constant 0 : i32
    %c0_i32_1 = arith.constant 0 : i32
    %c0_i32_2 = arith.constant 0 : i32
    return %c0_i32, %c0_i32_0, %c0_i32_1 : i32, i32, i32
  }
  func.func @transform_13(%arg0: i32) -> (i32, i32, i32) {
    %c0_i32 = arith.constant 0 : i32
    %c0_i32_0 = arith.constant 0 : i32
    %c0_i32_1 = arith.constant 0 : i32
    %c0_i32_2 = arith.constant 0 : i32
    return %c0_i32, %c0_i32_0, %c0_i32_1 : i32, i32, i32
  }
  func.func @transform_14(%arg0: i32) -> (i32, i32, i32) {
    %c0_i32 = arith.constant 0 : i32
    %c0_i32_0 = arith.constant 0 : i32
    %c0_i32_1 = arith.constant 0 : i32
    %c0_i32_2 = arith.constant 0 : i32
    return %c0_i32, %c0_i32_0, %c0_i32_1 : i32, i32, i32
  }
  func.func @transform_15(%arg0: i32) -> (i32, i32, i32) {
    %c0_i32 = arith.constant 0 : i32
    %c0_i32_0 = arith.constant 0 : i32
    %c0_i32_1 = arith.constant 0 : i32
    %c0_i32_2 = arith.constant 0 : i32
    return %c0_i32, %c0_i32_0, %c0_i32_1 : i32, i32, i32
  }
  func.func @transform_16(%arg0: i32) -> (i32, i32, i32) {
    %c0_i32 = arith.constant 0 : i32
    %c0_i32_0 = arith.constant 0 : i32
    %c0_i32_1 = arith.constant 0 : i32
    %c0_i32_2 = arith.constant 0 : i32
    return %c0_i32, %c0_i32_0, %c0_i32_1 : i32, i32, i32
  }
  func.func @transform_17(%arg0: i32) -> (i32, i32, i32) {
    %c0_i32 = arith.constant 0 : i32
    %c0_i32_0 = arith.constant 0 : i32
    %c0_i32_1 = arith.constant 0 : i32
    %c0_i32_2 = arith.constant 0 : i32
    return %c0_i32, %c0_i32_0, %c0_i32_1 : i32, i32, i32
  }
  func.func @transform_18(%arg0: i32) -> (i32, i32, i32) {
    %c0_i32 = arith.constant 0 : i32
    %c0_i32_0 = arith.constant 0 : i32
    %c0_i32_1 = arith.constant 0 : i32
    %c0_i32_2 = arith.constant 0 : i32
    return %c0_i32, %c0_i32_0, %c0_i32_1 : i32, i32, i32
  }
  func.func @transform_19(%arg0: i32) -> (i32, i32) {
    %c0_i32 = arith.constant 0 : i32
    %c0_i32_0 = arith.constant 0 : i32
    %c0_i32_1 = arith.constant 0 : i32
    return %c0_i32, %c0_i32_0 : i32, i32
  }
  func.func @transform_20(%arg0: i32) -> (i32, i32) {
    %c0_i32 = arith.constant 0 : i32
    %c0_i32_0 = arith.constant 0 : i32
    %c0_i32_1 = arith.constant 0 : i32
    return %c0_i32, %c0_i32_0 : i32, i32
  }
  func.func @transform_21(%arg0: i32) -> (i32, i32) {
    %c0_i32 = arith.constant 0 : i32
    %c0_i32_0 = arith.constant 0 : i32
    %c0_i32_1 = arith.constant 0 : i32
    return %c0_i32, %c0_i32_0 : i32, i32
  }
  func.func @transform_22(%arg0: i32) -> (i32, i32) {
    %c0_i32 = arith.constant 0 : i32
    %c0_i32_0 = arith.constant 0 : i32
    %c0_i32_1 = arith.constant 0 : i32
    return %c0_i32, %c0_i32_0 : i32, i32
  }
  func.func @transform_23(%arg0: i32) -> (i32, i32, i32) {
    %c0_i32 = arith.constant 0 : i32
    %c0_i32_0 = arith.constant 0 : i32
    %c0_i32_1 = arith.constant 0 : i32
    %c0_i32_2 = arith.constant 0 : i32
    return %c0_i32, %c0_i32_0, %c0_i32_1 : i32, i32, i32
  }
  func.func @transform_24(%arg0: i32) -> (i32, i32, i32) {
    %c0_i32 = arith.constant 0 : i32
    %c0_i32_0 = arith.constant 0 : i32
    %c0_i32_1 = arith.constant 0 : i32
    %c0_i32_2 = arith.constant 0 : i32
    return %c0_i32, %c0_i32_0, %c0_i32_1 : i32, i32, i32
  }
  func.func @transform_25(%arg0: i32) -> (i32, i32, i32) {
    %c0_i32 = arith.constant 0 : i32
    %c0_i32_0 = arith.constant 0 : i32
    %c0_i32_1 = arith.constant 0 : i32
    %c0_i32_2 = arith.constant 0 : i32
    return %c0_i32, %c0_i32_0, %c0_i32_1 : i32, i32, i32
  }
  func.func @transform_26(%arg0: i32) -> (i32, i32, i32) {
    %c0_i32 = arith.constant 0 : i32
    %c0_i32_0 = arith.constant 0 : i32
    %c0_i32_1 = arith.constant 0 : i32
    %c0_i32_2 = arith.constant 0 : i32
    return %c0_i32, %c0_i32_0, %c0_i32_1 : i32, i32, i32
  }
  func.func @transform_27(%arg0: i32) -> (i32, i32, i32) {
    %c0_i32 = arith.constant 0 : i32
    %c0_i32_0 = arith.constant 0 : i32
    %c0_i32_1 = arith.constant 0 : i32
    %c0_i32_2 = arith.constant 0 : i32
    return %c0_i32, %c0_i32_0, %c0_i32_1 : i32, i32, i32
  }
  func.func @transform_28(%arg0: i32) -> (i32, i32, i32) {
    %c0_i32 = arith.constant 0 : i32
    %c0_i32_0 = arith.constant 0 : i32
    %c0_i32_1 = arith.constant 0 : i32
    %c0_i32_2 = arith.constant 0 : i32
    return %c0_i32, %c0_i32_0, %c0_i32_1 : i32, i32, i32
  }
  func.func @transform_29(%arg0: i32) -> (i32, i32, i32) {
    %c0_i32 = arith.constant 0 : i32
    %c0_i32_0 = arith.constant 0 : i32
    %c0_i32_1 = arith.constant 0 : i32
    %c0_i32_2 = arith.constant 0 : i32
    return %c0_i32, %c0_i32_0, %c0_i32_1 : i32, i32, i32
  }
  func.func @transform_30(%arg0: i32) -> (i32, i32, i32) {
    %c0_i32 = arith.constant 0 : i32
    %c0_i32_0 = arith.constant 0 : i32
    %c0_i32_1 = arith.constant 0 : i32
    %c0_i32_2 = arith.constant 0 : i32
    return %c0_i32, %c0_i32_0, %c0_i32_1 : i32, i32, i32
  }
  func.func @transform_31(%arg0: i32) -> (i32, i32, i32) {
    %c0_i32 = arith.constant 0 : i32
    %c0_i32_0 = arith.constant 0 : i32
    %c0_i32_1 = arith.constant 0 : i32
    %c0_i32_2 = arith.constant 0 : i32
    return %c0_i32, %c0_i32_0, %c0_i32_1 : i32, i32, i32
  }
  func.func @transform_32(%arg0: i32) -> (i32, i32, i32) {
    %c0_i32 = arith.constant 0 : i32
    %c0_i32_0 = arith.constant 0 : i32
    %c0_i32_1 = arith.constant 0 : i32
    %c0_i32_2 = arith.constant 0 : i32
    return %c0_i32, %c0_i32_0, %c0_i32_1 : i32, i32, i32
  }
  func.func @transform_33(%arg0: i32) -> (i32, i32, i32) {
    %c0_i32 = arith.constant 0 : i32
    %c0_i32_0 = arith.constant 0 : i32
    %c0_i32_1 = arith.constant 0 : i32
    %c0_i32_2 = arith.constant 0 : i32
    return %c0_i32, %c0_i32_0, %c0_i32_1 : i32, i32, i32
  }
  func.func @transform_34(%arg0: i32) -> (i32, i32, i32) {
    %c0_i32 = arith.constant 0 : i32
    %c0_i32_0 = arith.constant 0 : i32
    %c0_i32_1 = arith.constant 0 : i32
    %c0_i32_2 = arith.constant 0 : i32
    return %c0_i32, %c0_i32_0, %c0_i32_1 : i32, i32, i32
  }
  func.func @transform_35(%arg0: i32) -> (i32, i32) {
    %c0_i32 = arith.constant 0 : i32
    %c0_i32_0 = arith.constant 0 : i32
    %c0_i32_1 = arith.constant 0 : i32
    return %c0_i32, %c0_i32_0 : i32, i32
  }
  func.func @transform_36(%arg0: i32) -> (i32, i32) {
    %c0_i32 = arith.constant 0 : i32
    %c0_i32_0 = arith.constant 0 : i32
    %c0_i32_1 = arith.constant 0 : i32
    return %c0_i32, %c0_i32_0 : i32, i32
  }
  func.func @transform_37(%arg0: i32) -> (i32, i32) {
    %c0_i32 = arith.constant 0 : i32
    %c0_i32_0 = arith.constant 0 : i32
    %c0_i32_1 = arith.constant 0 : i32
    return %c0_i32, %c0_i32_0 : i32, i32
  }
  func.func @transform_38(%arg0: i32) -> (i32, i32) {
    %c0_i32 = arith.constant 0 : i32
    %c0_i32_0 = arith.constant 0 : i32
    %c0_i32_1 = arith.constant 0 : i32
    return %c0_i32, %c0_i32_0 : i32, i32
  }
  func.func @transform_39(%arg0: i32) -> (i32, i32, i32) {
    %c0_i32 = arith.constant 0 : i32
    %c0_i32_0 = arith.constant 0 : i32
    %c0_i32_1 = arith.constant 0 : i32
    return %arg0, %c0_i32, %c0_i32_0 : i32, i32, i32
  }
}

</mosaic_0001>

<llo_original>
// kernel: model_forward.1
$region0: #{model_forward.1}
  #allocation0 [shape = 'u32[]', space=smem, size = 0x4, offset = 0x4, fixed_abs, tag = 'smem constant byte address 0x4 - core index']
  #allocation1 [shape = 'u32[72,128]{1,0:T(1,128)}', space=vmem, size = 0x9000, scoped, tag = 'internal scratch']
  %s0 = inlined_call_operand.smem [shape: u32[40], index: -1, kind: input, shape index: {}]
  %s1 = sld [smem:[%s0]]
  %s2 = scalar_lea.smem %s0, 1
  %s3 = sld [smem:[%s2]]
  %s4 = scalar_lea.smem %s0, 2
  %s5 = sld [smem:[%s4]]
  %s6 = scalar_lea.smem %s0, 3
  %s7 = sld [smem:[%s6]]
  %s8 = scalar_lea.smem %s0, 4
  %s9 = sld [smem:[%s8]]
  %s10 = scalar_lea.smem %s0, 5
  %s11 = sld [smem:[%s10]]
  %s12 = scalar_lea.smem %s0, 6
  %s13 = sld [smem:[%s12]]
  %s14 = scalar_lea.smem %s0, 7
  %s15 = sld [smem:[%s14]]
  %s16 = scalar_lea.smem %s0, 8
  %s17 = sld [smem:[%s16]]
  %s18 = scalar_lea.smem %s0, 9
  %s19 = sld [smem:[%s18]]
  %s20 = scalar_lea.smem %s0, 10
  %s21 = sld [smem:[%s20]]
  %s22 = scalar_lea.smem %s0, 11
  %s23 = sld [smem:[%s22]]
  %s24 = scalar_lea.smem %s0, 12
  %s25 = sld [smem:[%s24]]
  %s26 = scalar_lea.smem %s0, 13
  %s27 = sld [smem:[%s26]]
  %s28 = scalar_lea.smem %s0, 14
  %s29 = sld [smem:[%s28]]
  %s30 = scalar_lea.smem %s0, 15
  %s31 = sld [smem:[%s30]]
  %s32 = scalar_lea.smem %s0, 16
  %s33 = sld [smem:[%s32]]
  %s34 = scalar_lea.smem %s0, 17
  %s35 = sld [smem:[%s34]]
  %s36 = scalar_lea.smem %s0, 18
  %s37 = sld [smem:[%s36]]
  %s38 = scalar_lea.smem %s0, 19
  %s39 = sld [smem:[%s38]]
  %s40 = scalar_lea.smem %s0, 20
  %s41 = sld [smem:[%s40]]
  %s42 = scalar_lea.smem %s0, 21
  %s43 = sld [smem:[%s42]]
  %s44 = scalar_lea.smem %s0, 22
  %s45 = sld [smem:[%s44]]
  %s46 = scalar_lea.smem %s0, 23
  %s47 = sld [smem:[%s46]]
  %s48 = scalar_lea.smem %s0, 24
  %s49 = sld [smem:[%s48]]
  %s50 = scalar_lea.smem %s0, 25
  %s51 = sld [smem:[%s50]]
  %s52 = scalar_lea.smem %s0, 26
  %s53 = sld [smem:[%s52]]
  %s54 = scalar_lea.smem %s0, 27
  %s55 = sld [smem:[%s54]]
  %s56 = scalar_lea.smem %s0, 28
  %s57 = sld [smem:[%s56]]
  %s58 = scalar_lea.smem %s0, 29
  %s59 = sld [smem:[%s58]]
  %s60 = scalar_lea.smem %s0, 30
  %s61 = sld [smem:[%s60]]
  %s62 = scalar_lea.smem %s0, 31
  %s63 = sld [smem:[%s62]]
  %s64 = scalar_lea.smem %s0, 32
  %s65 = sld [smem:[%s64]]
  %s66 = scalar_lea.smem %s0, 33
  %s67 = sld [smem:[%s66]]
  %s68 = scalar_lea.smem %s0, 34
  %s69 = sld [smem:[%s68]]
  %s70 = scalar_lea.smem %s0, 35
  %s71 = sld [smem:[%s70]]
  %s72 = scalar_lea.smem %s0, 36
  %s73 = sld [smem:[%s72]]
  %s74 = scalar_lea.smem %s0, 37
  %s75 = sld [smem:[%s74]]
  %s76 = scalar_lea.smem %s0, 38
  %s77 = sld [smem:[%s76]]
  %s78 = scalar_lea.smem %s0, 39
  %s79 = sld [smem:[%s78]]
  %s80 = sld [smem:[#allocation0]]
  $region193: #{model_forward.1} parent=0
    _
  %s82 = ssub.s32 1, %s80
  %s83 = scalar_select 0, %s82, %s80
  $region1: #{model_forward.1} parent=0
    #allocation2 [shape = 'u8[512]{0}', space=vmem, size = 0x400, scoped, tag = 'input window, operand 36, single buffered']
    #allocation3 [shape = 's32[2]{0}', space=sflag, size = 0x8, scoped, tag = 'scoped memory for model_forward.1']
    #allocation4 [shape = 's32[2]{0}', space=sflag, size = 0x8, scoped, tag = 'scoped memory for model_forward.1']
    #allocation5 [shape = 'u8[8192]{0}', space=vmem, size = 0x2000, scoped, tag = 'output window, operand 0']
    %84 = vsyncpa [#allocation3], 0
    %85 = vsyncpa [#allocation4], 0
    %s86 = scalar_lea.sflag [#allocation4], 1
    %87 = vsyncpa %s86, 0
    loop: start=0, step=1, limit=4
    $region2: #{model_forward.1} parent=1 // loop_pre_header
      _
    $region3: #{model_forward.1} parent=1 // loop_header
      %s89 = sphi 0, %s93
      %p90 = scmp.ge.s32.totalorder %s89, 4
      %s99 = sphi 0, %s101
      %s102 = sphi 0, %s99
      %s103 = sphi 0, %s102
      %s119 = sphi 0, %s103
      %s125 = sphi 0, %s127
      %s128 = sphi 0, %s125
      %s129 = sphi 0, %s128
      %s145 = sphi 0, %s129
      %s151 = sphi 0, %s153
      %s154 = sphi 0, %s151
      %s155 = sphi 0, %s154
      %s171 = sphi 0, %s155
      %s177 = sphi 0, %s179
      %s180 = sphi 0, %s177
      %s181 = sphi 0, %s180
      %s197 = sphi 0, %s181
      %s201 = sphi 0, %s201
      %s203 = sphi 0, %s201
      %s204 = sphi 0, %s203
      %s218 = sphi 0, %s204
      %s222 = sphi 0, %s222
      %s224 = sphi 0, %s222
      %s225 = sphi 0, %s224
      %s239 = sphi 0, %s225
      %s243 = sphi 0, %s243
      %s245 = sphi 0, %s243
      %s246 = sphi 0, %s245
      %s260 = sphi 0, %s246
      %s264 = sphi 0, %s264
      %s266 = sphi 0, %s264
      %s267 = sphi 0, %s266
      %s281 = sphi 0, %s267
      %s285 = sphi 0, %s285
      %s287 = sphi 0, %s285
      %s288 = sphi 0, %s287
      %s302 = sphi 0, %s288
      %s306 = sphi 0, %s306
      %s308 = sphi 0, %s306
      %s309 = sphi 0, %s308
      %s323 = sphi 0, %s309
      %s327 = sphi 0, %s327
      %s329 = sphi 0, %s327
      %s330 = sphi 0, %s329
      %s344 = sphi 0, %s330
      %s348 = sphi 0, %s348
      %s350 = sphi 0, %s348
      %s351 = sphi 0, %s350
      %s365 = sphi 0, %s351
      %s369 = sphi 0, %s369
      %s371 = sphi 0, %s369
      %s372 = sphi 0, %s371
      %s386 = sphi 0, %s372
      %s390 = sphi 0, %s390
      %s392 = sphi 0, %s390
      %s393 = sphi 0, %s392
      %s407 = sphi 0, %s393
      %s411 = sphi 0, %s411
      %s413 = sphi 0, %s411
      %s414 = sphi 0, %s413
      %s428 = sphi 0, %s414
      %s432 = sphi 0, %s432
      %s434 = sphi 0, %s432
      %s435 = sphi 0, %s434
      %s449 = sphi 0, %s435
      %s453 = sphi 0, %s453
      %s455 = sphi 0, %s453
      %s456 = sphi 0, %s455
      %s470 = sphi 0, %s456
      %s474 = sphi 0, %s474
      %s476 = sphi 0, %s474
      %s477 = sphi 0, %s476
      %s491 = sphi 0, %s477
      %s495 = sphi 0, %s495
      %s497 = sphi 0, %s495
      %s498 = sphi 0, %s497
      %s512 = sphi 0, %s498
      %s516 = sphi 0, %s516
      %s518 = sphi 0, %s516
      %s519 = sphi 0, %s518
      %s533 = sphi 0, %s519
      %s537 = sphi 0, %s537
      %s539 = sphi 0, %s537
      %s540 = sphi 0, %s539
      %s554 = sphi 0, %s540
      %s558 = sphi 0, %s558
      %s560 = sphi 0, %s558
      %s561 = sphi 0, %s560
      %s575 = sphi 0, %s561
      %s579 = sphi 0, %s579
      %s581 = sphi 0, %s579
      %s582 = sphi 0, %s581
      %s596 = sphi 0, %s582
      %s600 = sphi 0, %s600
      %s602 = sphi 0, %s600
      %s603 = sphi 0, %s602
      %s617 = sphi 0, %s603
      %s621 = sphi 0, %s621
      %s623 = sphi 0, %s621
      %s624 = sphi 0, %s623
      %s638 = sphi 0, %s624
      %s642 = sphi 0, %s642
      %s644 = sphi 0, %s642
      %s645 = sphi 0, %s644
      %s659 = sphi 0, %s645
      %s663 = sphi 0, %s663
      %s665 = sphi 0, %s663
      %s666 = sphi 0, %s665
      %s680 = sphi 0, %s666
      %s684 = sphi 0, %s684
      %s686 = sphi 0, %s684
      %s687 = sphi 0, %s686
      %s701 = sphi 0, %s687
      %s705 = sphi 0, %s705
      %s707 = sphi 0, %s705
      %s708 = sphi 0, %s707
      %s722 = sphi 0, %s708
      %s726 = sphi 0, %s726
      %s728 = sphi 0, %s726
      %s729 = sphi 0, %s728
      %s743 = sphi 0, %s729
      %s747 = sphi 0, %s747
      %s749 = sphi 0, %s747
      %s750 = sphi 0, %s749
      %s764 = sphi 0, %s750
      %s768 = sphi 0, %s768
      %s770 = sphi 0, %s768
      %s771 = sphi 0, %s770
      %s785 = sphi 0, %s771
      %s789 = sphi 0, %s789
      %s791 = sphi 0, %s789
      %s792 = sphi 0, %s791
      %s806 = sphi 0, %s792
      %s810 = sphi 0, %s810
      %s812 = sphi 0, %s810
      %s813 = sphi 0, %s812
      %s827 = sphi 0, %s813
      %s831 = sphi 0, %s831
      %s833 = sphi 0, %s831
      %s834 = sphi 0, %s833
      %s848 = sphi 0, %s834
      %s852 = sphi 0, %s852
      %s854 = sphi 0, %s852
      %s855 = sphi 0, %s854
      %s869 = sphi 0, %s855
      %s873 = sphi 0, %s873
      %s875 = sphi 0, %s873
      %s876 = sphi 0, %s875
      %s890 = sphi 0, %s876
      %s894 = sphi 0, %s894
      %s896 = sphi 0, %s894
      %s897 = sphi 0, %s896
      %s911 = sphi 0, %s897
      %s915 = sphi 0, %s915
      %s917 = sphi 0, %s915
      %s918 = sphi 0, %s917
      %s932 = sphi 0, %s918
      %s938 = sphi 0, %s940
      %s941 = sphi 0, %s938
      %s942 = sphi 0, %s941
      %s958 = sphi 0, %s942
    $region4: #{model_forward.1} parent=1 // loop_header_branch
      %92 = sbr.rel (%p90) target = $region8
    $region5: #{model_forward.1} parent=1 // loop_body
      %s94 = ssub.s32 %s89, 1
      %s95 = ssub.s32 %s89, 2
      %s96 = sadd.s32 %s89, 1
      %s97 = ssub.s32 %s89, %s96
      %p98 = scmp.eq.s32.totalorder %s97, 0
      %s100 = sadd.s32 %s99, 1
      %s101 = scalar_select %p98, %s99, %s100
      %p104 = pneg %p98
      %p105 = scmp.eq.s32.totalorder %s89, 1
      %p106 = por %p104, %p105
      %p107 = scmp.ne.s32.totalorder %s99, %s102
      %p108 = scmp.eq.s32.totalorder %s89, 0
      %p109 = por %p107, %p108
      %p110 = scmp.ne.s32.totalorder %s99, %s102
      %p111 = scmp.eq.s32.totalorder %s94, 1
      %p112 = por %p110, %p111
      %p113 = scmp.ne.s32.totalorder %s102, %s103
      %p114 = scmp.eq.s32.totalorder %s94, 0
      %p115 = por %p113, %p114
      %p116 = scmp.ne.s32.totalorder %s102, %s103
      %p117 = scmp.eq.s32.totalorder %s95, 1
      %p118 = por %p116, %p117
      %p120 = scmp.ne.s32.totalorder %s103, %s119
      %p121 = scmp.eq.s32.totalorder %s95, 0
      %p122 = por %p120, %p121
      %s123 = ssub.s32 %s89, %s96
      %p124 = scmp.eq.s32.totalorder %s123, 0
      %s126 = sadd.s32 %s125, 1
      %s127 = scalar_select %p124, %s125, %s126
      %p130 = pneg %p124
      %p131 = scmp.eq.s32.totalorder %s89, 1
      %p132 = por %p130, %p131
      %p133 = scmp.ne.s32.totalorder %s125, %s128
      %p134 = scmp.eq.s32.totalorder %s89, 0
      %p135 = por %p133, %p134
      %p136 = scmp.ne.s32.totalorder %s125, %s128
      %p137 = scmp.eq.s32.totalorder %s94, 1
      %p138 = por %p136, %p137
      %p139 = scmp.ne.s32.totalorder %s128, %s129
      %p140 = scmp.eq.s32.totalorder %s94, 0
      %p141 = por %p139, %p140
      %p142 = scmp.ne.s32.totalorder %s128, %s129
      %p143 = scmp.eq.s32.totalorder %s95, 1
      %p144 = por %p142, %p143
      %p146 = scmp.ne.s32.totalorder %s129, %s145
      %p147 = scmp.eq.s32.totalorder %s95, 0
      %p148 = por %p146, %p147
      %s149 = ssub.s32 %s89, %s96
      %p150 = scmp.eq.s32.totalorder %s149, 0
      %s152 = sadd.s32 %s151, 1
      %s153 = scalar_select %p150, %s151, %s152
      %p156 = pneg %p150
      %p157 = scmp.eq.s32.totalorder %s89, 1
      %p158 = por %p156, %p157
      %p159 = scmp.ne.s32.totalorder %s151, %s154
      %p160 = scmp.eq.s32.totalorder %s89, 0
      %p161 = por %p159, %p160
      %p162 = scmp.ne.s32.totalorder %s151, %s154
      %p163 = scmp.eq.s32.totalorder %s94, 1
      %p164 = por %p162, %p163
      %p165 = scmp.ne.s32.totalorder %s154, %s155
      %p166 = scmp.eq.s32.totalorder %s94, 0
      %p167 = por %p165, %p166
      %p168 = scmp.ne.s32.totalorder %s154, %s155
      %p169 = scmp.eq.s32.totalorder %s95, 1
      %p170 = por %p168, %p169
      %p172 = scmp.ne.s32.totalorder %s155, %s171
      %p173 = scmp.eq.s32.totalorder %s95, 0
      %p174 = por %p172, %p173
      %s175 = ssub.s32 %s89, %s96
      %p176 = scmp.eq.s32.totalorder %s175, 0
      %s178 = sadd.s32 %s177, 1
      %s179 = scalar_select %p176, %s177, %s178
      %p182 = pneg %p176
      %p183 = scmp.eq.s32.totalorder %s89, 1
      %p184 = por %p182, %p183
      %p185 = scmp.ne.s32.totalorder %s177, %s180
      %p186 = scmp.eq.s32.totalorder %s89, 0
      %p187 = por %p185, %p186
      %p188 = scmp.ne.s32.totalorder %s177, %s180
      %p189 = scmp.eq.s32.totalorder %s94, 1
      %p190 = por %p188, %p189
      %p191 = scmp.ne.s32.totalorder %s180, %s181
      %p192 = scmp.eq.s32.totalorder %s94, 0
      %p193 = por %p191, %p192
      %p194 = scmp.ne.s32.totalorder %s180, %s181
      %p195 = scmp.eq.s32.totalorder %s95, 1
      %p196 = por %p194, %p195
      %p198 = scmp.ne.s32.totalorder %s181, %s197
      %p199 = scmp.eq.s32.totalorder %s95, 0
      %p200 = por %p198, %p199
      %s202 = sadd.s32 %s201, 1
      %p205 = scmp.eq.s32.totalorder %s89, 1
      %p206 = scmp.ne.s32.totalorder %s201, %s203
      %p207 = scmp.eq.s32.totalorder %s89, 0
      %p208 = por %p206, %p207
      %p209 = scmp.ne.s32.totalorder %s201, %s203
      %p210 = scmp.eq.s32.totalorder %s94, 1
      %p211 = por %p209, %p210
      %p212 = scmp.ne.s32.totalorder %s203, %s204
      %p213 = scmp.eq.s32.totalorder %s94, 0
      %p214 = por %p212, %p213
      %p215 = scmp.ne.s32.totalorder %s203, %s204
      %p216 = scmp.eq.s32.totalorder %s95, 1
      %p217 = por %p215, %p216
      %p219 = scmp.ne.s32.totalorder %s204, %s218
      %p220 = scmp.eq.s32.totalorder %s95, 0
      %p221 = por %p219, %p220
      %s223 = sadd.s32 %s222, 1
      %p226 = scmp.eq.s32.totalorder %s89, 1
      %p227 = scmp.ne.s32.totalorder %s222, %s224
      %p228 = scmp.eq.s32.totalorder %s89, 0
      %p229 = por %p227, %p228
      %p230 = scmp.ne.s32.totalorder %s222, %s224
      %p231 = scmp.eq.s32.totalorder %s94, 1
      %p232 = por %p230, %p231
      %p233 = scmp.ne.s32.totalorder %s224, %s225
      %p234 = scmp.eq.s32.totalorder %s94, 0
      %p235 = por %p233, %p234
      %p236 = scmp.ne.s32.totalorder %s224, %s225
      %p237 = scmp.eq.s32.totalorder %s95, 1
      %p238 = por %p236, %p237
      %p240 = scmp.ne.s32.totalorder %s225, %s239
      %p241 = scmp.eq.s32.totalorder %s95, 0
      %p242 = por %p240, %p241
      %s244 = sadd.s32 %s243, 1
      %p247 = scmp.eq.s32.totalorder %s89, 1
      %p248 = scmp.ne.s32.totalorder %s243, %s245
      %p249 = scmp.eq.s32.totalorder %s89, 0
      %p250 = por %p248, %p249
      %p251 = scmp.ne.s32.totalorder %s243, %s245
      %p252 = scmp.eq.s32.totalorder %s94, 1
      %p253 = por %p251, %p252
      %p254 = scmp.ne.s32.totalorder %s245, %s246
      %p255 = scmp.eq.s32.totalorder %s94, 0
      %p256 = por %p254, %p255
      %p257 = scmp.ne.s32.totalorder %s245, %s246
      %p258 = scmp.eq.s32.totalorder %s95, 1
      %p259 = por %p257, %p258
      %p261 = scmp.ne.s32.totalorder %s246, %s260
      %p262 = scmp.eq.s32.totalorder %s95, 0
      %p263 = por %p261, %p262
      %s265 = sadd.s32 %s264, 1
      %p268 = scmp.eq.s32.totalorder %s89, 1
      %p269 = scmp.ne.s32.totalorder %s264, %s266
      %p270 = scmp.eq.s32.totalorder %s89, 0
      %p271 = por %p269, %p270
      %p272 = scmp.ne.s32.totalorder %s264, %s266
      %p273 = scmp.eq.s32.totalorder %s94, 1
      %p274 = por %p272, %p273
      %p275 = scmp.ne.s32.totalorder %s266, %s267
      %p276 = scmp.eq.s32.totalorder %s94, 0
      %p277 = por %p275, %p276
      %p278 = scmp.ne.s32.totalorder %s266, %s267
      %p279 = scmp.eq.s32.totalorder %s95, 1
      %p280 = por %p278, %p279
      %p282 = scmp.ne.s32.totalorder %s267, %s281
      %p283 = scmp.eq.s32.totalorder %s95, 0
      %p284 = por %p282, %p283
      %s286 = sadd.s32 %s285, 1
      %p289 = scmp.eq.s32.totalorder %s89, 1
      %p290 = scmp.ne.s32.totalorder %s285, %s287
      %p291 = scmp.eq.s32.totalorder %s89, 0
      %p292 = por %p290, %p291
      %p293 = scmp.ne.s32.totalorder %s285, %s287
      %p294 = scmp.eq.s32.totalorder %s94, 1
      %p295 = por %p293, %p294
      %p296 = scmp.ne.s32.totalorder %s287, %s288
      %p297 = scmp.eq.s32.totalorder %s94, 0
      %p298 = por %p296, %p297
      %p299 = scmp.ne.s32.totalorder %s287, %s288
      %p300 = scmp.eq.s32.totalorder %s95, 1
      %p301 = por %p299, %p300
      %p303 = scmp.ne.s32.totalorder %s288, %s302
      %p304 = scmp.eq.s32.totalorder %s95, 0
      %p305 = por %p303, %p304
      %s307 = sadd.s32 %s306, 1
      %p310 = scmp.eq.s32.totalorder %s89, 1
      %p311 = scmp.ne.s32.totalorder %s306, %s308
      %p312 = scmp.eq.s32.totalorder %s89, 0
      %p313 = por %p311, %p312
      %p314 = scmp.ne.s32.totalorder %s306, %s308
      %p315 = scmp.eq.s32.totalorder %s94, 1
      %p316 = por %p314, %p315
      %p317 = scmp.ne.s32.totalorder %s308, %s309
      %p318 = scmp.eq.s32.totalorder %s94, 0
      %p319 = por %p317, %p318
      %p320 = scmp.ne.s32.totalorder %s308, %s309
      %p321 = scmp.eq.s32.totalorder %s95, 1
      %p322 = por %p320, %p321
      %p324 = scmp.ne.s32.totalorder %s309, %s323
      %p325 = scmp.eq.s32.totalorder %s95, 0
      %p326 = por %p324, %p325
      %s328 = sadd.s32 %s327, 1
      %p331 = scmp.eq.s32.totalorder %s89, 1
      %p332 = scmp.ne.s32.totalorder %s327, %s329
      %p333 = scmp.eq.s32.totalorder %s89, 0
      %p334 = por %p332, %p333
      %p335 = scmp.ne.s32.totalorder %s327, %s329
      %p336 = scmp.eq.s32.totalorder %s94, 1
      %p337 = por %p335, %p336
      %p338 = scmp.ne.s32.totalorder %s329, %s330
      %p339 = scmp.eq.s32.totalorder %s94, 0
      %p340 = por %p338, %p339
      %p341 = scmp.ne.s32.totalorder %s329, %s330
      %p342 = scmp.eq.s32.totalorder %s95, 1
      %p343 = por %p341, %p342
      %p345 = scmp.ne.s32.totalorder %s330, %s344
      %p346 = scmp.eq.s32.totalorder %s95, 0
      %p347 = por %p345, %p346
      %s349 = sadd.s32 %s348, 1
      %p352 = scmp.eq.s32.totalorder %s89, 1
      %p353 = scmp.ne.s32.totalorder %s348, %s350
      %p354 = scmp.eq.s32.totalorder %s89, 0
      %p355 = por %p353, %p354
      %p356 = scmp.ne.s32.totalorder %s348, %s350
      %p357 = scmp.eq.s32.totalorder %s94, 1
      %p358 = por %p356, %p357
      %p359 = scmp.ne.s32.totalorder %s350, %s351
      %p360 = scmp.eq.s32.totalorder %s94, 0
      %p361 = por %p359, %p360
      %p362 = scmp.ne.s32.totalorder %s350, %s351
      %p363 = scmp.eq.s32.totalorder %s95, 1
      %p364 = por %p362, %p363
      %p366 = scmp.ne.s32.totalorder %s351, %s365
      %p367 = scmp.eq.s32.totalorder %s95, 0
      %p368 = por %p366, %p367
      %s370 = sadd.s32 %s369, 1
      %p373 = scmp.eq.s32.totalorder %s89, 1
      %p374 = scmp.ne.s32.totalorder %s369, %s371
      %p375 = scmp.eq.s32.totalorder %s89, 0
      %p376 = por %p374, %p375
      %p377 = scmp.ne.s32.totalorder %s369, %s371
      %p378 = scmp.eq.s32.totalorder %s94, 1
      %p379 = por %p377, %p378
      %p380 = scmp.ne.s32.totalorder %s371, %s372
      %p381 = scmp.eq.s32.totalorder %s94, 0
      %p382 = por %p380, %p381
      %p383 = scmp.ne.s32.totalorder %s371, %s372
      %p384 = scmp.eq.s32.totalorder %s95, 1
      %p385 = por %p383, %p384
      %p387 = scmp.ne.s32.totalorder %s372, %s386
      %p388 = scmp.eq.s32.totalorder %s95, 0
      %p389 = por %p387, %p388
      %s391 = sadd.s32 %s390, 1
      %p394 = scmp.eq.s32.totalorder %s89, 1
      %p395 = scmp.ne.s32.totalorder %s390, %s392
      %p396 = scmp.eq.s32.totalorder %s89, 0
      %p397 = por %p395, %p396
      %p398 = scmp.ne.s32.totalorder %s390, %s392
      %p399 = scmp.eq.s32.totalorder %s94, 1
      %p400 = por %p398, %p399
      %p401 = scmp.ne.s32.totalorder %s392, %s393
      %p402 = scmp.eq.s32.totalorder %s94, 0
      %p403 = por %p401, %p402
      %p404 = scmp.ne.s32.totalorder %s392, %s393
      %p405 = scmp.eq.s32.totalorder %s95, 1
      %p406 = por %p404, %p405
      %p408 = scmp.ne.s32.totalorder %s393, %s407
      %p409 = scmp.eq.s32.totalorder %s95, 0
      %p410 = por %p408, %p409
      %s412 = sadd.s32 %s411, 1
      %p415 = scmp.eq.s32.totalorder %s89, 1
      %p416 = scmp.ne.s32.totalorder %s411, %s413
      %p417 = scmp.eq.s32.totalorder %s89, 0
      %p418 = por %p416, %p417
      %p419 = scmp.ne.s32.totalorder %s411, %s413
      %p420 = scmp.eq.s32.totalorder %s94, 1
      %p421 = por %p419, %p420
      %p422 = scmp.ne.s32.totalorder %s413, %s414
      %p423 = scmp.eq.s32.totalorder %s94, 0
      %p424 = por %p422, %p423
      %p425 = scmp.ne.s32.totalorder %s413, %s414
      %p426 = scmp.eq.s32.totalorder %s95, 1
      %p427 = por %p425, %p426
      %p429 = scmp.ne.s32.totalorder %s414, %s428
      %p430 = scmp.eq.s32.totalorder %s95, 0
      %p431 = por %p429, %p430
      %s433 = sadd.s32 %s432, 1
      %p436 = scmp.eq.s32.totalorder %s89, 1
      %p437 = scmp.ne.s32.totalorder %s432, %s434
      %p438 = scmp.eq.s32.totalorder %s89, 0
      %p439 = por %p437, %p438
      %p440 = scmp.ne.s32.totalorder %s432, %s434
      %p441 = scmp.eq.s32.totalorder %s94, 1
      %p442 = por %p440, %p441
      %p443 = scmp.ne.s32.totalorder %s434, %s435
      %p444 = scmp.eq.s32.totalorder %s94, 0
      %p445 = por %p443, %p444
      %p446 = scmp.ne.s32.totalorder %s434, %s435
      %p447 = scmp.eq.s32.totalorder %s95, 1
      %p448 = por %p446, %p447
      %p450 = scmp.ne.s32.totalorder %s435, %s449
      %p451 = scmp.eq.s32.totalorder %s95, 0
      %p452 = por %p450, %p451
      %s454 = sadd.s32 %s453, 1
      %p457 = scmp.eq.s32.totalorder %s89, 1
      %p458 = scmp.ne.s32.totalorder %s453, %s455
      %p459 = scmp.eq.s32.totalorder %s89, 0
      %p460 = por %p458, %p459
      %p461 = scmp.ne.s32.totalorder %s453, %s455
      %p462 = scmp.eq.s32.totalorder %s94, 1
      %p463 = por %p461, %p462
      %p464 = scmp.ne.s32.totalorder %s455, %s456
      %p465 = scmp.eq.s32.totalorder %s94, 0
      %p466 = por %p464, %p465
      %p467 = scmp.ne.s32.totalorder %s455, %s456
      %p468 = scmp.eq.s32.totalorder %s95, 1
      %p469 = por %p467, %p468
      %p471 = scmp.ne.s32.totalorder %s456, %s470
      %p472 = scmp.eq.s32.totalorder %s95, 0
      %p473 = por %p471, %p472
      %s475 = sadd.s32 %s474, 1
      %p478 = scmp.eq.s32.totalorder %s89, 1
      %p479 = scmp.ne.s32.totalorder %s474, %s476
      %p480 = scmp.eq.s32.totalorder %s89, 0
      %p481 = por %p479, %p480
      %p482 = scmp.ne.s32.totalorder %s474, %s476
      %p483 = scmp.eq.s32.totalorder %s94, 1
      %p484 = por %p482, %p483
      %p485 = scmp.ne.s32.totalorder %s476, %s477
      %p486 = scmp.eq.s32.totalorder %s94, 0
      %p487 = por %p485, %p486
      %p488 = scmp.ne.s32.totalorder %s476, %s477
      %p489 = scmp.eq.s32.totalorder %s95, 1
      %p490 = por %p488, %p489
      %p492 = scmp.ne.s32.totalorder %s477, %s491
      %p493 = scmp.eq.s32.totalorder %s95, 0
      %p494 = por %p492, %p493
      %s496 = sadd.s32 %s495, 1
      %p499 = scmp.eq.s32.totalorder %s89, 1
      %p500 = scmp.ne.s32.totalorder %s495, %s497
      %p501 = scmp.eq.s32.totalorder %s89, 0
      %p502 = por %p500, %p501
      %p503 = scmp.ne.s32.totalorder %s495, %s497
      %p504 = scmp.eq.s32.totalorder %s94, 1
      %p505 = por %p503, %p504
      %p506 = scmp.ne.s32.totalorder %s497, %s498
      %p507 = scmp.eq.s32.totalorder %s94, 0
      %p508 = por %p506, %p507
      %p509 = scmp.ne.s32.totalorder %s497, %s498
      %p510 = scmp.eq.s32.totalorder %s95, 1
      %p511 = por %p509, %p510
      %p513 = scmp.ne.s32.totalorder %s498, %s512
      %p514 = scmp.eq.s32.totalorder %s95, 0
      %p515 = por %p513, %p514
      %s517 = sadd.s32 %s516, 1
      %p520 = scmp.eq.s32.totalorder %s89, 1
      %p521 = scmp.ne.s32.totalorder %s516, %s518
      %p522 = scmp.eq.s32.totalorder %s89, 0
      %p523 = por %p521, %p522
      %p524 = scmp.ne.s32.totalorder %s516, %s518
      %p525 = scmp.eq.s32.totalorder %s94, 1
      %p526 = por %p524, %p525
      %p527 = scmp.ne.s32.totalorder %s518, %s519
      %p528 = scmp.eq.s32.totalorder %s94, 0
      %p529 = por %p527, %p528
      %p530 = scmp.ne.s32.totalorder %s518, %s519
      %p531 = scmp.eq.s32.totalorder %s95, 1
      %p532 = por %p530, %p531
      %p534 = scmp.ne.s32.totalorder %s519, %s533
      %p535 = scmp.eq.s32.totalorder %s95, 0
      %p536 = por %p534, %p535
      %s538 = sadd.s32 %s537, 1
      %p541 = scmp.eq.s32.totalorder %s89, 1
      %p542 = scmp.ne.s32.totalorder %s537, %s539
      %p543 = scmp.eq.s32.totalorder %s89, 0
      %p544 = por %p542, %p543
      %p545 = scmp.ne.s32.totalorder %s537, %s539
      %p546 = scmp.eq.s32.totalorder %s94, 1
      %p547 = por %p545, %p546
      %p548 = scmp.ne.s32.totalorder %s539, %s540
      %p549 = scmp.eq.s32.totalorder %s94, 0
      %p550 = por %p548, %p549
      %p551 = scmp.ne.s32.totalorder %s539, %s540
      %p552 = scmp.eq.s32.totalorder %s95, 1
      %p553 = por %p551, %p552
      %p555 = scmp.ne.s32.totalorder %s540, %s554
      %p556 = scmp.eq.s32.totalorder %s95, 0
      %p557 = por %p555, %p556
      %s559 = sadd.s32 %s558, 1
      %p562 = scmp.eq.s32.totalorder %s89, 1
      %p563 = scmp.ne.s32.totalorder %s558, %s560
      %p564 = scmp.eq.s32.totalorder %s89, 0
      %p565 = por %p563, %p564
      %p566 = scmp.ne.s32.totalorder %s558, %s560
      %p567 = scmp.eq.s32.totalorder %s94, 1
      %p568 = por %p566, %p567
      %p569 = scmp.ne.s32.totalorder %s560, %s561
      %p570 = scmp.eq.s32.totalorder %s94, 0
      %p571 = por %p569, %p570
      %p572 = scmp.ne.s32.totalorder %s560, %s561
      %p573 = scmp.eq.s32.totalorder %s95, 1
      %p574 = por %p572, %p573
      %p576 = scmp.ne.s32.totalorder %s561, %s575
      %p577 = scmp.eq.s32.totalorder %s95, 0
      %p578 = por %p576, %p577
      %s580 = sadd.s32 %s579, 1
      %p583 = scmp.eq.s32.totalorder %s89, 1
      %p584 = scmp.ne.s32.totalorder %s579, %s581
      %p585 = scmp.eq.s32.totalorder %s89, 0
      %p586 = por %p584, %p585
      %p587 = scmp.ne.s32.totalorder %s579, %s581
      %p588 = scmp.eq.s32.totalorder %s94, 1
      %p589 = por %p587, %p588
      %p590 = scmp.ne.s32.totalorder %s581, %s582
      %p591 = scmp.eq.s32.totalorder %s94, 0
      %p592 = por %p590, %p591
      %p593 = scmp.ne.s32.totalorder %s581, %s582
      %p594 = scmp.eq.s32.totalorder %s95, 1
      %p595 = por %p593, %p594
      %p597 = scmp.ne.s32.totalorder %s582, %s596
      %p598 = scmp.eq.s32.totalorder %s95, 0
      %p599 = por %p597, %p598
      %s601 = sadd.s32 %s600, 1
      %p604 = scmp.eq.s32.totalorder %s89, 1
      %p605 = scmp.ne.s32.totalorder %s600, %s602
      %p606 = scmp.eq.s32.totalorder %s89, 0
      %p607 = por %p605, %p606
      %p608 = scmp.ne.s32.totalorder %s600, %s602
      %p609 = scmp.eq.s32.totalorder %s94, 1
      %p610 = por %p608, %p609
      %p611 = scmp.ne.s32.totalorder %s602, %s603
      %p612 = scmp.eq.s32.totalorder %s94, 0
      %p613 = por %p611, %p612
      %p614 = scmp.ne.s32.totalorder %s602, %s603
      %p615 = scmp.eq.s32.totalorder %s95, 1
      %p616 = por %p614, %p615
      %p618 = scmp.ne.s32.totalorder %s603, %s617
      %p619 = scmp.eq.s32.totalorder %s95, 0
      %p620 = por %p618, %p619
      %s622 = sadd.s32 %s621, 1
      %p625 = scmp.eq.s32.totalorder %s89, 1
      %p626 = scmp.ne.s32.totalorder %s621, %s623
      %p627 = scmp.eq.s32.totalorder %s89, 0
      %p628 = por %p626, %p627
      %p629 = scmp.ne.s32.totalorder %s621, %s623
      %p630 = scmp.eq.s32.totalorder %s94, 1
      %p631 = por %p629, %p630
      %p632 = scmp.ne.s32.totalorder %s623, %s624
      %p633 = scmp.eq.s32.totalorder %s94, 0
      %p634 = por %p632, %p633
      %p635 = scmp.ne.s32.totalorder %s623, %s624
      %p636 = scmp.eq.s32.totalorder %s95, 1
      %p637 = por %p635, %p636
      %p639 = scmp.ne.s32.totalorder %s624, %s638
      %p640 = scmp.eq.s32.totalorder %s95, 0
      %p641 = por %p639, %p640
      %s643 = sadd.s32 %s642, 1
      %p646 = scmp.eq.s32.totalorder %s89, 1
      %p647 = scmp.ne.s32.totalorder %s642, %s644
      %p648 = scmp.eq.s32.totalorder %s89, 0
      %p649 = por %p647, %p648
      %p650 = scmp.ne.s32.totalorder %s642, %s644
      %p651 = scmp.eq.s32.totalorder %s94, 1
      %p652 = por %p650, %p651
      %p653 = scmp.ne.s32.totalorder %s644, %s645
      %p654 = scmp.eq.s32.totalorder %s94, 0
      %p655 = por %p653, %p654
      %p656 = scmp.ne.s32.totalorder %s644, %s645
      %p657 = scmp.eq.s32.totalorder %s95, 1
      %p658 = por %p656, %p657
      %p660 = scmp.ne.s32.totalorder %s645, %s659
      %p661 = scmp.eq.s32.totalorder %s95, 0
      %p662 = por %p660, %p661
      %s664 = sadd.s32 %s663, 1
      %p667 = scmp.eq.s32.totalorder %s89, 1
      %p668 = scmp.ne.s32.totalorder %s663, %s665
      %p669 = scmp.eq.s32.totalorder %s89, 0
      %p670 = por %p668, %p669
      %p671 = scmp.ne.s32.totalorder %s663, %s665
      %p672 = scmp.eq.s32.totalorder %s94, 1
      %p673 = por %p671, %p672
      %p674 = scmp.ne.s32.totalorder %s665, %s666
      %p675 = scmp.eq.s32.totalorder %s94, 0
      %p676 = por %p674, %p675
      %p677 = scmp.ne.s32.totalorder %s665, %s666
      %p678 = scmp.eq.s32.totalorder %s95, 1
      %p679 = por %p677, %p678
      %p681 = scmp.ne.s32.totalorder %s666, %s680
      %p682 = scmp.eq.s32.totalorder %s95, 0
      %p683 = por %p681, %p682
      %s685 = sadd.s32 %s684, 1
      %p688 = scmp.eq.s32.totalorder %s89, 1
      %p689 = scmp.ne.s32.totalorder %s684, %s686
      %p690 = scmp.eq.s32.totalorder %s89, 0
      %p691 = por %p689, %p690
      %p692 = scmp.ne.s32.totalorder %s684, %s686
      %p693 = scmp.eq.s32.totalorder %s94, 1
      %p694 = por %p692, %p693
      %p695 = scmp.ne.s32.totalorder %s686, %s687
      %p696 = scmp.eq.s32.totalorder %s94, 0
      %p697 = por %p695, %p696
      %p698 = scmp.ne.s32.totalorder %s686, %s687
      %p699 = scmp.eq.s32.totalorder %s95, 1
      %p700 = por %p698, %p699
      %p702 = scmp.ne.s32.totalorder %s687, %s701
      %p703 = scmp.eq.s32.totalorder %s95, 0
      %p704 = por %p702, %p703
      %s706 = sadd.s32 %s705, 1
      %p709 = scmp.eq.s32.totalorder %s89, 1
      %p710 = scmp.ne.s32.totalorder %s705, %s707
      %p711 = scmp.eq.s32.totalorder %s89, 0
      %p712 = por %p710, %p711
      %p713 = scmp.ne.s32.totalorder %s705, %s707
      %p714 = scmp.eq.s32.totalorder %s94, 1
      %p715 = por %p713, %p714
      %p716 = scmp.ne.s32.totalorder %s707, %s708
      %p717 = scmp.eq.s32.totalorder %s94, 0
      %p718 = por %p716, %p717
      %p719 = scmp.ne.s32.totalorder %s707, %s708
      %p720 = scmp.eq.s32.totalorder %s95, 1
      %p721 = por %p719, %p720
      %p723 = scmp.ne.s32.totalorder %s708, %s722
      %p724 = scmp.eq.s32.totalorder %s95, 0
      %p725 = por %p723, %p724
      %s727 = sadd.s32 %s726, 1
      %p730 = scmp.eq.s32.totalorder %s89, 1
      %p731 = scmp.ne.s32.totalorder %s726, %s728
      %p732 = scmp.eq.s32.totalorder %s89, 0
      %p733 = por %p731, %p732
      %p734 = scmp.ne.s32.totalorder %s726, %s728
      %p735 = scmp.eq.s32.totalorder %s94, 1
      %p736 = por %p734, %p735
      %p737 = scmp.ne.s32.totalorder %s728, %s729
      %p738 = scmp.eq.s32.totalorder %s94, 0
      %p739 = por %p737, %p738
      %p740 = scmp.ne.s32.totalorder %s728, %s729
      %p741 = scmp.eq.s32.totalorder %s95, 1
      %p742 = por %p740, %p741
      %p744 = scmp.ne.s32.totalorder %s729, %s743
      %p745 = scmp.eq.s32.totalorder %s95, 0
      %p746 = por %p744, %p745
      %s748 = sadd.s32 %s747, 1
      %p751 = scmp.eq.s32.totalorder %s89, 1
      %p752 = scmp.ne.s32.totalorder %s747, %s749
      %p753 = scmp.eq.s32.totalorder %s89, 0
      %p754 = por %p752, %p753
      %p755 = scmp.ne.s32.totalorder %s747, %s749
      %p756 = scmp.eq.s32.totalorder %s94, 1
      %p757 = por %p755, %p756
      %p758 = scmp.ne.s32.totalorder %s749, %s750
      %p759 = scmp.eq.s32.totalorder %s94, 0
      %p760 = por %p758, %p759
      %p761 = scmp.ne.s32.totalorder %s749, %s750
      %p762 = scmp.eq.s32.totalorder %s95, 1
      %p763 = por %p761, %p762
      %p765 = scmp.ne.s32.totalorder %s750, %s764
      %p766 = scmp.eq.s32.totalorder %s95, 0
      %p767 = por %p765, %p766
      %s769 = sadd.s32 %s768, 1
      %p772 = scmp.eq.s32.totalorder %s89, 1
      %p773 = scmp.ne.s32.totalorder %s768, %s770
      %p774 = scmp.eq.s32.totalorder %s89, 0
      %p775 = por %p773, %p774
      %p776 = scmp.ne.s32.totalorder %s768, %s770
      %p777 = scmp.eq.s32.totalorder %s94, 1
      %p778 = por %p776, %p777
      %p779 = scmp.ne.s32.totalorder %s770, %s771
      %p780 = scmp.eq.s32.totalorder %s94, 0
      %p781 = por %p779, %p780
      %p782 = scmp.ne.s32.totalorder %s770, %s771
      %p783 = scmp.eq.s32.totalorder %s95, 1
      %p784 = por %p782, %p783
      %p786 = scmp.ne.s32.totalorder %s771, %s785
      %p787 = scmp.eq.s32.totalorder %s95, 0
      %p788 = por %p786, %p787
      %s790 = sadd.s32 %s789, 1
      %p793 = scmp.eq.s32.totalorder %s89, 1
      %p794 = scmp.ne.s32.totalorder %s789, %s791
      %p795 = scmp.eq.s32.totalorder %s89, 0
      %p796 = por %p794, %p795
      %p797 = scmp.ne.s32.totalorder %s789, %s791
      %p798 = scmp.eq.s32.totalorder %s94, 1
      %p799 = por %p797, %p798
      %p800 = scmp.ne.s32.totalorder %s791, %s792
      %p801 = scmp.eq.s32.totalorder %s94, 0
      %p802 = por %p800, %p801
      %p803 = scmp.ne.s32.totalorder %s791, %s792
      %p804 = scmp.eq.s32.totalorder %s95, 1
      %p805 = por %p803, %p804
      %p807 = scmp.ne.s32.totalorder %s792, %s806
      %p808 = scmp.eq.s32.totalorder %s95, 0
      %p809 = por %p807, %p808
      %s811 = sadd.s32 %s810, 1
      %p814 = scmp.eq.s32.totalorder %s89, 1
      %p815 = scmp.ne.s32.totalorder %s810, %s812
      %p816 = scmp.eq.s32.totalorder %s89, 0
      %p817 = por %p815, %p816
      %p818 = scmp.ne.s32.totalorder %s810, %s812
      %p819 = scmp.eq.s32.totalorder %s94, 1
      %p820 = por %p818, %p819
      %p821 = scmp.ne.s32.totalorder %s812, %s813
      %p822 = scmp.eq.s32.totalorder %s94, 0
      %p823 = por %p821, %p822
      %p824 = scmp.ne.s32.totalorder %s812, %s813
      %p825 = scmp.eq.s32.totalorder %s95, 1
      %p826 = por %p824, %p825
      %p828 = scmp.ne.s32.totalorder %s813, %s827
      %p829 = scmp.eq.s32.totalorder %s95, 0
      %p830 = por %p828, %p829
      %s832 = sadd.s32 %s831, 1
      %p835 = scmp.eq.s32.totalorder %s89, 1
      %p836 = scmp.ne.s32.totalorder %s831, %s833
      %p837 = scmp.eq.s32.totalorder %s89, 0
      %p838 = por %p836, %p837
      %p839 = scmp.ne.s32.totalorder %s831, %s833
      %p840 = scmp.eq.s32.totalorder %s94, 1
      %p841 = por %p839, %p840
      %p842 = scmp.ne.s32.totalorder %s833, %s834
      %p843 = scmp.eq.s32.totalorder %s94, 0
      %p844 = por %p842, %p843
      %p845 = scmp.ne.s32.totalorder %s833, %s834
      %p846 = scmp.eq.s32.totalorder %s95, 1
      %p847 = por %p845, %p846
      %p849 = scmp.ne.s32.totalorder %s834, %s848
      %p850 = scmp.eq.s32.totalorder %s95, 0
      %p851 = por %p849, %p850
      %s853 = sadd.s32 %s852, 1
      %p856 = scmp.eq.s32.totalorder %s89, 1
      %p857 = scmp.ne.s32.totalorder %s852, %s854
      %p858 = scmp.eq.s32.totalorder %s89, 0
      %p859 = por %p857, %p858
      %p860 = scmp.ne.s32.totalorder %s852, %s854
      %p861 = scmp.eq.s32.totalorder %s94, 1
      %p862 = por %p860, %p861
      %p863 = scmp.ne.s32.totalorder %s854, %s855
      %p864 = scmp.eq.s32.totalorder %s94, 0
      %p865 = por %p863, %p864
      %p866 = scmp.ne.s32.totalorder %s854, %s855
      %p867 = scmp.eq.s32.totalorder %s95, 1
      %p868 = por %p866, %p867
      %p870 = scmp.ne.s32.totalorder %s855, %s869
      %p871 = scmp.eq.s32.totalorder %s95, 0
      %p872 = por %p870, %p871
      %s874 = sadd.s32 %s873, 1
      %p877 = scmp.eq.s32.totalorder %s89, 1
      %p878 = scmp.ne.s32.totalorder %s873, %s875
      %p879 = scmp.eq.s32.totalorder %s89, 0
      %p880 = por %p878, %p879
      %p881 = scmp.ne.s32.totalorder %s873, %s875
      %p882 = scmp.eq.s32.totalorder %s94, 1
      %p883 = por %p881, %p882
      %p884 = scmp.ne.s32.totalorder %s875, %s876
      %p885 = scmp.eq.s32.totalorder %s94, 0
      %p886 = por %p884, %p885
      %p887 = scmp.ne.s32.totalorder %s875, %s876
      %p888 = scmp.eq.s32.totalorder %s95, 1
      %p889 = por %p887, %p888
      %p891 = scmp.ne.s32.totalorder %s876, %s890
      %p892 = scmp.eq.s32.totalorder %s95, 0
      %p893 = por %p891, %p892
      %s895 = sadd.s32 %s894, 1
      %p898 = scmp.eq.s32.totalorder %s89, 1
      %p899 = scmp.ne.s32.totalorder %s894, %s896
      %p900 = scmp.eq.s32.totalorder %s89, 0
      %p901 = por %p899, %p900
      %p902 = scmp.ne.s32.totalorder %s894, %s896
      %p903 = scmp.eq.s32.totalorder %s94, 1
      %p904 = por %p902, %p903
      %p905 = scmp.ne.s32.totalorder %s896, %s897
      %p906 = scmp.eq.s32.totalorder %s94, 0
      %p907 = por %p905, %p906
      %p908 = scmp.ne.s32.totalorder %s896, %s897
      %p909 = scmp.eq.s32.totalorder %s95, 1
      %p910 = por %p908, %p909
      %p912 = scmp.ne.s32.totalorder %s897, %s911
      %p913 = scmp.eq.s32.totalorder %s95, 0
      %p914 = por %p912, %p913
      %s916 = sadd.s32 %s915, 1
      %p919 = scmp.eq.s32.totalorder %s89, 1
      %p920 = scmp.ne.s32.totalorder %s915, %s917
      %p921 = scmp.eq.s32.totalorder %s89, 0
      %p922 = por %p920, %p921
      %p923 = scmp.ne.s32.totalorder %s915, %s917
      %p924 = scmp.eq.s32.totalorder %s94, 1
      %p925 = por %p923, %p924
      %p926 = scmp.ne.s32.totalorder %s917, %s918
      %p927 = scmp.eq.s32.totalorder %s94, 0
      %p928 = por %p926, %p927
      %p929 = scmp.ne.s32.totalorder %s917, %s918
      %p930 = scmp.eq.s32.totalorder %s95, 1
      %p931 = por %p929, %p930
      %p933 = scmp.ne.s32.totalorder %s918, %s932
      %p934 = scmp.eq.s32.totalorder %s95, 0
      %p935 = por %p933, %p934
      %s936 = ssub.s32 %s89, %s96
      %p937 = scmp.eq.s32.totalorder %s936, 0
      %s939 = sadd.s32 %s938, 1
      %s940 = scalar_select %p937, %s938, %s939
      %p943 = pneg %p937
      %p944 = scmp.eq.s32.totalorder %s89, 1
      %p945 = por %p943, %p944
      %p946 = scmp.ne.s32.totalorder %s938, %s941
      %p947 = scmp.eq.s32.totalorder %s89, 0
      %p948 = por %p946, %p947
      %p949 = scmp.ne.s32.totalorder %s938, %s941
      %p950 = scmp.eq.s32.totalorder %s94, 1
      %p951 = por %p949, %p950
      %p952 = scmp.ne.s32.totalorder %s941, %s942
      %p953 = scmp.eq.s32.totalorder %s94, 0
      %p954 = por %p952, %p953
      %p955 = scmp.ne.s32.totalorder %s941, %s942
      %p956 = scmp.eq.s32.totalorder %s95, 1
      %p957 = por %p955, %p956
      %p959 = scmp.ne.s32.totalorder %s942, %s958
      %p960 = scmp.eq.s32.totalorder %s95, 0
      %p961 = por %p959, %p960
      %p962 = scmp.le.s32.totalorder 1, %s89
      %p963 = scmp.lt.s32.totalorder %s89, 3
      %p964 = pnand %p962, %p963
      %p965 = pneg %p964
      // Predicated region
      $region9: #{model_forward.1} parent=5 // pred_check
        _
      $region10: #{model_forward.1} parent=5 // pred_check_branch
        %967 = sbr.rel (%p964) target = $region12
      $region11: #{model_forward.1} parent=5 // pred_region
        %s968 = ssub.s32 %s89, 1
        // Predicated region
        $region13: #{model_forward.1} parent=11 // pred_check
          %p969 = pneg %p214
        $region14: #{model_forward.1} parent=11 // pred_check_branch
          %971 = sbr.rel (%p969) target = $region16
        $region15: #{model_forward.1} parent=11 // pred_region
          _
        $region16: #{model_forward.1} parent=11 // pred_fallthru
          _
        // Predicated region
        $region17: #{model_forward.1} parent=11 // pred_check
          %p972 = pneg %p235
        $region18: #{model_forward.1} parent=11 // pred_check_branch
          %974 = sbr.rel (%p972) target = $region20
        $region19: #{model_forward.1} parent=11 // pred_region
          _
        $region20: #{model_forward.1} parent=11 // pred_fallthru
          _
        // Predicated region
        $region21: #{model_forward.1} parent=11 // pred_check
          %p975 = pneg %p256
        $region22: #{model_forward.1} parent=11 // pred_check_branch
          %977 = sbr.rel (%p975) target = $region24
        $region23: #{model_forward.1} parent=11 // pred_region
          _
        $region24: #{model_forward.1} parent=11 // pred_fallthru
          _
        // Predicated region
        $region25: #{model_forward.1} parent=11 // pred_check
          %p978 = pneg %p277
        $region26: #{model_forward.1} parent=11 // pred_check_branch
          %980 = sbr.rel (%p978) target = $region28
        $region27: #{model_forward.1} parent=11 // pred_region
          _
        $region28: #{model_forward.1} parent=11 // pred_fallthru
          _
        // Predicated region
        $region29: #{model_forward.1} parent=11 // pred_check
          %p981 = pneg %p298
        $region30: #{model_forward.1} parent=11 // pred_check_branch
          %983 = sbr.rel (%p981) target = $region32
        $region31: #{model_forward.1} parent=11 // pred_region
          _
        $region32: #{model_forward.1} parent=11 // pred_fallthru
          _
        // Predicated region
        $region33: #{model_forward.1} parent=11 // pred_check
          %p984 = pneg %p319
        $region34: #{model_forward.1} parent=11 // pred_check_branch
          %986 = sbr.rel (%p984) target = $region36
        $region35: #{model_forward.1} parent=11 // pred_region
          _
        $region36: #{model_forward.1} parent=11 // pred_fallthru
          _
        // Predicated region
        $region37: #{model_forward.1} parent=11 // pred_check
          %p987 = pneg %p340
        $region38: #{model_forward.1} parent=11 // pred_check_branch
          %989 = sbr.rel (%p987) target = $region40
        $region39: #{model_forward.1} parent=11 // pred_region
          _
        $region40: #{model_forward.1} parent=11 // pred_fallthru
          _
        // Predicated region
        $region41: #{model_forward.1} parent=11 // pred_check
          %p990 = pneg %p361
        $region42: #{model_forward.1} parent=11 // pred_check_branch
          %992 = sbr.rel (%p990) target = $region44
        $region43: #{model_forward.1} parent=11 // pred_region
          _
        $region44: #{model_forward.1} parent=11 // pred_fallthru
          _
        // Predicated region
        $region45: #{model_forward.1} parent=11 // pred_check
          %p993 = pneg %p382
        $region46: #{model_forward.1} parent=11 // pred_check_branch
          %995 = sbr.rel (%p993) target = $region48
        $region47: #{model_forward.1} parent=11 // pred_region
          _
        $region48: #{model_forward.1} parent=11 // pred_fallthru
          _
        // Predicated region
        $region49: #{model_forward.1} parent=11 // pred_check
          %p996 = pneg %p403
        $region50: #{model_forward.1} parent=11 // pred_check_branch
          %998 = sbr.rel (%p996) target = $region52
        $region51: #{model_forward.1} parent=11 // pred_region
          _
        $region52: #{model_forward.1} parent=11 // pred_fallthru
          _
        // Predicated region
        $region53: #{model_forward.1} parent=11 // pred_check
          %p999 = pneg %p424
        $region54: #{model_forward.1} parent=11 // pred_check_branch
          %1001 = sbr.rel (%p999) target = $region56
        $region55: #{model_forward.1} parent=11 // pred_region
          _
        $region56: #{model_forward.1} parent=11 // pred_fallthru
          _
        // Predicated region
        $region57: #{model_forward.1} parent=11 // pred_check
          %p1002 = pneg %p445
        $region58: #{model_forward.1} parent=11 // pred_check_branch
          %1004 = sbr.rel (%p1002) target = $region60
        $region59: #{model_forward.1} parent=11 // pred_region
          _
        $region60: #{model_forward.1} parent=11 // pred_fallthru
          _
        // Predicated region
        $region61: #{model_forward.1} parent=11 // pred_check
          %p1005 = pneg %p466
        $region62: #{model_forward.1} parent=11 // pred_check_branch
          %1007 = sbr.rel (%p1005) target = $region64
        $region63: #{model_forward.1} parent=11 // pred_region
          _
        $region64: #{model_forward.1} parent=11 // pred_fallthru
          _
        // Predicated region
        $region65: #{model_forward.1} parent=11 // pred_check
          %p1008 = pneg %p487
        $region66: #{model_forward.1} parent=11 // pred_check_branch
          %1010 = sbr.rel (%p1008) target = $region68
        $region67: #{model_forward.1} parent=11 // pred_region
          _
        $region68: #{model_forward.1} parent=11 // pred_fallthru
          _
        // Predicated region
        $region69: #{model_forward.1} parent=11 // pred_check
          %p1011 = pneg %p508
        $region70: #{model_forward.1} parent=11 // pred_check_branch
          %1013 = sbr.rel (%p1011) target = $region72
        $region71: #{model_forward.1} parent=11 // pred_region
          _
        $region72: #{model_forward.1} parent=11 // pred_fallthru
          _
        // Predicated region
        $region73: #{model_forward.1} parent=11 // pred_check
          %p1014 = pneg %p529
        $region74: #{model_forward.1} parent=11 // pred_check_branch
          %1016 = sbr.rel (%p1014) target = $region76
        $region75: #{model_forward.1} parent=11 // pred_region
          _
        $region76: #{model_forward.1} parent=11 // pred_fallthru
          _
        // Predicated region
        $region77: #{model_forward.1} parent=11 // pred_check
          %p1017 = pneg %p550
        $region78: #{model_forward.1} parent=11 // pred_check_branch
          %1019 = sbr.rel (%p1017) target = $region80
        $region79: #{model_forward.1} parent=11 // pred_region
          _
        $region80: #{model_forward.1} parent=11 // pred_fallthru
          _
        // Predicated region
        $region81: #{model_forward.1} parent=11 // pred_check
          %p1020 = pneg %p571
        $region82: #{model_forward.1} parent=11 // pred_check_branch
          %1022 = sbr.rel (%p1020) target = $region84
        $region83: #{model_forward.1} parent=11 // pred_region
          _
        $region84: #{model_forward.1} parent=11 // pred_fallthru
          _
        // Predicated region
        $region85: #{model_forward.1} parent=11 // pred_check
          %p1023 = pneg %p592
        $region86: #{model_forward.1} parent=11 // pred_check_branch
          %1025 = sbr.rel (%p1023) target = $region88
        $region87: #{model_forward.1} parent=11 // pred_region
          _
        $region88: #{model_forward.1} parent=11 // pred_fallthru
          _
        // Predicated region
        $region89: #{model_forward.1} parent=11 // pred_check
          %p1026 = pneg %p613
        $region90: #{model_forward.1} parent=11 // pred_check_branch
          %1028 = sbr.rel (%p1026) target = $region92
        $region91: #{model_forward.1} parent=11 // pred_region
          _
        $region92: #{model_forward.1} parent=11 // pred_fallthru
          _
        // Predicated region
        $region93: #{model_forward.1} parent=11 // pred_check
          %p1029 = pneg %p634
        $region94: #{model_forward.1} parent=11 // pred_check_branch
          %1031 = sbr.rel (%p1029) target = $region96
        $region95: #{model_forward.1} parent=11 // pred_region
          _
        $region96: #{model_forward.1} parent=11 // pred_fallthru
          _
        // Predicated region
        $region97: #{model_forward.1} parent=11 // pred_check
          %p1032 = pneg %p655
        $region98: #{model_forward.1} parent=11 // pred_check_branch
          %1034 = sbr.rel (%p1032) target = $region100
        $region99: #{model_forward.1} parent=11 // pred_region
          _
        $region100: #{model_forward.1} parent=11 // pred_fallthru
          _
        // Predicated region
        $region101: #{model_forward.1} parent=11 // pred_check
          %p1035 = pneg %p676
        $region102: #{model_forward.1} parent=11 // pred_check_branch
          %1037 = sbr.rel (%p1035) target = $region104
        $region103: #{model_forward.1} parent=11 // pred_region
          _
        $region104: #{model_forward.1} parent=11 // pred_fallthru
          _
        // Predicated region
        $region105: #{model_forward.1} parent=11 // pred_check
          %p1038 = pneg %p697
        $region106: #{model_forward.1} parent=11 // pred_check_branch
          %1040 = sbr.rel (%p1038) target = $region108
        $region107: #{model_forward.1} parent=11 // pred_region
          _
        $region108: #{model_forward.1} parent=11 // pred_fallthru
          _
        // Predicated region
        $region109: #{model_forward.1} parent=11 // pred_check
          %p1041 = pneg %p718
        $region110: #{model_forward.1} parent=11 // pred_check_branch
          %1043 = sbr.rel (%p1041) target = $region112
        $region111: #{model_forward.1} parent=11 // pred_region
          _
        $region112: #{model_forward.1} parent=11 // pred_fallthru
          _
        // Predicated region
        $region113: #{model_forward.1} parent=11 // pred_check
          %p1044 = pneg %p739
        $region114: #{model_forward.1} parent=11 // pred_check_branch
          %1046 = sbr.rel (%p1044) target = $region116
        $region115: #{model_forward.1} parent=11 // pred_region
          _
        $region116: #{model_forward.1} parent=11 // pred_fallthru
          _
        // Predicated region
        $region117: #{model_forward.1} parent=11 // pred_check
          %p1047 = pneg %p760
        $region118: #{model_forward.1} parent=11 // pred_check_branch
          %1049 = sbr.rel (%p1047) target = $region120
        $region119: #{model_forward.1} parent=11 // pred_region
          _
        $region120: #{model_forward.1} parent=11 // pred_fallthru
          _
        // Predicated region
        $region121: #{model_forward.1} parent=11 // pred_check
          %p1050 = pneg %p781
        $region122: #{model_forward.1} parent=11 // pred_check_branch
          %1052 = sbr.rel (%p1050) target = $region124
        $region123: #{model_forward.1} parent=11 // pred_region
          _
        $region124: #{model_forward.1} parent=11 // pred_fallthru
          _
        // Predicated region
        $region125: #{model_forward.1} parent=11 // pred_check
          %p1053 = pneg %p802
        $region126: #{model_forward.1} parent=11 // pred_check_branch
          %1055 = sbr.rel (%p1053) target = $region128
        $region127: #{model_forward.1} parent=11 // pred_region
          _
        $region128: #{model_forward.1} parent=11 // pred_fallthru
          _
        // Predicated region
        $region129: #{model_forward.1} parent=11 // pred_check
          %p1056 = pneg %p823
        $region130: #{model_forward.1} parent=11 // pred_check_branch
          %1058 = sbr.rel (%p1056) target = $region132
        $region131: #{model_forward.1} parent=11 // pred_region
          _
        $region132: #{model_forward.1} parent=11 // pred_fallthru
          _
        // Predicated region
        $region133: #{model_forward.1} parent=11 // pred_check
          %p1059 = pneg %p844
        $region134: #{model_forward.1} parent=11 // pred_check_branch
          %1061 = sbr.rel (%p1059) target = $region136
        $region135: #{model_forward.1} parent=11 // pred_region
          _
        $region136: #{model_forward.1} parent=11 // pred_fallthru
          _
        // Predicated region
        $region137: #{model_forward.1} parent=11 // pred_check
          %p1062 = pneg %p865
        $region138: #{model_forward.1} parent=11 // pred_check_branch
          %1064 = sbr.rel (%p1062) target = $region140
        $region139: #{model_forward.1} parent=11 // pred_region
          _
        $region140: #{model_forward.1} parent=11 // pred_fallthru
          _
        // Predicated region
        $region141: #{model_forward.1} parent=11 // pred_check
          %p1065 = pneg %p886
        $region142: #{model_forward.1} parent=11 // pred_check_branch
          %1067 = sbr.rel (%p1065) target = $region144
        $region143: #{model_forward.1} parent=11 // pred_region
          %1069 = vsyncadd [#allocation3], 0
          %s1071 = sshll.u32 %s73, 4
          %s1072 = int_to_ptr.hbm [resolvable:$true] %s1071
          %s1073 = sshll.u32 [#allocation2], 4
          %s1074 = int_to_ptr.vmem [resolvable:$true] %s1073
          %1076 = dma.hbm_to_vmem [thread:$0]  %s1072, 16, %s1074, [#allocation3]
        $region144: #{model_forward.1} parent=11 // pred_fallthru
          _
        // Predicated region
        $region145: #{model_forward.1} parent=11 // pred_check
          %p1077 = pneg %p907
        $region146: #{model_forward.1} parent=11 // pred_check_branch
          %1079 = sbr.rel (%p1077) target = $region148
        $region147: #{model_forward.1} parent=11 // pred_region
          _
        $region148: #{model_forward.1} parent=11 // pred_fallthru
          _
        // Predicated region
        $region149: #{model_forward.1} parent=11 // pred_check
          %p1080 = pneg %p928
        $region150: #{model_forward.1} parent=11 // pred_check_branch
          %1082 = sbr.rel (%p1080) target = $region152
        $region151: #{model_forward.1} parent=11 // pred_region
          _
        $region152: #{model_forward.1} parent=11 // pred_fallthru
          _
      $region12: #{model_forward.1} parent=5 // pred_fallthru
        _
      %p1083 = scmp.lt.s32.totalorder %s89, 2
      // Predicated region
      $region153: #{model_forward.1} parent=5 // pred_check
        %p1084 = pneg %p1083
      $region154: #{model_forward.1} parent=5 // pred_check_branch
        %1086 = sbr.rel (%p1084) target = $region156
      $region155: #{model_forward.1} parent=5 // pred_region
        // Predicated region
        $region157: #{model_forward.1} parent=155 // pred_check
          %p1087 = pneg %p109
        $region158: #{model_forward.1} parent=155 // pred_check_branch
          %1089 = sbr.rel (%p1087) target = $region160
        $region159: #{model_forward.1} parent=155 // pred_region
          %p1090 = scmp.lt.s32.totalorder %s89, 1
          %s1091 = scalar_select %p1090, %s89, 1
          %s1092 = smul.addr %s1091, 2
          %s1093 = smul.addr %s1092, 8
          %s1094 = scalar_lea.vmem %s1, %s1093
        $region160: #{model_forward.1} parent=155 // pred_fallthru
          _
        // Predicated region
        $region161: #{model_forward.1} parent=155 // pred_check
          %p1095 = pneg %p135
        $region162: #{model_forward.1} parent=155 // pred_check_branch
          %1097 = sbr.rel (%p1095) target = $region164
        $region163: #{model_forward.1} parent=155 // pred_region
          %p1098 = scmp.lt.s32.totalorder %s89, 1
          %s1099 = scalar_select %p1098, %s89, 1
          %s1100 = smul.addr %s1099, 8
          %s1101 = scalar_lea.vmem %s3, %s1100
        $region164: #{model_forward.1} parent=155 // pred_fallthru
          _
        // Predicated region
        $region165: #{model_forward.1} parent=155 // pred_check
          %p1102 = pneg %p161
        $region166: #{model_forward.1} parent=155 // pred_check_branch
          %1104 = sbr.rel (%p1102) target = $region168
        $region167: #{model_forward.1} parent=155 // pred_region
          %p1105 = scmp.lt.s32.totalorder %s89, 1
          %s1106 = scalar_select %p1105, %s89, 1
          %s1107 = smul.addr %s1106, 4
          %s1108 = scalar_lea.vmem %s5, %s1107
        $region168: #{model_forward.1} parent=155 // pred_fallthru
          _
        // Predicated region
        $region169: #{model_forward.1} parent=155 // pred_check
          %p1109 = pneg %p187
        $region170: #{model_forward.1} parent=155 // pred_check_branch
          %1111 = sbr.rel (%p1109) target = $region172
        $region171: #{model_forward.1} parent=155 // pred_region
          %p1112 = scmp.lt.s32.totalorder %s89, 1
          %s1113 = scalar_select %p1112, %s89, 1
          %s1114 = smul.addr %s1113, 4
          %s1115 = scalar_lea.vmem %s7, %s1114
        $region172: #{model_forward.1} parent=155 // pred_fallthru
          _
      $region156: #{model_forward.1} parent=5 // pred_fallthru
        _
      %p1116 = scmp.le.s32.totalorder 1, %s89
      %p1117 = scmp.lt.s32.totalorder %s89, 3
      %p1118 = pnand %p1116, %p1117
      %p1119 = pneg %p1118
      // Predicated region
      $region173: #{model_forward.1} parent=5 // pred_check
        _
      $region174: #{model_forward.1} parent=5 // pred_check_branch
        %1121 = sbr.rel (%p1118) target = $region176
      $region175: #{model_forward.1} parent=5 // pred_region
        %s1122 = ssub.s32 %s89, 1
        // Predicated region
        $region177: #{model_forward.1} parent=175 // pred_check
          %p1123 = pneg %p886
        $region178: #{model_forward.1} parent=175 // pred_check_branch
          %1125 = sbr.rel (%p1123) target = $region180
        $region179: #{model_forward.1} parent=175 // pred_region
          %1127 = dma.done [#allocation3], 16
        $region180: #{model_forward.1} parent=175 // pred_fallthru
          _
        %p1128 = scmp.lt.s32.totalorder %s94, 1
        %s1129 = scalar_select %p1128, %s94, 1
        %s1130 = smul.addr %s1129, 2
        %s1131 = smul.addr %s1130, 8
        %s1132 = scalar_lea.vmem %s1, %s1131
        %p1133 = pneg %p115
        %p1134 = pneg %p112
        %p1135 = scmp.lt.s32.totalorder %s94, 1
        %s1136 = scalar_select %p1135, %s94, 1
        %s1137 = smul.addr %s1136, 8
        %s1138 = scalar_lea.vmem %s3, %s1137
        %p1139 = pneg %p141
        %p1140 = pneg %p138
        %p1141 = scmp.lt.s32.totalorder %s94, 1
        %s1142 = scalar_select %p1141, %s94, 1
        %s1143 = smul.addr %s1142, 4
        %s1144 = scalar_lea.vmem %s5, %s1143
        %p1145 = pneg %p167
        %p1146 = pneg %p164
        %p1147 = scmp.lt.s32.totalorder %s94, 1
        %s1148 = scalar_select %p1147, %s94, 1
        %s1149 = smul.addr %s1148, 4
        %s1150 = scalar_lea.vmem %s7, %s1149
        %p1151 = pneg %p193
        %p1152 = pneg %p190
        %p1153 = pneg %p214
        %p1154 = pneg %p211
        %p1155 = pneg %p235
        %p1156 = pneg %p232
        %p1157 = pneg %p256
        %p1158 = pneg %p253
        %p1159 = pneg %p277
        %p1160 = pneg %p274
        %p1161 = pneg %p298
        %p1162 = pneg %p295
        %p1163 = pneg %p319
        %p1164 = pneg %p316
        %p1165 = pneg %p340
        %p1166 = pneg %p337
        %p1167 = pneg %p361
        %p1168 = pneg %p358
        %p1169 = pneg %p382
        %p1170 = pneg %p379
        %p1171 = pneg %p403
        %p1172 = pneg %p400
        %p1173 = pneg %p424
        %p1174 = pneg %p421
        %p1175 = pneg %p445
        %p1176 = pneg %p442
        %p1177 = pneg %p466
        %p1178 = pneg %p463
        %p1179 = pneg %p487
        %p1180 = pneg %p484
        %p1181 = pneg %p508
        %p1182 = pneg %p505
        %p1183 = pneg %p529
        %p1184 = pneg %p526
        %p1185 = pneg %p550
        %p1186 = pneg %p547
        %p1187 = pneg %p571
        %p1188 = pneg %p568
        %p1189 = pneg %p592
        %p1190 = pneg %p589
        %p1191 = pneg %p613
        %p1192 = pneg %p610
        %p1193 = pneg %p634
        %p1194 = pneg %p631
        %p1195 = pneg %p655
        %p1196 = pneg %p652
        %p1197 = pneg %p676
        %p1198 = pneg %p673
        %p1199 = pneg %p697
        %p1200 = pneg %p694
        %p1201 = pneg %p718
        %p1202 = pneg %p715
        %p1203 = pneg %p739
        %p1204 = pneg %p736
        %p1205 = pneg %p760
        %p1206 = pneg %p757
        %p1207 = pneg %p781
        %p1208 = pneg %p778
        %p1209 = pneg %p802
        %p1210 = pneg %p799
        %p1211 = pneg %p823
        %p1212 = pneg %p820
        %p1213 = pneg %p844
        %p1214 = pneg %p841
        %p1215 = pneg %p865
        %p1216 = pneg %p862
        %p1217 = pneg %p886
        %p1218 = pneg %p883
        %p1219 = pneg %p907
        %p1220 = pneg %p904
        %p1221 = pneg %p928
        %p1222 = pneg %p925
        %p1223 = pneg %p954
        %p1224 = pneg %p951
        %s1225 = sand.u32 %s941, 1
        %s1226 = scalar_lea.sflag [#allocation4], %s1225
        %s1227 = sand.u32 %s941, 1
        %s1228 = smul.addr %s1227, 8
        %s1229 = scalar_lea.vmem [#allocation5], %s1228
        %p1230 = scmp.lt.s32.totalorder %s94, 1
        %s1231 = scalar_select %p1230, %s94, 1
        %s1232 = smul.addr %s1231, 2
        %s1233 = smul.addr %s1232, 8
        %s1234 = scalar_lea.vmem %s1, %s1233
        %p1235 = scmp.lt.s32.totalorder %s94, 1
        %s1236 = scalar_select %p1235, %s94, 1
        %s1237 = smul.addr %s1236, 8
        %s1238 = scalar_lea.vmem %s3, %s1237
        %p1239 = scmp.lt.s32.totalorder %s94, 1
        %s1240 = scalar_select %p1239, %s94, 1
        %s1241 = smul.addr %s1240, 4
        %s1242 = scalar_lea.vmem %s5, %s1241
        %p1243 = scmp.lt.s32.totalorder %s94, 1
        %s1244 = scalar_select %p1243, %s94, 1
        %s1245 = smul.addr %s1244, 4
        %s1246 = scalar_lea.vmem %s7, %s1245
        %v1248 = vld [vmem:[%s1234] sm:$0x1f]
        %v1249 = vld [vmem:[%s1234 + $0x8] sm:$0x1f]
        %v1250 = vpack.c.bf16 %v1248, %v1248
        %v1251 = vpack.c.bf16 %v1249, %v1249
        %v1252 = vld [vmem:[%s9] sm:$0xf]
        %v1253 = vld [vmem:[%s9 + $0x4] sm:$0xf]
        %v1254 = vld [vmem:[%s9 + $0x8] sm:$0xf]
        %v1255 = vld [vmem:[%s9 + $0xc] sm:$0xf]
        %v1256 = vld [vmem:[%s9 + $0x10] sm:$0xf]
        %v1257 = vld [vmem:[%s9 + $0x14] sm:$0xf]
        %v1258 = vld [vmem:[%s9 + $0x18] sm:$0xf]
        %v1259 = vld [vmem:[%s9 + $0x1c] sm:$0xf]
        %v1260 = vld [vmem:[%s9 + $0x20] sm:$0xf]
        %v1261 = vld [vmem:[%s9 + $0x24] sm:$0xf]
        %v1262 = vld [vmem:[%s9 + $0x28] sm:$0xf]
        %v1263 = vld [vmem:[%s9 + $0x2c] sm:$0xf]
        %v1264 = vld [vmem:[%s9 + $0x30] sm:$0xf]
        %v1265 = vld [vmem:[%s9 + $0x34] sm:$0xf]
        %v1266 = vld [vmem:[%s9 + $0x38] sm:$0xf]
        %v1267 = vld [vmem:[%s9 + $0x3c] sm:$0xf]
        %v1268 = vld [vmem:[%s9 + $0x40] sm:$0xf]
        %v1269 = vld [vmem:[%s9 + $0x44] sm:$0xf]
        %v1270 = vld [vmem:[%s9 + $0x48] sm:$0xf]
        %v1271 = vld [vmem:[%s9 + $0x4c] sm:$0xf]
        %v1272 = vld [vmem:[%s9 + $0x50] sm:$0xf]
        %v1273 = vld [vmem:[%s9 + $0x54] sm:$0xf]
        %v1274 = vld [vmem:[%s9 + $0x58] sm:$0xf]
        %v1275 = vld [vmem:[%s9 + $0x5c] sm:$0xf]
        %v1276 = vld [vmem:[%s1238] sm:$0x1f]
        %v1301 = vunpack.c.l.b16 %v1252
        %v1302 = vunpack.c.l.b16 %v1253
        %v1303 = vunpack.c.l.b16 %v1254
        %v1304 = vunpack.c.l.b16 %v1255
        %v1305 = vunpack.c.l.b16 %v1256
        %v1306 = vunpack.c.l.b16 %v1257
        %v1307 = vunpack.c.l.b16 %v1258
        %v1308 = vunpack.c.l.b16 %v1259
        %v1309 = vunpack.c.l.b16 %v1260
        %v1310 = vunpack.c.l.b16 %v1261
        %v1311 = vunpack.c.l.b16 %v1262
        %v1312 = vunpack.c.l.b16 %v1263
        %v1313 = vunpack.c.l.b16 %v1264
        %v1314 = vunpack.c.l.b16 %v1265
        %v1315 = vunpack.c.l.b16 %v1266
        %v1316 = vunpack.c.l.b16 %v1267
        %v1317 = vunpack.c.l.b16 %v1268
        %v1318 = vunpack.c.l.b16 %v1269
        %v1319 = vunpack.c.l.b16 %v1270
        %v1320 = vunpack.c.l.b16 %v1271
        %v1321 = vunpack.c.l.b16 %v1272
        %v1322 = vunpack.c.l.b16 %v1273
        %v1323 = vunpack.c.l.b16 %v1274
        %v1324 = vunpack.c.l.b16 %v1275
        %v1325 = vpack.c.b16 %v1302, %v1301
        %v1326 = vpack.c.b16 %v1304, %v1303
        %v1327 = vpack.c.b16 %v1306, %v1305
        %v1328 = vpack.c.b16 %v1308, %v1307
        %v1329 = vpack.c.b16 %v1310, %v1309
        %v1330 = vpack.c.b16 %v1312, %v1311
        %v1331 = vpack.c.b16 %v1314, %v1313
        %v1332 = vpack.c.b16 %v1316, %v1315
        %v1333 = vpack.c.b16 %v1318, %v1317
        %v1334 = vpack.c.b16 %v1320, %v1319
        %v1335 = vpack.c.b16 %v1322, %v1321
        %v1336 = vpack.c.b16 %v1324, %v1323
        %vm1349 = vcmask 523264
        %v1351 = vsel %vm1349, %v1251, 0
        %1353 = vmatpush.bf16.msra.mxu0 %v1332
        %1354 = vmatpush.bf16.msra.mxu0 %v1331
        %1355 = vmatpush.bf16.msra.mxu0 %v1330
        %1356 = vmatpush.bf16.msra.mxu0 %v1329
        %1357 = vmatpush.bf16.msra.mxu0 %v1328
        %1358 = vmatpush.bf16.msra.mxu0 %v1327
        %1359 = vmatpush.bf16.msra.mxu0 %v1326
        %1360 = vmatpush.bf16.msra.mxu0 %v1325
        %1361 = vmatmul.bf16.gmra.mxu0 %v1250
        %v1362 = vpop.f32.mrf.mxu0
        %v1363 = vadd.f32 %v1276, %v1362
        %v1364 = vpop.f32.mrf.mxu0
        %1365 = vdwg.mxu0
        %1366 = vmatpush.bf16.msra.mxu0 0
        %1367 = vmatpush.bf16.msra.mxu0 0
        %1368 = vmatpush.bf16.msra.mxu0 0
        %1369 = vmatpush.bf16.msra.mxu0 0
        %1370 = vmatpush.bf16.msra.mxu0 %v1336
        %1371 = vmatpush.bf16.msra.mxu0 %v1335
        %1372 = vmatpush.bf16.msra.mxu0 %v1334
        %1373 = vmatpush.bf16.msra.mxu0 %v1333
        %1374 = vmatmul.bf16.gmra.mxu0 %v1351
        %v1375 = vpop.f32.mrf.mxu0
        %v1376 = vadd.f32 %v1363, %v1375
        %v1377 = vpop.f32.mrf.mxu0
        %1378 = vdwg.mxu0
        %v1379 = vld [vmem:[%s11] sm:$0x1]
        %v1380 = vld [vmem:[%s13] sm:$0x1]
        %vm1381 = vcmask 258048
        %v1382 = vsel %vm1381, %v1376, 0.0
        %1383 = vadd.xlane.f32.xlu0 %v1382
        %v1384 = vpop.xlane.xlu0 %1383
        %v1385 = vrcp.pop 32.0
        %v1386 = vmul.f32 32.0, %v1385
        %v1387 = vsub.f32 1.0, %v1386
        %v1388 = vmul.f32 %v1385, %v1387
        %v1389 = vadd.f32 %v1385, %v1388
        %vm1390 = vweird.f32 %v1385
        %v1391 = vsel %vm1390, %v1385, %v1389
        %v1392 = vmul.f32 %v1384, %v1391
        %v1393 = vsub.f32 %v1376, %v1392
        %v1394 = vmul.f32 %v1393, %v1393
        %v1395 = vsel %vm1381, %v1394, 0.0
        %1396 = vadd.xlane.f32.xlu0 %v1395
        %v1397 = vpop.xlane.xlu0 %1396
        %v1398 = vmul.f32 %v1397, %v1391
        %v1399 = vadd.f32 %v1398, 1e-06
        %v1400 = vrsqrt.pop %v1399
        %v1401 = vmul.f32 %v1400, %v1399
        %v1402 = vmul.f32 %v1401, %v1400
        %v1403 = vmul.f32 0.5, %v1402
        %v1404 = vsub.f32 1.5, %v1403
        %v1405 = vmul.f32 %v1400, %v1404
        %vm1406 = vweird.f32 %v1399
        %vm1407 = vweird.f32 %v1400
        %vm1408 = vmor %vm1406, %vm1407
        %v1409 = vsel %vm1408, %v1400, %v1405
        %v1410 = vmul.f32 %v1393, %v1409
        %v1412 = vperm.slane %v1379, 0
        %v1414 = vmul.f32 %v1410, %v1412
        %v1416 = vperm.slane %v1380, 0
        %v1418 = vadd.f32 %v1414, %v1416
        %v1419 = vld [vmem:[%s15] sm:$0x1]
        %v1420 = vld [vmem:[%s17] sm:$0x1]
        %v1421 = vld [vmem:[%s19] sm:$0xf]
        %v1422 = vld [vmem:[%s19 + $0x4] sm:$0xf]
        %v1423 = vld [vmem:[%s19 + $0x8] sm:$0xf]
        %v1424 = vld [vmem:[%s19 + $0xc] sm:$0xf]
        %v1425 = vld [vmem:[%s21] sm:$0x1]
        %v1426 = vld [vmem:[%s23] sm:$0xf]
        %v1427 = vld [vmem:[%s23 + $0x4] sm:$0xf]
        %v1428 = vld [vmem:[%s23 + $0x8] sm:$0xf]
        %v1429 = vld [vmem:[%s23 + $0xc] sm:$0xf]
        %v1430 = vld [vmem:[%s25] sm:$0x1]
        %v1431 = vld [vmem:[%s27] sm:$0x1]
        %v1432 = vld [vmem:[%s29] sm:$0x1]
        %v1433 = vld [vmem:[%s31] sm:$0xf]
        %v1434 = vld [vmem:[%s31 + $0x4] sm:$0xf]
        %v1435 = vld [vmem:[%s31 + $0x8] sm:$0xf]
        %v1436 = vld [vmem:[%s31 + $0xc] sm:$0xf]
        %v1437 = vld [vmem:[%s33] sm:$0x1]
        %v1438 = vld [vmem:[%s35] sm:$0xf]
        %v1439 = vld [vmem:[%s35 + $0x4] sm:$0xf]
        %v1440 = vld [vmem:[%s35 + $0x8] sm:$0xf]
        %v1441 = vld [vmem:[%s35 + $0xc] sm:$0xf]
        %v1442 = vld [vmem:[%s35 + $0x10] sm:$0xf]
        %v1443 = vld [vmem:[%s35 + $0x14] sm:$0xf]
        %v1444 = vld [vmem:[%s35 + $0x18] sm:$0xf]
        %v1445 = vld [vmem:[%s35 + $0x1c] sm:$0xf]
        %v1446 = vld [vmem:[%s35 + $0x20] sm:$0xf]
        %v1447 = vld [vmem:[%s35 + $0x24] sm:$0xf]
        %v1448 = vld [vmem:[%s35 + $0x28] sm:$0xf]
        %v1449 = vld [vmem:[%s35 + $0x2c] sm:$0xf]
        %v1450 = vld [vmem:[%s35 + $0x30] sm:$0xf]
        %v1451 = vld [vmem:[%s35 + $0x34] sm:$0xf]
        %v1452 = vld [vmem:[%s35 + $0x38] sm:$0xf]
        %v1453 = vld [vmem:[%s35 + $0x3c] sm:$0xf]
        %v1454 = vld [vmem:[%s37] sm:$0x1]
        %v1455 = vsel %vm1381, %v1418, 0.0
        %1456 = vadd.xlane.f32.xlu0 %v1455
        %v1457 = vpop.xlane.xlu0 %1456
        %v1458 = vmul.f32 %v1457, %v1391
        %v1459 = vsub.f32 %v1418, %v1458
        %v1460 = vmul.f32 %v1459, %v1459
        %v1461 = vsel %vm1381, %v1460, 0.0
        %1462 = vadd.xlane.f32.xlu0 %v1461
        %v1463 = vpop.xlane.xlu0 %1462
        %v1464 = vmul.f32 %v1463, %v1391
        %v1465 = vadd.f32 %v1464, 1e-06
        %v1466 = vrsqrt.pop %v1465
        %v1467 = vmul.f32 %v1466, %v1465
        %v1468 = vmul.f32 %v1467, %v1466
        %v1469 = vmul.f32 0.5, %v1468
        %v1470 = vsub.f32 1.5, %v1469
        %v1471 = vmul.f32 %v1466, %v1470
        %vm1472 = vweird.f32 %v1465
        %vm1473 = vweird.f32 %v1466
        %vm1474 = vmor %vm1472, %vm1473
        %v1475 = vsel %vm1474, %v1466, %v1471
        %v1476 = vmul.f32 %v1459, %v1475
        %v1478 = vperm.slane %v1419, 0
        %v1480 = vmul.f32 %v1476, %v1478
        %v1482 = vperm.slane %v1420, 0
        %v1484 = vadd.f32 %v1480, %v1482
        %v1485 = vpack.c.bf16 %v1484, %v1484
        %v1487 = vperm.slane %v1425, 0
        %v1493 = vunpack.c.l.b16 %v1421
        %v1494 = vunpack.c.l.b16 %v1422
        %v1495 = vunpack.c.l.b16 %v1423
        %v1496 = vunpack.c.l.b16 %v1424
        %v1497 = vpack.c.b16 %v1494, %v1493
        %v1498 = vpack.c.b16 %v1496, %v1495
        %vm1501 = vcmask 261120
        %v1503 = vsel %vm1501, %v1485, 0
        %1505 = vmatpush.bf16.msra.mxu0 0
        %1506 = vmatpush.bf16.msra.mxu0 0
        %1507 = vmatpush.bf16.msra.mxu0 0
        %1508 = vmatpush.bf16.msra.mxu0 0
        %1509 = vmatpush.bf16.msra.mxu0 0
        %1510 = vmatpush.bf16.msra.mxu0 0
        %1511 = vmatpush.bf16.msra.mxu0 %v1498
        %1512 = vmatpush.bf16.msra.mxu0 %v1497
        %1513 = vmatmul.bf16.gmra.mxu0 %v1503
        %v1514 = vpop.f32.mrf.mxu0
        %v1515 = vadd.f32 %v1487, %v1514
        %v1516 = vpop.f32.mrf.mxu0
        %1517 = vdwg.mxu0
        %1519 = vrot.lane.b32.xlu0 %v1515, 120
        %v1520 = vpop.permute.xlu0 %1519
        %1522 = vrot.lane.b32.xlu0 %v1515, 112
        %v1523 = vpop.permute.xlu0 %1522
        %1525 = vrot.lane.b32.xlu0 %v1515, 104
        %v1526 = vpop.permute.xlu0 %1525
        %v1528 = vmul.f32 %v1515, 0.35355338
        %v1529 = vmul.f32 %v1520, 0.35355338
        %v1530 = vmul.f32 %v1523, 0.35355338
        %v1531 = vmul.f32 %v1526, 0.35355338
        %v1532 = vpack.c.bf16 %v1528, %v1528
        %v1533 = vpack.c.bf16 %v1529, %v1529
        %v1534 = vpack.c.bf16 %v1530, %v1530
        %v1535 = vpack.c.bf16 %v1531, %v1531
        %v1536 = vpack.c.bf16 %v1515, %v1515
        %v1537 = vpack.c.bf16 %v1520, %v1520
        %v1538 = vpack.c.bf16 %v1523, %v1523
        %v1539 = vpack.c.bf16 %v1526, %v1526
        %v1541 = vunpack.c.l.b16 %v1536
        %v1542 = vpack.c.b16 %v1541, %v1541
        %1543 = vrot.lane.b32.xlu0 %v1542, 96
        %v1544 = vpop.permute.xlu0 %1543
        %vm1545 = vcmask 64512
        %v1547 = vsel %vm1545, %v1532, 0
        %v1550 = vsel %vm1545, %v1544, 0
        %1552 = vmatpush.bf16.xpose.msra.mxu0 0
        %1553 = vmatpush.bf16.xpose.msra.mxu0 0
        %1554 = vmatpush.bf16.xpose.msra.mxu0 0
        %1555 = vmatpush.bf16.xpose.msra.mxu0 0
        %1556 = vmatpush.bf16.xpose.msra.mxu0 0
        %1557 = vmatpush.bf16.xpose.msra.mxu0 0
        %1558 = vmatpush.bf16.xpose.msra.mxu0 0
        %1559 = vmatpush.bf16.xpose.msra.mxu0 %v1550
        %1560 = vmatmul.bf16.gmra.mxu0 %v1547
        %v1561 = vpop.f32.mrf.mxu0
        %v1562 = vadd.f32 0.0, %v1561
        %v1563 = vpop.f32.mrf.mxu0
        %1564 = vdwg.mxu0
        %v1566 = vunpack.c.l.b16 %v1537
        %v1567 = vpack.c.b16 %v1566, %v1566
        %1568 = vrot.lane.b32.xlu0 %v1567, 96
        %v1569 = vpop.permute.xlu0 %1568
        %v1571 = vsel %vm1545, %v1533, 0
        %v1574 = vsel %vm1545, %v1569, 0
        %1576 = vmatpush.bf16.xpose.msra.mxu0 0
        %1577 = vmatpush.bf16.xpose.msra.mxu0 0
        %1578 = vmatpush.bf16.xpose.msra.mxu0 0
        %1579 = vmatpush.bf16.xpose.msra.mxu0 0
        %1580 = vmatpush.bf16.xpose.msra.mxu0 0
        %1581 = vmatpush.bf16.xpose.msra.mxu0 0
        %1582 = vmatpush.bf16.xpose.msra.mxu0 0
        %1583 = vmatpush.bf16.xpose.msra.mxu0 %v1574
        %1584 = vmatmul.bf16.gmra.mxu0 %v1571
        %v1585 = vpop.f32.mrf.mxu0
        %v1586 = vadd.f32 0.0, %v1585
        %v1587 = vpop.f32.mrf.mxu0
        %1588 = vdwg.mxu0
        %v1590 = vunpack.c.l.b16 %v1538
        %v1591 = vpack.c.b16 %v1590, %v1590
        %1592 = vrot.lane.b32.xlu0 %v1591, 96
        %v1593 = vpop.permute.xlu0 %1592
        %v1595 = vsel %vm1545, %v1534, 0
        %v1598 = vsel %vm1545, %v1593, 0
        %1600 = vmatpush.bf16.xpose.msra.mxu0 0
        %1601 = vmatpush.bf16.xpose.msra.mxu0 0
        %1602 = vmatpush.bf16.xpose.msra.mxu0 0
        %1603 = vmatpush.bf16.xpose.msra.mxu0 0
        %1604 = vmatpush.bf16.xpose.msra.mxu0 0
        %1605 = vmatpush.bf16.xpose.msra.mxu0 0
        %1606 = vmatpush.bf16.xpose.msra.mxu0 0
        %1607 = vmatpush.bf16.xpose.msra.mxu0 %v1598
        %1608 = vmatmul.bf16.gmra.mxu0 %v1595
        %v1609 = vpop.f32.mrf.mxu0
        %v1610 = vadd.f32 0.0, %v1609
        %v1611 = vpop.f32.mrf.mxu0
        %1612 = vdwg.mxu0
        %v1614 = vunpack.c.l.b16 %v1539
        %v1615 = vpack.c.b16 %v1614, %v1614
        %1616 = vrot.lane.b32.xlu0 %v1615, 96
        %v1617 = vpop.permute.xlu0 %1616
        %v1619 = vsel %vm1545, %v1535, 0
        %v1622 = vsel %vm1545, %v1617, 0
        %1624 = vmatpush.bf16.xpose.msra.mxu0 0
        %1625 = vmatpush.bf16.xpose.msra.mxu0 0
        %1626 = vmatpush.bf16.xpose.msra.mxu0 0
        %1627 = vmatpush.bf16.xpose.msra.mxu0 0
        %1628 = vmatpush.bf16.xpose.msra.mxu0 0
        %1629 = vmatpush.bf16.xpose.msra.mxu0 0
        %1630 = vmatpush.bf16.xpose.msra.mxu0 0
        %1631 = vmatpush.bf16.xpose.msra.mxu0 %v1622
        %1632 = vmatmul.bf16.gmra.mxu0 %v1619
        %v1633 = vpop.f32.mrf.mxu0
        %v1634 = vadd.f32 0.0, %v1633
        %v1635 = vpop.f32.mrf.mxu0
        %1636 = vdwg.mxu0
        %vm1637 = vcmask 36864
        %v1638 = vsel %vm1637, %v1562, -inf
        %1639 = vmax.xlane.f32.xlu0 %v1638
        %v1640 = vpop.xlane.xlu0 %1639
        %v1641 = vsel %vm1637, %v1586, -inf
        %1642 = vmax.xlane.f32.xlu0 %v1641
        %v1643 = vpop.xlane.xlu0 %1642
        %v1644 = vsel %vm1637, %v1610, -inf
        %1645 = vmax.xlane.f32.xlu0 %v1644
        %v1646 = vpop.xlane.xlu0 %1645
        %v1647 = vsel %vm1637, %v1634, -inf
        %1648 = vmax.xlane.f32.xlu0 %v1647
        %v1649 = vpop.xlane.xlu0 %1648
        %v1650 = vsub.f32 %v1562, %v1640
        %v1651 = vsub.f32 %v1586, %v1643
        %v1652 = vsub.f32 %v1610, %v1646
        %v1653 = vsub.f32 %v1634, %v1649
        %v1654 = vmul.f32 %v1650, 1.442695
        %v1655 = vpow.pop %v1654
        %v1656 = vmul.f32 %v1651, 1.442695
        %v1657 = vpow.pop %v1656
        %v1658 = vmul.f32 %v1652, 1.442695
        %v1659 = vpow.pop %v1658
        %v1660 = vmul.f32 %v1653, 1.442695
        %v1661 = vpow.pop %v1660
        %v1662 = vsel %vm1637, %v1655, 0.0
        %1663 = vadd.xlane.f32.xlu0 %v1662
        %v1664 = vpop.xlane.xlu0 %1663
        %v1665 = vsel %vm1637, %v1657, 0.0
        %1666 = vadd.xlane.f32.xlu0 %v1665
        %v1667 = vpop.xlane.xlu0 %1666
        %v1668 = vsel %vm1637, %v1659, 0.0
        %1669 = vadd.xlane.f32.xlu0 %v1668
        %v1670 = vpop.xlane.xlu0 %1669
        %v1671 = vsel %vm1637, %v1661, 0.0
        %1672 = vadd.xlane.f32.xlu0 %v1671
        %v1673 = vpop.xlane.xlu0 %1672
        %v1674 = vrcp.pop %v1664
        %v1675 = vrcp.pop %v1667
        %v1676 = vrcp.pop %v1670
        %v1677 = vrcp.pop %v1673
        %v1678 = vpack.c.bf16 %v1655, %v1655
        %v1679 = vpack.c.bf16 %v1657, %v1657
        %v1680 = vpack.c.bf16 %v1659, %v1659
        %v1681 = vpack.c.bf16 %v1661, %v1661
        %1682 = vrot.lane.b32.xlu0 %v1542, 64
        %v1683 = vpop.permute.xlu0 %1682
        %vm1684 = vcmask 39936
        %v1686 = vsel %vm1684, %v1678, 0
        %vm1688 = vcmask 1041408
        %vm1689 = vcmask 1042432
        %v1690 = vsel %vm1688, 4294967295, 65535
        %v1691 = vsel %vm1689, %v1690, 0
        %v1693 = vand.u32 %v1683, %v1691
        %1695 = vmatpush.bf16.msra.mxu0 0
        %1696 = vmatpush.bf16.msra.mxu0 0
        %1697 = vmatpush.bf16.msra.mxu0 0
        %1698 = vmatpush.bf16.msra.mxu0 0
        %1699 = vmatpush.bf16.msra.mxu0 0
        %1700 = vmatpush.bf16.msra.mxu0 0
        %1701 = vmatpush.bf16.msra.mxu0 0
        %1702 = vmatpush.bf16.msra.mxu0 %v1693
        %1703 = vmatmul.bf16.gmra.mxu0 %v1686
        %v1704 = vpop.f32.mrf.mxu0
        %v1705 = vadd.f32 0.0, %v1704
        %v1706 = vpop.f32.mrf.mxu0
        %1707 = vdwg.mxu0
        %1708 = vrot.lane.b32.xlu0 %v1567, 64
        %v1709 = vpop.permute.xlu0 %1708
        %v1711 = vsel %vm1684, %v1679, 0
        %v1714 = vand.u32 %v1709, %v1691
        %1716 = vmatpush.bf16.msra.mxu0 0
        %1717 = vmatpush.bf16.msra.mxu0 0
        %1718 = vmatpush.bf16.msra.mxu0 0
        %1719 = vmatpush.bf16.msra.mxu0 0
        %1720 = vmatpush.bf16.msra.mxu0 0
        %1721 = vmatpush.bf16.msra.mxu0 0
        %1722 = vmatpush.bf16.msra.mxu0 0
        %1723 = vmatpush.bf16.msra.mxu0 %v1714
        %1724 = vmatmul.bf16.gmra.mxu0 %v1711
        %v1725 = vpop.f32.mrf.mxu0
        %v1726 = vadd.f32 0.0, %v1725
        %v1727 = vpop.f32.mrf.mxu0
        %1728 = vdwg.mxu0
        %1729 = vrot.lane.b32.xlu0 %v1591, 64
        %v1730 = vpop.permute.xlu0 %1729
        %v1732 = vsel %vm1684, %v1680, 0
        %v1735 = vand.u32 %v1730, %v1691
        %1737 = vmatpush.bf16.msra.mxu0 0
        %1738 = vmatpush.bf16.msra.mxu0 0
        %1739 = vmatpush.bf16.msra.mxu0 0
        %1740 = vmatpush.bf16.msra.mxu0 0
        %1741 = vmatpush.bf16.msra.mxu0 0
        %1742 = vmatpush.bf16.msra.mxu0 0
        %1743 = vmatpush.bf16.msra.mxu0 0
        %1744 = vmatpush.bf16.msra.mxu0 %v1735
        %1745 = vmatmul.bf16.gmra.mxu0 %v1732
        %v1746 = vpop.f32.mrf.mxu0
        %v1747 = vadd.f32 0.0, %v1746
        %v1748 = vpop.f32.mrf.mxu0
        %1749 = vdwg.mxu0
        %1750 = vrot.lane.b32.xlu0 %v1615, 64
        %v1751 = vpop.permute.xlu0 %1750
        %v1753 = vsel %vm1684, %v1681, 0
        %v1756 = vand.u32 %v1751, %v1691
        %1758 = vmatpush.bf16.msra.mxu0 0
        %1759 = vmatpush.bf16.msra.mxu0 0
        %1760 = vmatpush.bf16.msra.mxu0 0
        %1761 = vmatpush.bf16.msra.mxu0 0
        %1762 = vmatpush.bf16.msra.mxu0 0
        %1763 = vmatpush.bf16.msra.mxu0 0
        %1764 = vmatpush.bf16.msra.mxu0 0
        %1765 = vmatpush.bf16.msra.mxu0 %v1756
        %1766 = vmatmul.bf16.gmra.mxu0 %v1753
        %v1767 = vpop.f32.mrf.mxu0
        %v1768 = vadd.f32 0.0, %v1767
        %v1769 = vpop.f32.mrf.mxu0
        %1770 = vdwg.mxu0
        %v1771 = vmul.f32 %v1705, %v1674
        %v1772 = vmul.f32 %v1726, %v1675
        %v1773 = vmul.f32 %v1747, %v1676
        %v1774 = vmul.f32 %v1768, %v1677
        %1776 = vrot.lane.b32.xlu0 %v1772, 8
        %v1777 = vpop.permute.xlu0 %1776
        %1780 = vrot.lane.b32.xlu0 %v1773, 16
        %v1781 = vpop.permute.xlu0 %1780
        %1784 = vrot.lane.b32.xlu0 %v1774, 24
        %v1785 = vpop.permute.xlu0 %1784
        %v1787 = vsel %vm1545, %v1771, %v1777
        %vm1788 = vcmask 130048
        %v1789 = vsel %vm1788, %v1787, %v1781
        %vm1790 = vcmask 195584
        %v1791 = vsel %vm1790, %v1789, %v1785
        %v1792 = vpack.c.bf16 %v1791, %v1791
        %v1797 = vunpack.c.l.b16 %v1426
        %v1798 = vunpack.c.l.b16 %v1427
        %v1799 = vunpack.c.l.b16 %v1428
        %v1800 = vunpack.c.l.b16 %v1429
        %v1801 = vpack.c.b16 %v1798, %v1797
        %v1802 = vpack.c.b16 %v1800, %v1799
        %v1806 = vsel %vm1501, %v1792, 0
        %1808 = vmatpush.bf16.msra.mxu0 0
        %1809 = vmatpush.bf16.msra.mxu0 0
        %1810 = vmatpush.bf16.msra.mxu0 0
        %1811 = vmatpush.bf16.msra.mxu0 0
        %1812 = vmatpush.bf16.msra.mxu0 0
        %1813 = vmatpush.bf16.msra.mxu0 0
        %1814 = vmatpush.bf16.msra.mxu0 %v1802
        %1815 = vmatpush.bf16.msra.mxu0 %v1801
        %1816 = vmatmul.bf16.gmra.mxu0 %v1806
        %v1817 = vpop.f32.mrf.mxu0
        %v1818 = vadd.f32 0.0, %v1817
        %v1819 = vpop.f32.mrf.mxu0
        %1820 = vdwg.mxu0
        %v1821 = vadd.f32 %v1418, %v1818
        %v1823 = vperm.slane %v1430, 0
        %v1825 = vadd.f32 %v1821, %v1823
        %v1826 = vsel %vm1381, %v1825, 0.0
        %1827 = vadd.xlane.f32.xlu0 %v1826
        %v1828 = vpop.xlane.xlu0 %1827
        %v1829 = vmul.f32 %v1828, %v1391
        %v1830 = vsub.f32 %v1825, %v1829
        %v1831 = vmul.f32 %v1830, %v1830
        %v1832 = vsel %vm1381, %v1831, 0.0
        %1833 = vadd.xlane.f32.xlu0 %v1832
        %v1834 = vpop.xlane.xlu0 %1833
        %v1835 = vmul.f32 %v1834, %v1391
        %v1836 = vadd.f32 %v1835, 1e-06
        %v1837 = vrsqrt.pop %v1836
        %v1838 = vmul.f32 %v1837, %v1836
        %v1839 = vmul.f32 %v1838, %v1837
        %v1840 = vmul.f32 0.5, %v1839
        %v1841 = vsub.f32 1.5, %v1840
        %v1842 = vmul.f32 %v1837, %v1841
        %vm1843 = vweird.f32 %v1836
        %vm1844 = vweird.f32 %v1837
        %vm1845 = vmor %vm1843, %vm1844
        %v1846 = vsel %vm1845, %v1837, %v1842
        %v1847 = vmul.f32 %v1830, %v1846
        %v1849 = vperm.slane %v1431, 0
        %v1851 = vmul.f32 %v1847, %v1849
        %v1853 = vperm.slane %v1432, 0
        %v1855 = vadd.f32 %v1851, %v1853
        %v1856 = vpack.c.bf16 %v1855, %v1855
        %v1858 = vperm.slane %v1437, 0
        %v1864 = vunpack.c.l.b16 %v1433
        %v1865 = vunpack.c.l.b16 %v1434
        %v1866 = vunpack.c.l.b16 %v1435
        %v1867 = vunpack.c.l.b16 %v1436
        %v1868 = vpack.c.b16 %v1865, %v1864
        %v1869 = vpack.c.b16 %v1867, %v1866
        %v1873 = vsel %vm1501, %v1856, 0
        %1875 = vmatpush.bf16.msra.mxu0 0
        %1876 = vmatpush.bf16.msra.mxu0 0
        %1877 = vmatpush.bf16.msra.mxu0 0
        %1878 = vmatpush.bf16.msra.mxu0 0
        %1879 = vmatpush.bf16.msra.mxu0 0
        %1880 = vmatpush.bf16.msra.mxu0 0
        %1881 = vmatpush.bf16.msra.mxu0 %v1869
        %1882 = vmatpush.bf16.msra.mxu0 %v1868
        %1883 = vmatmul.bf16.gmra.mxu0 %v1873
        %v1884 = vpop.f32.mrf.mxu0
        %v1885 = vadd.f32 %v1858, %v1884
        %v1886 = vpop.f32.mrf.mxu0
        %1887 = vdwg.mxu0
        %v1888 = vmul.f32 %v1885, 0.5
        %v1889 = vmul.f32 %v1885, 0.70710677
        %v1890 = vand.u32 2147483647, %v1889
        %v1891 = vmul.f32 %v1890, 0.3275911
        %v1892 = vadd.f32 %v1891, 1.0
        %v1893 = vrcp.pop %v1892
        %v1894 = vmul.f32 %v1893, 1.0614054
        %v1895 = vadd.f32 %v1894, -1.4531521
        %v1896 = vmul.f32 %v1895, %v1893
        %v1897 = vadd.f32 %v1896, 1.4214138
        %v1898 = vmul.f32 %v1897, %v1893
        %v1899 = vadd.f32 %v1898, -0.28449672
        %v1900 = vmul.f32 %v1899, %v1893
        %v1901 = vadd.f32 %v1900, 0.2548296
        %v1902 = vmul.f32 %v1901, %v1893
        %v1903 = vsub.f32 0.0, %v1890
        %v1904 = vmul.f32 %v1903, %v1890
        %v1905 = vmul.f32 %v1904, 1.442695
        %v1906 = vpow.pop %v1905
        %v1907 = vmul.f32 %v1902, %v1906
        %v1908 = vsub.f32 1.0, %v1907
        %vm1909 = vcmp.ge.f32.partialorder %v1889, 0.0
        %v1910 = vsub.f32 0.0, %v1908
        %v1911 = vsel %vm1909, %v1908, %v1910
        %v1912 = vadd.f32 %v1911, 1.0
        %v1913 = vmul.f32 %v1888, %v1912
        %v1914 = vpack.c.bf16 %v1913, %v1913
        %v1916 = vperm.slane %v1454, 0
        %v1934 = vunpack.c.l.b16 %v1438
        %v1935 = vunpack.c.l.b16 %v1439
        %v1936 = vunpack.c.l.b16 %v1440
        %v1937 = vunpack.c.l.b16 %v1441
        %v1938 = vunpack.c.l.b16 %v1442
        %v1939 = vunpack.c.l.b16 %v1443
        %v1940 = vunpack.c.l.b16 %v1444
        %v1941 = vunpack.c.l.b16 %v1445
        %v1942 = vunpack.c.l.b16 %v1446
        %v1943 = vunpack.c.l.b16 %v1447
        %v1944 = vunpack.c.l.b16 %v1448
        %v1945 = vunpack.c.l.b16 %v1449
        %v1946 = vunpack.c.l.b16 %v1450
        %v1947 = vunpack.c.l.b16 %v1451
        %v1948 = vunpack.c.l.b16 %v1452
        %v1949 = vunpack.c.l.b16 %v1453
        %v1950 = vpack.c.b16 %v1935, %v1934
        %v1951 = vpack.c.b16 %v1937, %v1936
        %v1952 = vpack.c.b16 %v1939, %v1938
        %v1953 = vpack.c.b16 %v1941, %v1940
        %v1954 = vpack.c.b16 %v1943, %v1942
        %v1955 = vpack.c.b16 %v1945, %v1944
        %v1956 = vpack.c.b16 %v1947, %v1946
        %v1957 = vpack.c.b16 %v1949, %v1948
        %1966 = vmatpush.bf16.msra.mxu0 %v1957
        %1967 = vmatpush.bf16.msra.mxu0 %v1956
        %1968 = vmatpush.bf16.msra.mxu0 %v1955
        %1969 = vmatpush.bf16.msra.mxu0 %v1954
        %1970 = vmatpush.bf16.msra.mxu0 %v1953
        %1971 = vmatpush.bf16.msra.mxu0 %v1952
        %1972 = vmatpush.bf16.msra.mxu0 %v1951
        %1973 = vmatpush.bf16.msra.mxu0 %v1950
        %1974 = vmatmul.bf16.gmra.mxu0 %v1914
        %v1975 = vpop.f32.mrf.mxu0
        %v1976 = vadd.f32 %v1916, %v1975
        %v1977 = vpop.f32.mrf.mxu0
        %1978 = vdwg.mxu0
        %v1979 = vadd.f32 %v1825, %v1976
        %s1980 = scalar_lea.vmem %s15, 1
        %v1981 = vld [vmem:[%s1980] sm:$0x1]
        %s1982 = scalar_lea.vmem %s17, 1
        %v1983 = vld [vmem:[%s1982] sm:$0x1]
        %s1984 = scalar_lea.vmem %s19, 16
        %v1985 = vld [vmem:[%s1984] sm:$0xf]
        %v1986 = vld [vmem:[%s1984 + $0x4] sm:$0xf]
        %v1987 = vld [vmem:[%s1984 + $0x8] sm:$0xf]
        %v1988 = vld [vmem:[%s1984 + $0xc] sm:$0xf]
        %s1989 = scalar_lea.vmem %s21, 1
        %v1990 = vld [vmem:[%s1989] sm:$0x1]
        %s1991 = scalar_lea.vmem %s23, 16
        %v1992 = vld [vmem:[%s1991] sm:$0xf]
        %v1993 = vld [vmem:[%s1991 + $0x4] sm:$0xf]
        %v1994 = vld [vmem:[%s1991 + $0x8] sm:$0xf]
        %v1995 = vld [vmem:[%s1991 + $0xc] sm:$0xf]
        %s1996 = scalar_lea.vmem %s25, 1
        %v1997 = vld [vmem:[%s1996] sm:$0x1]
        %s1998 = scalar_lea.vmem %s27, 1
        %v1999 = vld [vmem:[%s1998] sm:$0x1]
        %s2000 = scalar_lea.vmem %s29, 1
        %v2001 = vld [vmem:[%s2000] sm:$0x1]
        %s2002 = scalar_lea.vmem %s31, 16
        %v2003 = vld [vmem:[%s2002] sm:$0xf]
        %v2004 = vld [vmem:[%s2002 + $0x4] sm:$0xf]
        %v2005 = vld [vmem:[%s2002 + $0x8] sm:$0xf]
        %v2006 = vld [vmem:[%s2002 + $0xc] sm:$0xf]
        %s2007 = scalar_lea.vmem %s33, 1
        %v2008 = vld [vmem:[%s2007] sm:$0x1]
        %s2009 = scalar_lea.vmem %s35, 64
        %v2010 = vld [vmem:[%s2009] sm:$0xf]
        %v2011 = vld [vmem:[%s2009 + $0x4] sm:$0xf]
        %v2012 = vld [vmem:[%s2009 + $0x8] sm:$0xf]
        %v2013 = vld [vmem:[%s2009 + $0xc] sm:$0xf]
        %v2014 = vld [vmem:[%s2009 + $0x10] sm:$0xf]
        %v2015 = vld [vmem:[%s2009 + $0x14] sm:$0xf]
        %v2016 = vld [vmem:[%s2009 + $0x18] sm:$0xf]
        %v2017 = vld [vmem:[%s2009 + $0x1c] sm:$0xf]
        %v2018 = vld [vmem:[%s2009 + $0x20] sm:$0xf]
        %v2019 = vld [vmem:[%s2009 + $0x24] sm:$0xf]
        %v2020 = vld [vmem:[%s2009 + $0x28] sm:$0xf]
        %v2021 = vld [vmem:[%s2009 + $0x2c] sm:$0xf]
        %v2022 = vld [vmem:[%s2009 + $0x30] sm:$0xf]
        %v2023 = vld [vmem:[%s2009 + $0x34] sm:$0xf]
        %v2024 = vld [vmem:[%s2009 + $0x38] sm:$0xf]
        %v2025 = vld [vmem:[%s2009 + $0x3c] sm:$0xf]
        %s2026 = scalar_lea.vmem %s37, 1
        %v2027 = vld [vmem:[%s2026] sm:$0x1]
        %v2028 = vsel %vm1381, %v1979, 0.0
        %2029 = vadd.xlane.f32.xlu0 %v2028
        %v2030 = vpop.xlane.xlu0 %2029
        %v2031 = vmul.f32 %v2030, %v1391
        %v2032 = vsub.f32 %v1979, %v2031
        %v2033 = vmul.f32 %v2032, %v2032
        %v2034 = vsel %vm1381, %v2033, 0.0
        %2035 = vadd.xlane.f32.xlu0 %v2034
        %v2036 = vpop.xlane.xlu0 %2035
        %v2037 = vmul.f32 %v2036, %v1391
        %v2038 = vadd.f32 %v2037, 1e-06
        %v2039 = vrsqrt.pop %v2038
        %v2040 = vmul.f32 %v2039, %v2038
        %v2041 = vmul.f32 %v2040, %v2039
        %v2042 = vmul.f32 0.5, %v2041
        %v2043 = vsub.f32 1.5, %v2042
        %v2044 = vmul.f32 %v2039, %v2043
        %vm2045 = vweird.f32 %v2038
        %vm2046 = vweird.f32 %v2039
        %vm2047 = vmor %vm2045, %vm2046
        %v2048 = vsel %vm2047, %v2039, %v2044
        %v2049 = vmul.f32 %v2032, %v2048
        %v2051 = vperm.slane %v1981, 0
        %v2053 = vmul.f32 %v2049, %v2051
        %v2055 = vperm.slane %v1983, 0
        %v2057 = vadd.f32 %v2053, %v2055
        %v2058 = vpack.c.bf16 %v2057, %v2057
        %v2060 = vperm.slane %v1990, 0
        %v2066 = vunpack.c.l.b16 %v1985
        %v2067 = vunpack.c.l.b16 %v1986
        %v2068 = vunpack.c.l.b16 %v1987
        %v2069 = vunpack.c.l.b16 %v1988
        %v2070 = vpack.c.b16 %v2067, %v2066
        %v2071 = vpack.c.b16 %v2069, %v2068
        %v2075 = vsel %vm1501, %v2058, 0
        %2077 = vmatpush.bf16.msra.mxu0 0
        %2078 = vmatpush.bf16.msra.mxu0 0
        %2079 = vmatpush.bf16.msra.mxu0 0
        %2080 = vmatpush.bf16.msra.mxu0 0
        %2081 = vmatpush.bf16.msra.mxu0 0
        %2082 = vmatpush.bf16.msra.mxu0 0
        %2083 = vmatpush.bf16.msra.mxu0 %v2071
        %2084 = vmatpush.bf16.msra.mxu0 %v2070
        %2085 = vmatmul.bf16.gmra.mxu0 %v2075
        %v2086 = vpop.f32.mrf.mxu0
        %v2087 = vadd.f32 %v2060, %v2086
        %v2088 = vpop.f32.mrf.mxu0
        %2089 = vdwg.mxu0
        %2091 = vrot.lane.b32.xlu0 %v2087, 120
        %v2092 = vpop.permute.xlu0 %2091
        %2094 = vrot.lane.b32.xlu0 %v2087, 112
        %v2095 = vpop.permute.xlu0 %2094
        %2097 = vrot.lane.b32.xlu0 %v2087, 104
        %v2098 = vpop.permute.xlu0 %2097
        %v2100 = vmul.f32 %v2087, 0.35355338
        %v2101 = vmul.f32 %v2092, 0.35355338
        %v2102 = vmul.f32 %v2095, 0.35355338
        %v2103 = vmul.f32 %v2098, 0.35355338
        %v2104 = vpack.c.bf16 %v2100, %v2100
        %v2105 = vpack.c.bf16 %v2101, %v2101
        %v2106 = vpack.c.bf16 %v2102, %v2102
        %v2107 = vpack.c.bf16 %v2103, %v2103
        %v2108 = vpack.c.bf16 %v2087, %v2087
        %v2109 = vpack.c.bf16 %v2092, %v2092
        %v2110 = vpack.c.bf16 %v2095, %v2095
        %v2111 = vpack.c.bf16 %v2098, %v2098
        %v2113 = vunpack.c.l.b16 %v2108
        %v2114 = vpack.c.b16 %v2113, %v2113
        %2115 = vrot.lane.b32.xlu0 %v2114, 96
        %v2116 = vpop.permute.xlu0 %2115
        %v2118 = vsel %vm1545, %v2104, 0
        %v2121 = vsel %vm1545, %v2116, 0
        %2123 = vmatpush.bf16.xpose.msra.mxu0 0
        %2124 = vmatpush.bf16.xpose.msra.mxu0 0
        %2125 = vmatpush.bf16.xpose.msra.mxu0 0
        %2126 = vmatpush.bf16.xpose.msra.mxu0 0
        %2127 = vmatpush.bf16.xpose.msra.mxu0 0
        %2128 = vmatpush.bf16.xpose.msra.mxu0 0
        %2129 = vmatpush.bf16.xpose.msra.mxu0 0
        %2130 = vmatpush.bf16.xpose.msra.mxu0 %v2121
        %2131 = vmatmul.bf16.gmra.mxu0 %v2118
        %v2132 = vpop.f32.mrf.mxu0
        %v2133 = vadd.f32 0.0, %v2132
        %v2134 = vpop.f32.mrf.mxu0
        %2135 = vdwg.mxu0
        %v2137 = vunpack.c.l.b16 %v2109
        %v2138 = vpack.c.b16 %v2137, %v2137
        %2139 = vrot.lane.b32.xlu0 %v2138, 96
        %v2140 = vpop.permute.xlu0 %2139
        %v2142 = vsel %vm1545, %v2105, 0
        %v2145 = vsel %vm1545, %v2140, 0
        %2147 = vmatpush.bf16.xpose.msra.mxu0 0
        %2148 = vmatpush.bf16.xpose.msra.mxu0 0
        %2149 = vmatpush.bf16.xpose.msra.mxu0 0
        %2150 = vmatpush.bf16.xpose.msra.mxu0 0
        %2151 = vmatpush.bf16.xpose.msra.mxu0 0
        %2152 = vmatpush.bf16.xpose.msra.mxu0 0
        %2153 = vmatpush.bf16.xpose.msra.mxu0 0
        %2154 = vmatpush.bf16.xpose.msra.mxu0 %v2145
        %2155 = vmatmul.bf16.gmra.mxu0 %v2142
        %v2156 = vpop.f32.mrf.mxu0
        %v2157 = vadd.f32 0.0, %v2156
        %v2158 = vpop.f32.mrf.mxu0
        %2159 = vdwg.mxu0
        %v2161 = vunpack.c.l.b16 %v2110
        %v2162 = vpack.c.b16 %v2161, %v2161
        %2163 = vrot.lane.b32.xlu0 %v2162, 96
        %v2164 = vpop.permute.xlu0 %2163
        %v2166 = vsel %vm1545, %v2106, 0
        %v2169 = vsel %vm1545, %v2164, 0
        %2171 = vmatpush.bf16.xpose.msra.mxu0 0
        %2172 = vmatpush.bf16.xpose.msra.mxu0 0
        %2173 = vmatpush.bf16.xpose.msra.mxu0 0
        %2174 = vmatpush.bf16.xpose.msra.mxu0 0
        %2175 = vmatpush.bf16.xpose.msra.mxu0 0
        %2176 = vmatpush.bf16.xpose.msra.mxu0 0
        %2177 = vmatpush.bf16.xpose.msra.mxu0 0
        %2178 = vmatpush.bf16.xpose.msra.mxu0 %v2169
        %2179 = vmatmul.bf16.gmra.mxu0 %v2166
        %v2180 = vpop.f32.mrf.mxu0
        %v2181 = vadd.f32 0.0, %v2180
        %v2182 = vpop.f32.mrf.mxu0
        %2183 = vdwg.mxu0
        %v2185 = vunpack.c.l.b16 %v2111
        %v2186 = vpack.c.b16 %v2185, %v2185
        %2187 = vrot.lane.b32.xlu0 %v2186, 96
        %v2188 = vpop.permute.xlu0 %2187
        %v2190 = vsel %vm1545, %v2107, 0
        %v2193 = vsel %vm1545, %v2188, 0
        %2195 = vmatpush.bf16.xpose.msra.mxu0 0
        %2196 = vmatpush.bf16.xpose.msra.mxu0 0
        %2197 = vmatpush.bf16.xpose.msra.mxu0 0
        %2198 = vmatpush.bf16.xpose.msra.mxu0 0
        %2199 = vmatpush.bf16.xpose.msra.mxu0 0
        %2200 = vmatpush.bf16.xpose.msra.mxu0 0
        %2201 = vmatpush.bf16.xpose.msra.mxu0 0
        %2202 = vmatpush.bf16.xpose.msra.mxu0 %v2193
        %2203 = vmatmul.bf16.gmra.mxu0 %v2190
        %v2204 = vpop.f32.mrf.mxu0
        %v2205 = vadd.f32 0.0, %v2204
        %v2206 = vpop.f32.mrf.mxu0
        %2207 = vdwg.mxu0
        %v2208 = vsel %vm1637, %v2133, -inf
        %2209 = vmax.xlane.f32.xlu0 %v2208
        %v2210 = vpop.xlane.xlu0 %2209
        %v2211 = vsel %vm1637, %v2157, -inf
        %2212 = vmax.xlane.f32.xlu0 %v2211
        %v2213 = vpop.xlane.xlu0 %2212
        %v2214 = vsel %vm1637, %v2181, -inf
        %2215 = vmax.xlane.f32.xlu0 %v2214
        %v2216 = vpop.xlane.xlu0 %2215
        %v2217 = vsel %vm1637, %v2205, -inf
        %2218 = vmax.xlane.f32.xlu0 %v2217
        %v2219 = vpop.xlane.xlu0 %2218
        %v2220 = vsub.f32 %v2133, %v2210
        %v2221 = vsub.f32 %v2157, %v2213
        %v2222 = vsub.f32 %v2181, %v2216
        %v2223 = vsub.f32 %v2205, %v2219
        %v2224 = vmul.f32 %v2220, 1.442695
        %v2225 = vpow.pop %v2224
        %v2226 = vmul.f32 %v2221, 1.442695
        %v2227 = vpow.pop %v2226
        %v2228 = vmul.f32 %v2222, 1.442695
        %v2229 = vpow.pop %v2228
        %v2230 = vmul.f32 %v2223, 1.442695
        %v2231 = vpow.pop %v2230
        %v2232 = vsel %vm1637, %v2225, 0.0
        %2233 = vadd.xlane.f32.xlu0 %v2232
        %v2234 = vpop.xlane.xlu0 %2233
        %v2235 = vsel %vm1637, %v2227, 0.0
        %2236 = vadd.xlane.f32.xlu0 %v2235
        %v2237 = vpop.xlane.xlu0 %2236
        %v2238 = vsel %vm1637, %v2229, 0.0
        %2239 = vadd.xlane.f32.xlu0 %v2238
        %v2240 = vpop.xlane.xlu0 %2239
        %v2241 = vsel %vm1637, %v2231, 0.0
        %2242 = vadd.xlane.f32.xlu0 %v2241
        %v2243 = vpop.xlane.xlu0 %2242
        %v2244 = vrcp.pop %v2234
        %v2245 = vrcp.pop %v2237
        %v2246 = vrcp.pop %v2240
        %v2247 = vrcp.pop %v2243
        %v2248 = vpack.c.bf16 %v2225, %v2225
        %v2249 = vpack.c.bf16 %v2227, %v2227
        %v2250 = vpack.c.bf16 %v2229, %v2229
        %v2251 = vpack.c.bf16 %v2231, %v2231
        %2252 = vrot.lane.b32.xlu0 %v2114, 64
        %v2253 = vpop.permute.xlu0 %2252
        %v2255 = vsel %vm1684, %v2248, 0
        %v2258 = vand.u32 %v2253, %v1691
        %2260 = vmatpush.bf16.msra.mxu0 0
        %2261 = vmatpush.bf16.msra.mxu0 0
        %2262 = vmatpush.bf16.msra.mxu0 0
        %2263 = vmatpush.bf16.msra.mxu0 0
        %2264 = vmatpush.bf16.msra.mxu0 0
        %2265 = vmatpush.bf16.msra.mxu0 0
        %2266 = vmatpush.bf16.msra.mxu0 0
        %2267 = vmatpush.bf16.msra.mxu0 %v2258
        %2268 = vmatmul.bf16.gmra.mxu0 %v2255
        %v2269 = vpop.f32.mrf.mxu0
        %v2270 = vadd.f32 0.0, %v2269
        %v2271 = vpop.f32.mrf.mxu0
        %2272 = vdwg.mxu0
        %2273 = vrot.lane.b32.xlu0 %v2138, 64
        %v2274 = vpop.permute.xlu0 %2273
        %v2276 = vsel %vm1684, %v2249, 0
        %v2279 = vand.u32 %v2274, %v1691
        %2281 = vmatpush.bf16.msra.mxu0 0
        %2282 = vmatpush.bf16.msra.mxu0 0
        %2283 = vmatpush.bf16.msra.mxu0 0
        %2284 = vmatpush.bf16.msra.mxu0 0
        %2285 = vmatpush.bf16.msra.mxu0 0
        %2286 = vmatpush.bf16.msra.mxu0 0
        %2287 = vmatpush.bf16.msra.mxu0 0
        %2288 = vmatpush.bf16.msra.mxu0 %v2279
        %2289 = vmatmul.bf16.gmra.mxu0 %v2276
        %v2290 = vpop.f32.mrf.mxu0
        %v2291 = vadd.f32 0.0, %v2290
        %v2292 = vpop.f32.mrf.mxu0
        %2293 = vdwg.mxu0
        %2294 = vrot.lane.b32.xlu0 %v2162, 64
        %v2295 = vpop.permute.xlu0 %2294
        %v2297 = vsel %vm1684, %v2250, 0
        %v2300 = vand.u32 %v2295, %v1691
        %2302 = vmatpush.bf16.msra.mxu0 0
        %2303 = vmatpush.bf16.msra.mxu0 0
        %2304 = vmatpush.bf16.msra.mxu0 0
        %2305 = vmatpush.bf16.msra.mxu0 0
        %2306 = vmatpush.bf16.msra.mxu0 0
        %2307 = vmatpush.bf16.msra.mxu0 0
        %2308 = vmatpush.bf16.msra.mxu0 0
        %2309 = vmatpush.bf16.msra.mxu0 %v2300
        %2310 = vmatmul.bf16.gmra.mxu0 %v2297
        %v2311 = vpop.f32.mrf.mxu0
        %v2312 = vadd.f32 0.0, %v2311
        %v2313 = vpop.f32.mrf.mxu0
        %2314 = vdwg.mxu0
        %2315 = vrot.lane.b32.xlu0 %v2186, 64
        %v2316 = vpop.permute.xlu0 %2315
        %v2318 = vsel %vm1684, %v2251, 0
        %v2321 = vand.u32 %v2316, %v1691
        %2323 = vmatpush.bf16.msra.mxu0 0
        %2324 = vmatpush.bf16.msra.mxu0 0
        %2325 = vmatpush.bf16.msra.mxu0 0
        %2326 = vmatpush.bf16.msra.mxu0 0
        %2327 = vmatpush.bf16.msra.mxu0 0
        %2328 = vmatpush.bf16.msra.mxu0 0
        %2329 = vmatpush.bf16.msra.mxu0 0
        %2330 = vmatpush.bf16.msra.mxu0 %v2321
        %2331 = vmatmul.bf16.gmra.mxu0 %v2318
        %v2332 = vpop.f32.mrf.mxu0
        %v2333 = vadd.f32 0.0, %v2332
        %v2334 = vpop.f32.mrf.mxu0
        %2335 = vdwg.mxu0
        %v2336 = vmul.f32 %v2270, %v2244
        %v2337 = vmul.f32 %v2291, %v2245
        %v2338 = vmul.f32 %v2312, %v2246
        %v2339 = vmul.f32 %v2333, %v2247
        %2341 = vrot.lane.b32.xlu0 %v2337, 8
        %v2342 = vpop.permute.xlu0 %2341
        %2345 = vrot.lane.b32.xlu0 %v2338, 16
        %v2346 = vpop.permute.xlu0 %2345
        %2349 = vrot.lane.b32.xlu0 %v2339, 24
        %v2350 = vpop.permute.xlu0 %2349
        %v2352 = vsel %vm1545, %v2336, %v2342
        %v2353 = vsel %vm1788, %v2352, %v2346
        %v2354 = vsel %vm1790, %v2353, %v2350
        %v2355 = vpack.c.bf16 %v2354, %v2354
        %v2360 = vunpack.c.l.b16 %v1992
        %v2361 = vunpack.c.l.b16 %v1993
        %v2362 = vunpack.c.l.b16 %v1994
        %v2363 = vunpack.c.l.b16 %v1995
        %v2364 = vpack.c.b16 %v2361, %v2360
        %v2365 = vpack.c.b16 %v2363, %v2362
        %v2369 = vsel %vm1501, %v2355, 0
        %2371 = vmatpush.bf16.msra.mxu0 0
        %2372 = vmatpush.bf16.msra.mxu0 0
        %2373 = vmatpush.bf16.msra.mxu0 0
        %2374 = vmatpush.bf16.msra.mxu0 0
        %2375 = vmatpush.bf16.msra.mxu0 0
        %2376 = vmatpush.bf16.msra.mxu0 0
        %2377 = vmatpush.bf16.msra.mxu0 %v2365
        %2378 = vmatpush.bf16.msra.mxu0 %v2364
        %2379 = vmatmul.bf16.gmra.mxu0 %v2369
        %v2380 = vpop.f32.mrf.mxu0
        %v2381 = vadd.f32 0.0, %v2380
        %v2382 = vpop.f32.mrf.mxu0
        %2383 = vdwg.mxu0
        %v2384 = vadd.f32 %v1979, %v2381
        %v2386 = vperm.slane %v1997, 0
        %v2388 = vadd.f32 %v2384, %v2386
        %v2389 = vsel %vm1381, %v2388, 0.0
        %2390 = vadd.xlane.f32.xlu0 %v2389
        %v2391 = vpop.xlane.xlu0 %2390
        %v2392 = vmul.f32 %v2391, %v1391
        %v2393 = vsub.f32 %v2388, %v2392
        %v2394 = vmul.f32 %v2393, %v2393
        %v2395 = vsel %vm1381, %v2394, 0.0
        %2396 = vadd.xlane.f32.xlu0 %v2395
        %v2397 = vpop.xlane.xlu0 %2396
        %v2398 = vmul.f32 %v2397, %v1391
        %v2399 = vadd.f32 %v2398, 1e-06
        %v2400 = vrsqrt.pop %v2399
        %v2401 = vmul.f32 %v2400, %v2399
        %v2402 = vmul.f32 %v2401, %v2400
        %v2403 = vmul.f32 0.5, %v2402
        %v2404 = vsub.f32 1.5, %v2403
        %v2405 = vmul.f32 %v2400, %v2404
        %vm2406 = vweird.f32 %v2399
        %vm2407 = vweird.f32 %v2400
        %vm2408 = vmor %vm2406, %vm2407
        %v2409 = vsel %vm2408, %v2400, %v2405
        %v2410 = vmul.f32 %v2393, %v2409
        %v2412 = vperm.slane %v1999, 0
        %v2414 = vmul.f32 %v2410, %v2412
        %v2416 = vperm.slane %v2001, 0
        %v2418 = vadd.f32 %v2414, %v2416
        %v2419 = vpack.c.bf16 %v2418, %v2418
        %v2421 = vperm.slane %v2008, 0
        %v2427 = vunpack.c.l.b16 %v2003
        %v2428 = vunpack.c.l.b16 %v2004
        %v2429 = vunpack.c.l.b16 %v2005
        %v2430 = vunpack.c.l.b16 %v2006
        %v2431 = vpack.c.b16 %v2428, %v2427
        %v2432 = vpack.c.b16 %v2430, %v2429
        %v2436 = vsel %vm1501, %v2419, 0
        %2438 = vmatpush.bf16.msra.mxu0 0
        %2439 = vmatpush.bf16.msra.mxu0 0
        %2440 = vmatpush.bf16.msra.mxu0 0
        %2441 = vmatpush.bf16.msra.mxu0 0
        %2442 = vmatpush.bf16.msra.mxu0 0
        %2443 = vmatpush.bf16.msra.mxu0 0
        %2444 = vmatpush.bf16.msra.mxu0 %v2432
        %2445 = vmatpush.bf16.msra.mxu0 %v2431
        %2446 = vmatmul.bf16.gmra.mxu0 %v2436
        %v2447 = vpop.f32.mrf.mxu0
        %v2448 = vadd.f32 %v2421, %v2447
        %v2449 = vpop.f32.mrf.mxu0
        %2450 = vdwg.mxu0
        %v2451 = vmul.f32 %v2448, 0.5
        %v2452 = vmul.f32 %v2448, 0.70710677
        %v2453 = vand.u32 2147483647, %v2452
        %v2454 = vmul.f32 %v2453, 0.3275911
        %v2455 = vadd.f32 %v2454, 1.0
        %v2456 = vrcp.pop %v2455
        %v2457 = vmul.f32 %v2456, 1.0614054
        %v2458 = vadd.f32 %v2457, -1.4531521
        %v2459 = vmul.f32 %v2458, %v2456
        %v2460 = vadd.f32 %v2459, 1.4214138
        %v2461 = vmul.f32 %v2460, %v2456
        %v2462 = vadd.f32 %v2461, -0.28449672
        %v2463 = vmul.f32 %v2462, %v2456
        %v2464 = vadd.f32 %v2463, 0.2548296
        %v2465 = vmul.f32 %v2464, %v2456
        %v2466 = vsub.f32 0.0, %v2453
        %v2467 = vmul.f32 %v2466, %v2453
        %v2468 = vmul.f32 %v2467, 1.442695
        %v2469 = vpow.pop %v2468
        %v2470 = vmul.f32 %v2465, %v2469
        %v2471 = vsub.f32 1.0, %v2470
        %vm2472 = vcmp.ge.f32.partialorder %v2452, 0.0
        %v2473 = vsub.f32 0.0, %v2471
        %v2474 = vsel %vm2472, %v2471, %v2473
        %v2475 = vadd.f32 %v2474, 1.0
        %v2476 = vmul.f32 %v2451, %v2475
        %v2477 = vpack.c.bf16 %v2476, %v2476
        %v2479 = vperm.slane %v2027, 0
        %v2497 = vunpack.c.l.b16 %v2010
        %v2498 = vunpack.c.l.b16 %v2011
        %v2499 = vunpack.c.l.b16 %v2012
        %v2500 = vunpack.c.l.b16 %v2013
        %v2501 = vunpack.c.l.b16 %v2014
        %v2502 = vunpack.c.l.b16 %v2015
        %v2503 = vunpack.c.l.b16 %v2016
        %v2504 = vunpack.c.l.b16 %v2017
        %v2505 = vunpack.c.l.b16 %v2018
        %v2506 = vunpack.c.l.b16 %v2019
        %v2507 = vunpack.c.l.b16 %v2020
        %v2508 = vunpack.c.l.b16 %v2021
        %v2509 = vunpack.c.l.b16 %v2022
        %v2510 = vunpack.c.l.b16 %v2023
        %v2511 = vunpack.c.l.b16 %v2024
        %v2512 = vunpack.c.l.b16 %v2025
        %v2513 = vpack.c.b16 %v2498, %v2497
        %v2514 = vpack.c.b16 %v2500, %v2499
        %v2515 = vpack.c.b16 %v2502, %v2501
        %v2516 = vpack.c.b16 %v2504, %v2503
        %v2517 = vpack.c.b16 %v2506, %v2505
        %v2518 = vpack.c.b16 %v2508, %v2507
        %v2519 = vpack.c.b16 %v2510, %v2509
        %v2520 = vpack.c.b16 %v2512, %v2511
        %2529 = vmatpush.bf16.msra.mxu0 %v2520
        %2530 = vmatpush.bf16.msra.mxu0 %v2519
        %2531 = vmatpush.bf16.msra.mxu0 %v2518
        %2532 = vmatpush.bf16.msra.mxu0 %v2517
        %2533 = vmatpush.bf16.msra.mxu0 %v2516
        %2534 = vmatpush.bf16.msra.mxu0 %v2515
        %2535 = vmatpush.bf16.msra.mxu0 %v2514
        %2536 = vmatpush.bf16.msra.mxu0 %v2513
        %2537 = vmatmul.bf16.gmra.mxu0 %v2477
        %v2538 = vpop.f32.mrf.mxu0
        %v2539 = vadd.f32 %v2479, %v2538
        %v2540 = vpop.f32.mrf.mxu0
        %2541 = vdwg.mxu0
        %v2542 = vadd.f32 %v2388, %v2539
        %v2543 = vld [vmem:[%s39] sm:$0x1]
        %v2544 = vld [vmem:[%s41] sm:$0x1]
        %vm2545 = vcmask 258049
        %v2546 = vsel %vm2545, %v2542, 0.0
        %2547 = vadd.xlane.f32.xlu0 %v2546
        %v2548 = vpop.xlane.xlu0 %2547
        %v2549 = vmul.f32 %v2548, %v1391
        %v2550 = vsub.f32 %v2542, %v2549
        %v2551 = vmul.f32 %v2550, %v2550
        %v2552 = vsel %vm2545, %v2551, 0.0
        %2553 = vadd.xlane.f32.xlu0 %v2552
        %v2554 = vpop.xlane.xlu0 %2553
        %v2555 = vmul.f32 %v2554, %v1391
        %v2556 = vadd.f32 %v2555, 1e-06
        %v2557 = vrsqrt.pop %v2556
        %v2558 = vmul.f32 %v2557, %v2556
        %v2559 = vmul.f32 %v2558, %v2557
        %v2560 = vmul.f32 0.5, %v2559
        %v2561 = vsub.f32 1.5, %v2560
        %v2562 = vmul.f32 %v2557, %v2561
        %vm2563 = vweird.f32 %v2556
        %vm2564 = vweird.f32 %v2557
        %vm2565 = vmor %vm2563, %vm2564
        %v2566 = vsel %vm2565, %v2557, %v2562
        %v2567 = vmul.f32 %v2550, %v2566
        %v2569 = vperm.slane %v2543, 0
        %v2571 = vmul.f32 %v2567, %v2569
        %v2573 = vperm.slane %v2544, 0
        %v2575 = vadd.f32 %v2571, %v2573
        %v2576 = vpack.c.bf16 %v2575, %v2575
        %v2577 = vld [vmem:[%s43] sm:$0xf]
        %v2578 = vld [vmem:[%s43 + $0x4] sm:$0xf]
        %v2579 = vld [vmem:[%s43 + $0x8] sm:$0xf]
        %v2580 = vld [vmem:[%s43 + $0xc] sm:$0xf]
        %v2581 = vld [vmem:[%s1242] sm:$0xf]
        %v2583 = vshrl.u32 %v2576, 16
        %v2585 = vshll.u32 %v2576, 16
        %v2587 = vrot.slane %v2585, 1
        %v2588 = vor.u32 %v2583, %v2587
        %v2593 = vunpack.c.l.b16 %v2577
        %v2594 = vunpack.c.l.b16 %v2578
        %v2595 = vunpack.c.l.b16 %v2579
        %v2596 = vunpack.c.l.b16 %v2580
        %v2597 = vpack.c.b16 %v2594, %v2593
        %v2598 = vpack.c.b16 %v2596, %v2595
        %v2602 = vsel %vm1501, %v2588, 0
        %2604 = vmatpush.bf16.msra.mxu0 0
        %2605 = vmatpush.bf16.msra.mxu0 0
        %2606 = vmatpush.bf16.msra.mxu0 0
        %2607 = vmatpush.bf16.msra.mxu0 0
        %2608 = vmatpush.bf16.msra.mxu0 0
        %2609 = vmatpush.bf16.msra.mxu0 0
        %2610 = vmatpush.bf16.msra.mxu0 %v2598
        %2611 = vmatpush.bf16.msra.mxu0 %v2597
        %2612 = vmatmul.bf16.gmra.mxu0 %v2602
        %v2613 = vpop.f32.mrf.mxu0
        %v2614 = vadd.f32 %v2581, %v2613
        %v2615 = vpop.f32.mrf.mxu0
        %2616 = vdwg.mxu0
        %v2617 = vld [vmem:[%s45] sm:$0x1]
        %v2618 = vld [vmem:[%s1246] sm:$0xf]
        %v2620 = vperm.slane %v2617, 0
        %v2622 = vadd.f32 %v2620, %v2618
        %v2624 = vrot.slane %v2622, 4
        %vm2626 = vcmask 1043456
        %v2627 = vsel %vm2626, %v2614, %v2624
        %v2628 = vld [vmem:[%s47] sm:$0x1]
        %v2629 = vld [vmem:[%s49] sm:$0x1]
        %v2630 = vld [vmem:[%s51] sm:$0xf]
        %v2631 = vld [vmem:[%s51 + $0x4] sm:$0xf]
        %v2632 = vld [vmem:[%s51 + $0x8] sm:$0xf]
        %v2633 = vld [vmem:[%s51 + $0xc] sm:$0xf]
        %v2634 = vld [vmem:[%s53] sm:$0x1]
        %v2635 = vld [vmem:[%s55] sm:$0xf]
        %v2636 = vld [vmem:[%s55 + $0x4] sm:$0xf]
        %v2637 = vld [vmem:[%s55 + $0x8] sm:$0xf]
        %v2638 = vld [vmem:[%s55 + $0xc] sm:$0xf]
        %v2639 = vld [vmem:[%s57] sm:$0x1]
        %v2640 = vld [vmem:[%s59] sm:$0x1]
        %v2641 = vld [vmem:[%s61] sm:$0x1]
        %v2642 = vld [vmem:[%s63] sm:$0xf]
        %v2643 = vld [vmem:[%s63 + $0x4] sm:$0xf]
        %v2644 = vld [vmem:[%s63 + $0x8] sm:$0xf]
        %v2645 = vld [vmem:[%s63 + $0xc] sm:$0xf]
        %v2646 = vld [vmem:[%s65] sm:$0x1]
        %v2647 = vld [vmem:[%s67] sm:$0xf]
        %v2648 = vld [vmem:[%s67 + $0x4] sm:$0xf]
        %v2649 = vld [vmem:[%s67 + $0x8] sm:$0xf]
        %v2650 = vld [vmem:[%s67 + $0xc] sm:$0xf]
        %v2651 = vld [vmem:[%s67 + $0x10] sm:$0xf]
        %v2652 = vld [vmem:[%s67 + $0x14] sm:$0xf]
        %v2653 = vld [vmem:[%s67 + $0x18] sm:$0xf]
        %v2654 = vld [vmem:[%s67 + $0x1c] sm:$0xf]
        %v2655 = vld [vmem:[%s67 + $0x20] sm:$0xf]
        %v2656 = vld [vmem:[%s67 + $0x24] sm:$0xf]
        %v2657 = vld [vmem:[%s67 + $0x28] sm:$0xf]
        %v2658 = vld [vmem:[%s67 + $0x2c] sm:$0xf]
        %v2659 = vld [vmem:[%s67 + $0x30] sm:$0xf]
        %v2660 = vld [vmem:[%s67 + $0x34] sm:$0xf]
        %v2661 = vld [vmem:[%s67 + $0x38] sm:$0xf]
        %v2662 = vld [vmem:[%s67 + $0x3c] sm:$0xf]
        %v2663 = vld [vmem:[%s69] sm:$0x1]
        %v2664 = vsel %vm1501, %v2627, 0.0
        %2665 = vadd.xlane.f32.xlu0 %v2664
        %v2666 = vpop.xlane.xlu0 %2665
        %v2667 = vmul.f32 %v2666, %v1391
        %v2668 = vsub.f32 %v2627, %v2667
        %v2669 = vmul.f32 %v2668, %v2668
        %v2670 = vsel %vm1501, %v2669, 0.0
        %2671 = vadd.xlane.f32.xlu0 %v2670
        %v2672 = vpop.xlane.xlu0 %2671
        %v2673 = vmul.f32 %v2672, %v1391
        %v2674 = vadd.f32 %v2673, 1e-05
        %v2675 = vrsqrt.pop %v2674
        %v2676 = vmul.f32 %v2675, %v2674
        %v2677 = vmul.f32 %v2676, %v2675
        %v2678 = vmul.f32 0.5, %v2677
        %v2679 = vsub.f32 1.5, %v2678
        %v2680 = vmul.f32 %v2675, %v2679
        %vm2681 = vweird.f32 %v2674
        %vm2682 = vweird.f32 %v2675
        %vm2683 = vmor %vm2681, %vm2682
        %v2684 = vsel %vm2683, %v2675, %v2680
        %v2685 = vmul.f32 %v2668, %v2684
        %v2687 = vperm.slane %v2628, 0
        %v2689 = vmul.f32 %v2685, %v2687
        %v2691 = vperm.slane %v2629, 0
        %v2693 = vadd.f32 %v2689, %v2691
        %v2694 = vpack.c.bf16 %v2693, %v2693
        %v2696 = vperm.slane %v2634, 0
        %v2702 = vunpack.c.l.b16 %v2630
        %v2703 = vunpack.c.l.b16 %v2631
        %v2704 = vunpack.c.l.b16 %v2632
        %v2705 = vunpack.c.l.b16 %v2633
        %v2706 = vpack.c.b16 %v2703, %v2702
        %v2707 = vpack.c.b16 %v2705, %v2704
        %v2711 = vsel %vm1501, %v2694, 0
        %2713 = vmatpush.bf16.msra.mxu0 0
        %2714 = vmatpush.bf16.msra.mxu0 0
        %2715 = vmatpush.bf16.msra.mxu0 0
        %2716 = vmatpush.bf16.msra.mxu0 0
        %2717 = vmatpush.bf16.msra.mxu0 0
        %2718 = vmatpush.bf16.msra.mxu0 0
        %2719 = vmatpush.bf16.msra.mxu0 %v2707
        %2720 = vmatpush.bf16.msra.mxu0 %v2706
        %2721 = vmatmul.bf16.gmra.mxu0 %v2711
        %v2722 = vpop.f32.mrf.mxu0
        %v2723 = vadd.f32 %v2696, %v2722
        %v2724 = vpop.f32.mrf.mxu0
        %2725 = vdwg.mxu0
        %2727 = vrot.lane.b32.xlu0 %v2723, 120
        %v2728 = vpop.permute.xlu0 %2727
        %2730 = vrot.lane.b32.xlu0 %v2723, 112
        %v2731 = vpop.permute.xlu0 %2730
        %2733 = vrot.lane.b32.xlu0 %v2723, 104
        %v2734 = vpop.permute.xlu0 %2733
        %v2736 = vmul.f32 %v2723, 0.35355338
        %v2737 = vmul.f32 %v2728, 0.35355338
        %v2738 = vmul.f32 %v2731, 0.35355338
        %v2739 = vmul.f32 %v2734, 0.35355338
        %v2740 = vpack.c.bf16 %v2736, %v2736
        %v2741 = vpack.c.bf16 %v2737, %v2737
        %v2742 = vpack.c.bf16 %v2738, %v2738
        %v2743 = vpack.c.bf16 %v2739, %v2739
        %v2744 = vpack.c.bf16 %v2723, %v2723
        %v2745 = vpack.c.bf16 %v2728, %v2728
        %v2746 = vpack.c.bf16 %v2731, %v2731
        %v2747 = vpack.c.bf16 %v2734, %v2734
        %v2749 = vunpack.c.l.b16 %v2744
        %v2750 = vpack.c.b16 %v2749, %v2749
        %2751 = vrot.lane.b32.xlu0 %v2750, 96
        %v2752 = vpop.permute.xlu0 %2751
        %v2754 = vsel %vm1545, %v2740, 0
        %v2757 = vsel %vm1545, %v2752, 0
        %2759 = vmatpush.bf16.xpose.msra.mxu0 0
        %2760 = vmatpush.bf16.xpose.msra.mxu0 0
        %2761 = vmatpush.bf16.xpose.msra.mxu0 0
        %2762 = vmatpush.bf16.xpose.msra.mxu0 0
        %2763 = vmatpush.bf16.xpose.msra.mxu0 0
        %2764 = vmatpush.bf16.xpose.msra.mxu0 0
        %2765 = vmatpush.bf16.xpose.msra.mxu0 0
        %2766 = vmatpush.bf16.xpose.msra.mxu0 %v2757
        %2767 = vmatmul.bf16.gmra.mxu0 %v2754
        %v2768 = vpop.f32.mrf.mxu0
        %v2769 = vadd.f32 0.0, %v2768
        %v2770 = vpop.f32.mrf.mxu0
        %2771 = vdwg.mxu0
        %v2773 = vunpack.c.l.b16 %v2745
        %v2774 = vpack.c.b16 %v2773, %v2773
        %2775 = vrot.lane.b32.xlu0 %v2774, 96
        %v2776 = vpop.permute.xlu0 %2775
        %v2778 = vsel %vm1545, %v2741, 0
        %v2781 = vsel %vm1545, %v2776, 0
        %2783 = vmatpush.bf16.xpose.msra.mxu0 0
        %2784 = vmatpush.bf16.xpose.msra.mxu0 0
        %2785 = vmatpush.bf16.xpose.msra.mxu0 0
        %2786 = vmatpush.bf16.xpose.msra.mxu0 0
        %2787 = vmatpush.bf16.xpose.msra.mxu0 0
        %2788 = vmatpush.bf16.xpose.msra.mxu0 0
        %2789 = vmatpush.bf16.xpose.msra.mxu0 0
        %2790 = vmatpush.bf16.xpose.msra.mxu0 %v2781
        %2791 = vmatmul.bf16.gmra.mxu0 %v2778
        %v2792 = vpop.f32.mrf.mxu0
        %v2793 = vadd.f32 0.0, %v2792
        %v2794 = vpop.f32.mrf.mxu0
        %2795 = vdwg.mxu0
        %v2797 = vunpack.c.l.b16 %v2746
        %v2798 = vpack.c.b16 %v2797, %v2797
        %2799 = vrot.lane.b32.xlu0 %v2798, 96
        %v2800 = vpop.permute.xlu0 %2799
        %v2802 = vsel %vm1545, %v2742, 0
        %v2805 = vsel %vm1545, %v2800, 0
        %2807 = vmatpush.bf16.xpose.msra.mxu0 0
        %2808 = vmatpush.bf16.xpose.msra.mxu0 0
        %2809 = vmatpush.bf16.xpose.msra.mxu0 0
        %2810 = vmatpush.bf16.xpose.msra.mxu0 0
        %2811 = vmatpush.bf16.xpose.msra.mxu0 0
        %2812 = vmatpush.bf16.xpose.msra.mxu0 0
        %2813 = vmatpush.bf16.xpose.msra.mxu0 0
        %2814 = vmatpush.bf16.xpose.msra.mxu0 %v2805
        %2815 = vmatmul.bf16.gmra.mxu0 %v2802
        %v2816 = vpop.f32.mrf.mxu0
        %v2817 = vadd.f32 0.0, %v2816
        %v2818 = vpop.f32.mrf.mxu0
        %2819 = vdwg.mxu0
        %v2821 = vunpack.c.l.b16 %v2747
        %v2822 = vpack.c.b16 %v2821, %v2821
        %2823 = vrot.lane.b32.xlu0 %v2822, 96
        %v2824 = vpop.permute.xlu0 %2823
        %v2826 = vsel %vm1545, %v2743, 0
        %v2829 = vsel %vm1545, %v2824, 0
        %2831 = vmatpush.bf16.xpose.msra.mxu0 0
        %2832 = vmatpush.bf16.xpose.msra.mxu0 0
        %2833 = vmatpush.bf16.xpose.msra.mxu0 0
        %2834 = vmatpush.bf16.xpose.msra.mxu0 0
        %2835 = vmatpush.bf16.xpose.msra.mxu0 0
        %2836 = vmatpush.bf16.xpose.msra.mxu0 0
        %2837 = vmatpush.bf16.xpose.msra.mxu0 0
        %2838 = vmatpush.bf16.xpose.msra.mxu0 %v2829
        %2839 = vmatmul.bf16.gmra.mxu0 %v2826
        %v2840 = vpop.f32.mrf.mxu0
        %v2841 = vadd.f32 0.0, %v2840
        %v2842 = vpop.f32.mrf.mxu0
        %2843 = vdwg.mxu0
        %v2844 = vsel %vm1545, %v2769, -inf
        %2845 = vmax.xlane.f32.xlu0 %v2844
        %v2846 = vpop.xlane.xlu0 %2845
        %v2847 = vsel %vm1545, %v2793, -inf
        %2848 = vmax.xlane.f32.xlu0 %v2847
        %v2849 = vpop.xlane.xlu0 %2848
        %v2850 = vsel %vm1545, %v2817, -inf
        %2851 = vmax.xlane.f32.xlu0 %v2850
        %v2852 = vpop.xlane.xlu0 %2851
        %v2853 = vsel %vm1545, %v2841, -inf
        %2854 = vmax.xlane.f32.xlu0 %v2853
        %v2855 = vpop.xlane.xlu0 %2854
        %v2856 = vsub.f32 %v2769, %v2846
        %v2857 = vsub.f32 %v2793, %v2849
        %v2858 = vsub.f32 %v2817, %v2852
        %v2859 = vsub.f32 %v2841, %v2855
        %v2860 = vmul.f32 %v2856, 1.442695
        %v2861 = vpow.pop %v2860
        %v2862 = vmul.f32 %v2857, 1.442695
        %v2863 = vpow.pop %v2862
        %v2864 = vmul.f32 %v2858, 1.442695
        %v2865 = vpow.pop %v2864
        %v2866 = vmul.f32 %v2859, 1.442695
        %v2867 = vpow.pop %v2866
        %v2868 = vsel %vm1545, %v2861, 0.0
        %2869 = vadd.xlane.f32.xlu0 %v2868
        %v2870 = vpop.xlane.xlu0 %2869
        %v2871 = vsel %vm1545, %v2863, 0.0
        %2872 = vadd.xlane.f32.xlu0 %v2871
        %v2873 = vpop.xlane.xlu0 %2872
        %v2874 = vsel %vm1545, %v2865, 0.0
        %2875 = vadd.xlane.f32.xlu0 %v2874
        %v2876 = vpop.xlane.xlu0 %2875
        %v2877 = vsel %vm1545, %v2867, 0.0
        %2878 = vadd.xlane.f32.xlu0 %v2877
        %v2879 = vpop.xlane.xlu0 %2878
        %v2880 = vrcp.pop %v2870
        %v2881 = vrcp.pop %v2873
        %v2882 = vrcp.pop %v2876
        %v2883 = vrcp.pop %v2879
        %v2884 = vpack.c.bf16 %v2861, %v2861
        %v2885 = vpack.c.bf16 %v2863, %v2863
        %v2886 = vpack.c.bf16 %v2865, %v2865
        %v2887 = vpack.c.bf16 %v2867, %v2867
        %2888 = vrot.lane.b32.xlu0 %v2750, 64
        %v2889 = vpop.permute.xlu0 %2888
        %v2891 = vsel %vm1545, %v2884, 0
        %v2894 = vsel %vm2626, %v2889, 0
        %2896 = vmatpush.bf16.msra.mxu0 0
        %2897 = vmatpush.bf16.msra.mxu0 0
        %2898 = vmatpush.bf16.msra.mxu0 0
        %2899 = vmatpush.bf16.msra.mxu0 0
        %2900 = vmatpush.bf16.msra.mxu0 0
        %2901 = vmatpush.bf16.msra.mxu0 0
        %2902 = vmatpush.bf16.msra.mxu0 0
        %2903 = vmatpush.bf16.msra.mxu0 %v2894
        %2904 = vmatmul.bf16.gmra.mxu0 %v2891
        %v2905 = vpop.f32.mrf.mxu0
        %v2906 = vadd.f32 0.0, %v2905
        %v2907 = vpop.f32.mrf.mxu0
        %2908 = vdwg.mxu0
        %2909 = vrot.lane.b32.xlu0 %v2774, 64
        %v2910 = vpop.permute.xlu0 %2909
        %v2912 = vsel %vm1545, %v2885, 0
        %v2915 = vsel %vm2626, %v2910, 0
        %2917 = vmatpush.bf16.msra.mxu0 0
        %2918 = vmatpush.bf16.msra.mxu0 0
        %2919 = vmatpush.bf16.msra.mxu0 0
        %2920 = vmatpush.bf16.msra.mxu0 0
        %2921 = vmatpush.bf16.msra.mxu0 0
        %2922 = vmatpush.bf16.msra.mxu0 0
        %2923 = vmatpush.bf16.msra.mxu0 0
        %2924 = vmatpush.bf16.msra.mxu0 %v2915
        %2925 = vmatmul.bf16.gmra.mxu0 %v2912
        %v2926 = vpop.f32.mrf.mxu0
        %v2927 = vadd.f32 0.0, %v2926
        %v2928 = vpop.f32.mrf.mxu0
        %2929 = vdwg.mxu0
        %2930 = vrot.lane.b32.xlu0 %v2798, 64
        %v2931 = vpop.permute.xlu0 %2930
        %v2933 = vsel %vm1545, %v2886, 0
        %v2936 = vsel %vm2626, %v2931, 0
        %2938 = vmatpush.bf16.msra.mxu0 0
        %2939 = vmatpush.bf16.msra.mxu0 0
        %2940 = vmatpush.bf16.msra.mxu0 0
        %2941 = vmatpush.bf16.msra.mxu0 0
        %2942 = vmatpush.bf16.msra.mxu0 0
        %2943 = vmatpush.bf16.msra.mxu0 0
        %2944 = vmatpush.bf16.msra.mxu0 0
        %2945 = vmatpush.bf16.msra.mxu0 %v2936
        %2946 = vmatmul.bf16.gmra.mxu0 %v2933
        %v2947 = vpop.f32.mrf.mxu0
        %v2948 = vadd.f32 0.0, %v2947
        %v2949 = vpop.f32.mrf.mxu0
        %2950 = vdwg.mxu0
        %2951 = vrot.lane.b32.xlu0 %v2822, 64
        %v2952 = vpop.permute.xlu0 %2951
        %v2954 = vsel %vm1545, %v2887, 0
        %v2957 = vsel %vm2626, %v2952, 0
        %2959 = vmatpush.bf16.msra.mxu0 0
        %2960 = vmatpush.bf16.msra.mxu0 0
        %2961 = vmatpush.bf16.msra.mxu0 0
        %2962 = vmatpush.bf16.msra.mxu0 0
        %2963 = vmatpush.bf16.msra.mxu0 0
        %2964 = vmatpush.bf16.msra.mxu0 0
        %2965 = vmatpush.bf16.msra.mxu0 0
        %2966 = vmatpush.bf16.msra.mxu0 %v2957
        %2967 = vmatmul.bf16.gmra.mxu0 %v2954
        %v2968 = vpop.f32.mrf.mxu0
        %v2969 = vadd.f32 0.0, %v2968
        %v2970 = vpop.f32.mrf.mxu0
        %2971 = vdwg.mxu0
        %v2972 = vmul.f32 %v2906, %v2880
        %v2973 = vmul.f32 %v2927, %v2881
        %v2974 = vmul.f32 %v2948, %v2882
        %v2975 = vmul.f32 %v2969, %v2883
        %2977 = vrot.lane.b32.xlu0 %v2973, 8
        %v2978 = vpop.permute.xlu0 %2977
        %2981 = vrot.lane.b32.xlu0 %v2974, 16
        %v2982 = vpop.permute.xlu0 %2981
        %2985 = vrot.lane.b32.xlu0 %v2975, 24
        %v2986 = vpop.permute.xlu0 %2985
        %v2988 = vsel %vm1545, %v2972, %v2978
        %v2989 = vsel %vm1788, %v2988, %v2982
        %v2990 = vsel %vm1790, %v2989, %v2986
        %v2991 = vpack.c.bf16 %v2990, %v2990
        %v2996 = vunpack.c.l.b16 %v2635
        %v2997 = vunpack.c.l.b16 %v2636
        %v2998 = vunpack.c.l.b16 %v2637
        %v2999 = vunpack.c.l.b16 %v2638
        %v3000 = vpack.c.b16 %v2997, %v2996
        %v3001 = vpack.c.b16 %v2999, %v2998
        %v3005 = vsel %vm1501, %v2991, 0
        %3007 = vmatpush.bf16.msra.mxu0 0
        %3008 = vmatpush.bf16.msra.mxu0 0
        %3009 = vmatpush.bf16.msra.mxu0 0
        %3010 = vmatpush.bf16.msra.mxu0 0
        %3011 = vmatpush.bf16.msra.mxu0 0
        %3012 = vmatpush.bf16.msra.mxu0 0
        %3013 = vmatpush.bf16.msra.mxu0 %v3001
        %3014 = vmatpush.bf16.msra.mxu0 %v3000
        %3015 = vmatmul.bf16.gmra.mxu0 %v3005
        %v3016 = vpop.f32.mrf.mxu0
        %v3017 = vadd.f32 0.0, %v3016
        %v3018 = vpop.f32.mrf.mxu0
        %3019 = vdwg.mxu0
        %v3020 = vadd.f32 %v2627, %v3017
        %v3022 = vperm.slane %v2639, 0
        %v3024 = vadd.f32 %v3020, %v3022
        %v3025 = vsel %vm1501, %v3024, 0.0
        %3026 = vadd.xlane.f32.xlu0 %v3025
        %v3027 = vpop.xlane.xlu0 %3026
        %v3028 = vmul.f32 %v3027, %v1391
        %v3029 = vsub.f32 %v3024, %v3028
        %v3030 = vmul.f32 %v3029, %v3029
        %v3031 = vsel %vm1501, %v3030, 0.0
        %3032 = vadd.xlane.f32.xlu0 %v3031
        %v3033 = vpop.xlane.xlu0 %3032
        %v3034 = vmul.f32 %v3033, %v1391
        %v3035 = vadd.f32 %v3034, 1e-05
        %v3036 = vrsqrt.pop %v3035
        %v3037 = vmul.f32 %v3036, %v3035
        %v3038 = vmul.f32 %v3037, %v3036
        %v3039 = vmul.f32 0.5, %v3038
        %v3040 = vsub.f32 1.5, %v3039
        %v3041 = vmul.f32 %v3036, %v3040
        %vm3042 = vweird.f32 %v3035
        %vm3043 = vweird.f32 %v3036
        %vm3044 = vmor %vm3042, %vm3043
        %v3045 = vsel %vm3044, %v3036, %v3041
        %v3046 = vmul.f32 %v3029, %v3045
        %v3048 = vperm.slane %v2640, 0
        %v3050 = vmul.f32 %v3046, %v3048
        %v3052 = vperm.slane %v2641, 0
        %v3054 = vadd.f32 %v3050, %v3052
        %v3055 = vpack.c.bf16 %v3054, %v3054
        %v3057 = vperm.slane %v2646, 0
        %v3063 = vunpack.c.l.b16 %v2642
        %v3064 = vunpack.c.l.b16 %v2643
        %v3065 = vunpack.c.l.b16 %v2644
        %v3066 = vunpack.c.l.b16 %v2645
        %v3067 = vpack.c.b16 %v3064, %v3063
        %v3068 = vpack.c.b16 %v3066, %v3065
        %v3072 = vsel %vm1501, %v3055, 0
        %3074 = vmatpush.bf16.msra.mxu0 0
        %3075 = vmatpush.bf16.msra.mxu0 0
        %3076 = vmatpush.bf16.msra.mxu0 0
        %3077 = vmatpush.bf16.msra.mxu0 0
        %3078 = vmatpush.bf16.msra.mxu0 0
        %3079 = vmatpush.bf16.msra.mxu0 0
        %3080 = vmatpush.bf16.msra.mxu0 %v3068
        %3081 = vmatpush.bf16.msra.mxu0 %v3067
        %3082 = vmatmul.bf16.gmra.mxu0 %v3072
        %v3083 = vpop.f32.mrf.mxu0
        %v3084 = vadd.f32 %v3057, %v3083
        %v3085 = vpop.f32.mrf.mxu0
        %3086 = vdwg.mxu0
        %v3087 = vmul.f32 %v3084, 0.5
        %v3088 = vmul.f32 %v3084, 0.70710677
        %v3089 = vand.u32 2147483647, %v3088
        %v3090 = vmul.f32 %v3089, 0.3275911
        %v3091 = vadd.f32 %v3090, 1.0
        %v3092 = vrcp.pop %v3091
        %v3093 = vmul.f32 %v3092, 1.0614054
        %v3094 = vadd.f32 %v3093, -1.4531521
        %v3095 = vmul.f32 %v3094, %v3092
        %v3096 = vadd.f32 %v3095, 1.4214138
        %v3097 = vmul.f32 %v3096, %v3092
        %v3098 = vadd.f32 %v3097, -0.28449672
        %v3099 = vmul.f32 %v3098, %v3092
        %v3100 = vadd.f32 %v3099, 0.2548296
        %v3101 = vmul.f32 %v3100, %v3092
        %v3102 = vsub.f32 0.0, %v3089
        %v3103 = vmul.f32 %v3102, %v3089
        %v3104 = vmul.f32 %v3103, 1.442695
        %v3105 = vpow.pop %v3104
        %v3106 = vmul.f32 %v3101, %v3105
        %v3107 = vsub.f32 1.0, %v3106
        %vm3108 = vcmp.ge.f32.partialorder %v3088, 0.0
        %v3109 = vsub.f32 0.0, %v3107
        %v3110 = vsel %vm3108, %v3107, %v3109
        %v3111 = vadd.f32 %v3110, 1.0
        %v3112 = vmul.f32 %v3087, %v3111
        %v3113 = vpack.c.bf16 %v3112, %v3112
        %v3115 = vperm.slane %v2663, 0
        %v3133 = vunpack.c.l.b16 %v2647
        %v3134 = vunpack.c.l.b16 %v2648
        %v3135 = vunpack.c.l.b16 %v2649
        %v3136 = vunpack.c.l.b16 %v2650
        %v3137 = vunpack.c.l.b16 %v2651
        %v3138 = vunpack.c.l.b16 %v2652
        %v3139 = vunpack.c.l.b16 %v2653
        %v3140 = vunpack.c.l.b16 %v2654
        %v3141 = vunpack.c.l.b16 %v2655
        %v3142 = vunpack.c.l.b16 %v2656
        %v3143 = vunpack.c.l.b16 %v2657
        %v3144 = vunpack.c.l.b16 %v2658
        %v3145 = vunpack.c.l.b16 %v2659
        %v3146 = vunpack.c.l.b16 %v2660
        %v3147 = vunpack.c.l.b16 %v2661
        %v3148 = vunpack.c.l.b16 %v2662
        %v3149 = vpack.c.b16 %v3134, %v3133
        %v3150 = vpack.c.b16 %v3136, %v3135
        %v3151 = vpack.c.b16 %v3138, %v3137
        %v3152 = vpack.c.b16 %v3140, %v3139
        %v3153 = vpack.c.b16 %v3142, %v3141
        %v3154 = vpack.c.b16 %v3144, %v3143
        %v3155 = vpack.c.b16 %v3146, %v3145
        %v3156 = vpack.c.b16 %v3148, %v3147
        %3165 = vmatpush.bf16.msra.mxu0 %v3156
        %3166 = vmatpush.bf16.msra.mxu0 %v3155
        %3167 = vmatpush.bf16.msra.mxu0 %v3154
        %3168 = vmatpush.bf16.msra.mxu0 %v3153
        %3169 = vmatpush.bf16.msra.mxu0 %v3152
        %3170 = vmatpush.bf16.msra.mxu0 %v3151
        %3171 = vmatpush.bf16.msra.mxu0 %v3150
        %3172 = vmatpush.bf16.msra.mxu0 %v3149
        %3173 = vmatmul.bf16.gmra.mxu0 %v3113
        %v3174 = vpop.f32.mrf.mxu0
        %v3175 = vadd.f32 %v3115, %v3174
        %v3176 = vpop.f32.mrf.mxu0
        %3177 = vdwg.mxu0
        %v3178 = vadd.f32 %v3024, %v3175
        %s3179 = scalar_lea.vmem %s47, 1
        %v3180 = vld [vmem:[%s3179] sm:$0x1]
        %s3181 = scalar_lea.vmem %s49, 1
        %v3182 = vld [vmem:[%s3181] sm:$0x1]
        %s3183 = scalar_lea.vmem %s51, 16
        %v3184 = vld [vmem:[%s3183] sm:$0xf]
        %v3185 = vld [vmem:[%s3183 + $0x4] sm:$0xf]
        %v3186 = vld [vmem:[%s3183 + $0x8] sm:$0xf]
        %v3187 = vld [vmem:[%s3183 + $0xc] sm:$0xf]
        %s3188 = scalar_lea.vmem %s53, 1
        %v3189 = vld [vmem:[%s3188] sm:$0x1]
        %s3190 = scalar_lea.vmem %s55, 16
        %v3191 = vld [vmem:[%s3190] sm:$0xf]
        %v3192 = vld [vmem:[%s3190 + $0x4] sm:$0xf]
        %v3193 = vld [vmem:[%s3190 + $0x8] sm:$0xf]
        %v3194 = vld [vmem:[%s3190 + $0xc] sm:$0xf]
        %s3195 = scalar_lea.vmem %s57, 1
        %v3196 = vld [vmem:[%s3195] sm:$0x1]
        %s3197 = scalar_lea.vmem %s59, 1
        %v3198 = vld [vmem:[%s3197] sm:$0x1]
        %s3199 = scalar_lea.vmem %s61, 1
        %v3200 = vld [vmem:[%s3199] sm:$0x1]
        %s3201 = scalar_lea.vmem %s63, 16
        %v3202 = vld [vmem:[%s3201] sm:$0xf]
        %v3203 = vld [vmem:[%s3201 + $0x4] sm:$0xf]
        %v3204 = vld [vmem:[%s3201 + $0x8] sm:$0xf]
        %v3205 = vld [vmem:[%s3201 + $0xc] sm:$0xf]
        %s3206 = scalar_lea.vmem %s65, 1
        %v3207 = vld [vmem:[%s3206] sm:$0x1]
        %s3208 = scalar_lea.vmem %s67, 64
        %v3209 = vld [vmem:[%s3208] sm:$0xf]
        %v3210 = vld [vmem:[%s3208 + $0x4] sm:$0xf]
        %v3211 = vld [vmem:[%s3208 + $0x8] sm:$0xf]
        %v3212 = vld [vmem:[%s3208 + $0xc] sm:$0xf]
        %v3213 = vld [vmem:[%s3208 + $0x10] sm:$0xf]
        %v3214 = vld [vmem:[%s3208 + $0x14] sm:$0xf]
        %v3215 = vld [vmem:[%s3208 + $0x18] sm:$0xf]
        %v3216 = vld [vmem:[%s3208 + $0x1c] sm:$0xf]
        %v3217 = vld [vmem:[%s3208 + $0x20] sm:$0xf]
        %v3218 = vld [vmem:[%s3208 + $0x24] sm:$0xf]
        %v3219 = vld [vmem:[%s3208 + $0x28] sm:$0xf]
        %v3220 = vld [vmem:[%s3208 + $0x2c] sm:$0xf]
        %v3221 = vld [vmem:[%s3208 + $0x30] sm:$0xf]
        %v3222 = vld [vmem:[%s3208 + $0x34] sm:$0xf]
        %v3223 = vld [vmem:[%s3208 + $0x38] sm:$0xf]
        %v3224 = vld [vmem:[%s3208 + $0x3c] sm:$0xf]
        %s3225 = scalar_lea.vmem %s69, 1
        %v3226 = vld [vmem:[%s3225] sm:$0x1]
        %v3227 = vsel %vm1501, %v3178, 0.0
        %3228 = vadd.xlane.f32.xlu0 %v3227
        %v3229 = vpop.xlane.xlu0 %3228
        %v3230 = vmul.f32 %v3229, %v1391
        %v3231 = vsub.f32 %v3178, %v3230
        %v3232 = vmul.f32 %v3231, %v3231
        %v3233 = vsel %vm1501, %v3232, 0.0
        %3234 = vadd.xlane.f32.xlu0 %v3233
        %v3235 = vpop.xlane.xlu0 %3234
        %v3236 = vmul.f32 %v3235, %v1391
        %v3237 = vadd.f32 %v3236, 1e-05
        %v3238 = vrsqrt.pop %v3237
        %v3239 = vmul.f32 %v3238, %v3237
        %v3240 = vmul.f32 %v3239, %v3238
        %v3241 = vmul.f32 0.5, %v3240
        %v3242 = vsub.f32 1.5, %v3241
        %v3243 = vmul.f32 %v3238, %v3242
        %vm3244 = vweird.f32 %v3237
        %vm3245 = vweird.f32 %v3238
        %vm3246 = vmor %vm3244, %vm3245
        %v3247 = vsel %vm3246, %v3238, %v3243
        %v3248 = vmul.f32 %v3231, %v3247
        %v3250 = vperm.slane %v3180, 0
        %v3252 = vmul.f32 %v3248, %v3250
        %v3254 = vperm.slane %v3182, 0
        %v3256 = vadd.f32 %v3252, %v3254
        %v3257 = vpack.c.bf16 %v3256, %v3256
        %v3259 = vperm.slane %v3189, 0
        %v3265 = vunpack.c.l.b16 %v3184
        %v3266 = vunpack.c.l.b16 %v3185
        %v3267 = vunpack.c.l.b16 %v3186
        %v3268 = vunpack.c.l.b16 %v3187
        %v3269 = vpack.c.b16 %v3266, %v3265
        %v3270 = vpack.c.b16 %v3268, %v3267
        %v3274 = vsel %vm1501, %v3257, 0
        %3276 = vmatpush.bf16.msra.mxu0 0
        %3277 = vmatpush.bf16.msra.mxu0 0
        %3278 = vmatpush.bf16.msra.mxu0 0
        %3279 = vmatpush.bf16.msra.mxu0 0
        %3280 = vmatpush.bf16.msra.mxu0 0
        %3281 = vmatpush.bf16.msra.mxu0 0
        %3282 = vmatpush.bf16.msra.mxu0 %v3270
        %3283 = vmatpush.bf16.msra.mxu0 %v3269
        %3284 = vmatmul.bf16.gmra.mxu0 %v3274
        %v3285 = vpop.f32.mrf.mxu0
        %v3286 = vadd.f32 %v3259, %v3285
        %v3287 = vpop.f32.mrf.mxu0
        %3288 = vdwg.mxu0
        %3290 = vrot.lane.b32.xlu0 %v3286, 120
        %v3291 = vpop.permute.xlu0 %3290
        %3293 = vrot.lane.b32.xlu0 %v3286, 112
        %v3294 = vpop.permute.xlu0 %3293
        %3296 = vrot.lane.b32.xlu0 %v3286, 104
        %v3297 = vpop.permute.xlu0 %3296
        %v3299 = vmul.f32 %v3286, 0.35355338
        %v3300 = vmul.f32 %v3291, 0.35355338
        %v3301 = vmul.f32 %v3294, 0.35355338
        %v3302 = vmul.f32 %v3297, 0.35355338
        %v3303 = vpack.c.bf16 %v3299, %v3299
        %v3304 = vpack.c.bf16 %v3300, %v3300
        %v3305 = vpack.c.bf16 %v3301, %v3301
        %v3306 = vpack.c.bf16 %v3302, %v3302
        %v3307 = vpack.c.bf16 %v3286, %v3286
        %v3308 = vpack.c.bf16 %v3291, %v3291
        %v3309 = vpack.c.bf16 %v3294, %v3294
        %v3310 = vpack.c.bf16 %v3297, %v3297
        %v3312 = vunpack.c.l.b16 %v3307
        %v3313 = vpack.c.b16 %v3312, %v3312
        %3314 = vrot.lane.b32.xlu0 %v3313, 96
        %v3315 = vpop.permute.xlu0 %3314
        %v3317 = vsel %vm1545, %v3303, 0
        %v3320 = vsel %vm1545, %v3315, 0
        %3322 = vmatpush.bf16.xpose.msra.mxu0 0
        %3323 = vmatpush.bf16.xpose.msra.mxu0 0
        %3324 = vmatpush.bf16.xpose.msra.mxu0 0
        %3325 = vmatpush.bf16.xpose.msra.mxu0 0
        %3326 = vmatpush.bf16.xpose.msra.mxu0 0
        %3327 = vmatpush.bf16.xpose.msra.mxu0 0
        %3328 = vmatpush.bf16.xpose.msra.mxu0 0
        %3329 = vmatpush.bf16.xpose.msra.mxu0 %v3320
        %3330 = vmatmul.bf16.gmra.mxu0 %v3317
        %v3331 = vpop.f32.mrf.mxu0
        %v3332 = vadd.f32 0.0, %v3331
        %v3333 = vpop.f32.mrf.mxu0
        %3334 = vdwg.mxu0
        %v3336 = vunpack.c.l.b16 %v3308
        %v3337 = vpack.c.b16 %v3336, %v3336
        %3338 = vrot.lane.b32.xlu0 %v3337, 96
        %v3339 = vpop.permute.xlu0 %3338
        %v3341 = vsel %vm1545, %v3304, 0
        %v3344 = vsel %vm1545, %v3339, 0
        %3346 = vmatpush.bf16.xpose.msra.mxu0 0
        %3347 = vmatpush.bf16.xpose.msra.mxu0 0
        %3348 = vmatpush.bf16.xpose.msra.mxu0 0
        %3349 = vmatpush.bf16.xpose.msra.mxu0 0
        %3350 = vmatpush.bf16.xpose.msra.mxu0 0
        %3351 = vmatpush.bf16.xpose.msra.mxu0 0
        %3352 = vmatpush.bf16.xpose.msra.mxu0 0
        %3353 = vmatpush.bf16.xpose.msra.mxu0 %v3344
        %3354 = vmatmul.bf16.gmra.mxu0 %v3341
        %v3355 = vpop.f32.mrf.mxu0
        %v3356 = vadd.f32 0.0, %v3355
        %v3357 = vpop.f32.mrf.mxu0
        %3358 = vdwg.mxu0
        %v3360 = vunpack.c.l.b16 %v3309
        %v3361 = vpack.c.b16 %v3360, %v3360
        %3362 = vrot.lane.b32.xlu0 %v3361, 96
        %v3363 = vpop.permute.xlu0 %3362
        %v3365 = vsel %vm1545, %v3305, 0
        %v3368 = vsel %vm1545, %v3363, 0
        %3370 = vmatpush.bf16.xpose.msra.mxu0 0
        %3371 = vmatpush.bf16.xpose.msra.mxu0 0
        %3372 = vmatpush.bf16.xpose.msra.mxu0 0
        %3373 = vmatpush.bf16.xpose.msra.mxu0 0
        %3374 = vmatpush.bf16.xpose.msra.mxu0 0
        %3375 = vmatpush.bf16.xpose.msra.mxu0 0
        %3376 = vmatpush.bf16.xpose.msra.mxu0 0
        %3377 = vmatpush.bf16.xpose.msra.mxu0 %v3368
        %3378 = vmatmul.bf16.gmra.mxu0 %v3365
        %v3379 = vpop.f32.mrf.mxu0
        %v3380 = vadd.f32 0.0, %v3379
        %v3381 = vpop.f32.mrf.mxu0
        %3382 = vdwg.mxu0
        %v3384 = vunpack.c.l.b16 %v3310
        %v3385 = vpack.c.b16 %v3384, %v3384
        %3386 = vrot.lane.b32.xlu0 %v3385, 96
        %v3387 = vpop.permute.xlu0 %3386
        %v3389 = vsel %vm1545, %v3306, 0
        %v3392 = vsel %vm1545, %v3387, 0
        %3394 = vmatpush.bf16.xpose.msra.mxu0 0
        %3395 = vmatpush.bf16.xpose.msra.mxu0 0
        %3396 = vmatpush.bf16.xpose.msra.mxu0 0
        %3397 = vmatpush.bf16.xpose.msra.mxu0 0
        %3398 = vmatpush.bf16.xpose.msra.mxu0 0
        %3399 = vmatpush.bf16.xpose.msra.mxu0 0
        %3400 = vmatpush.bf16.xpose.msra.mxu0 0
        %3401 = vmatpush.bf16.xpose.msra.mxu0 %v3392
        %3402 = vmatmul.bf16.gmra.mxu0 %v3389
        %v3403 = vpop.f32.mrf.mxu0
        %v3404 = vadd.f32 0.0, %v3403
        %v3405 = vpop.f32.mrf.mxu0
        %3406 = vdwg.mxu0
        %v3407 = vsel %vm1545, %v3332, -inf
        %3408 = vmax.xlane.f32.xlu0 %v3407
        %v3409 = vpop.xlane.xlu0 %3408
        %v3410 = vsel %vm1545, %v3356, -inf
        %3411 = vmax.xlane.f32.xlu0 %v3410
        %v3412 = vpop.xlane.xlu0 %3411
        %v3413 = vsel %vm1545, %v3380, -inf
        %3414 = vmax.xlane.f32.xlu0 %v3413
        %v3415 = vpop.xlane.xlu0 %3414
        %v3416 = vsel %vm1545, %v3404, -inf
        %3417 = vmax.xlane.f32.xlu0 %v3416
        %v3418 = vpop.xlane.xlu0 %3417
        %v3419 = vsub.f32 %v3332, %v3409
        %v3420 = vsub.f32 %v3356, %v3412
        %v3421 = vsub.f32 %v3380, %v3415
        %v3422 = vsub.f32 %v3404, %v3418
        %v3423 = vmul.f32 %v3419, 1.442695
        %v3424 = vpow.pop %v3423
        %v3425 = vmul.f32 %v3420, 1.442695
        %v3426 = vpow.pop %v3425
        %v3427 = vmul.f32 %v3421, 1.442695
        %v3428 = vpow.pop %v3427
        %v3429 = vmul.f32 %v3422, 1.442695
        %v3430 = vpow.pop %v3429
        %v3431 = vsel %vm1545, %v3424, 0.0
        %3432 = vadd.xlane.f32.xlu0 %v3431
        %v3433 = vpop.xlane.xlu0 %3432
        %v3434 = vsel %vm1545, %v3426, 0.0
        %3435 = vadd.xlane.f32.xlu0 %v3434
        %v3436 = vpop.xlane.xlu0 %3435
        %v3437 = vsel %vm1545, %v3428, 0.0
        %3438 = vadd.xlane.f32.xlu0 %v3437
        %v3439 = vpop.xlane.xlu0 %3438
        %v3440 = vsel %vm1545, %v3430, 0.0
        %3441 = vadd.xlane.f32.xlu0 %v3440
        %v3442 = vpop.xlane.xlu0 %3441
        %v3443 = vrcp.pop %v3433
        %v3444 = vrcp.pop %v3436
        %v3445 = vrcp.pop %v3439
        %v3446 = vrcp.pop %v3442
        %v3447 = vpack.c.bf16 %v3424, %v3424
        %v3448 = vpack.c.bf16 %v3426, %v3426
        %v3449 = vpack.c.bf16 %v3428, %v3428
        %v3450 = vpack.c.bf16 %v3430, %v3430
        %3451 = vrot.lane.b32.xlu0 %v3313, 64
        %v3452 = vpop.permute.xlu0 %3451
        %v3454 = vsel %vm1545, %v3447, 0
        %v3457 = vsel %vm2626, %v3452, 0
        %3459 = vmatpush.bf16.msra.mxu0 0
        %3460 = vmatpush.bf16.msra.mxu0 0
        %3461 = vmatpush.bf16.msra.mxu0 0
        %3462 = vmatpush.bf16.msra.mxu0 0
        %3463 = vmatpush.bf16.msra.mxu0 0
        %3464 = vmatpush.bf16.msra.mxu0 0
        %3465 = vmatpush.bf16.msra.mxu0 0
        %3466 = vmatpush.bf16.msra.mxu0 %v3457
        %3467 = vmatmul.bf16.gmra.mxu0 %v3454
        %v3468 = vpop.f32.mrf.mxu0
        %v3469 = vadd.f32 0.0, %v3468
        %v3470 = vpop.f32.mrf.mxu0
        %3471 = vdwg.mxu0
        %3472 = vrot.lane.b32.xlu0 %v3337, 64
        %v3473 = vpop.permute.xlu0 %3472
        %v3475 = vsel %vm1545, %v3448, 0
        %v3478 = vsel %vm2626, %v3473, 0
        %3480 = vmatpush.bf16.msra.mxu0 0
        %3481 = vmatpush.bf16.msra.mxu0 0
        %3482 = vmatpush.bf16.msra.mxu0 0
        %3483 = vmatpush.bf16.msra.mxu0 0
        %3484 = vmatpush.bf16.msra.mxu0 0
        %3485 = vmatpush.bf16.msra.mxu0 0
        %3486 = vmatpush.bf16.msra.mxu0 0
        %3487 = vmatpush.bf16.msra.mxu0 %v3478
        %3488 = vmatmul.bf16.gmra.mxu0 %v3475
        %v3489 = vpop.f32.mrf.mxu0
        %v3490 = vadd.f32 0.0, %v3489
        %v3491 = vpop.f32.mrf.mxu0
        %3492 = vdwg.mxu0
        %3493 = vrot.lane.b32.xlu0 %v3361, 64
        %v3494 = vpop.permute.xlu0 %3493
        %v3496 = vsel %vm1545, %v3449, 0
        %v3499 = vsel %vm2626, %v3494, 0
        %3501 = vmatpush.bf16.msra.mxu0 0
        %3502 = vmatpush.bf16.msra.mxu0 0
        %3503 = vmatpush.bf16.msra.mxu0 0
        %3504 = vmatpush.bf16.msra.mxu0 0
        %3505 = vmatpush.bf16.msra.mxu0 0
        %3506 = vmatpush.bf16.msra.mxu0 0
        %3507 = vmatpush.bf16.msra.mxu0 0
        %3508 = vmatpush.bf16.msra.mxu0 %v3499
        %3509 = vmatmul.bf16.gmra.mxu0 %v3496
        %v3510 = vpop.f32.mrf.mxu0
        %v3511 = vadd.f32 0.0, %v3510
        %v3512 = vpop.f32.mrf.mxu0
        %3513 = vdwg.mxu0
        %3514 = vrot.lane.b32.xlu0 %v3385, 64
        %v3515 = vpop.permute.xlu0 %3514
        %v3517 = vsel %vm1545, %v3450, 0
        %v3520 = vsel %vm2626, %v3515, 0
        %3522 = vmatpush.bf16.msra.mxu0 0
        %3523 = vmatpush.bf16.msra.mxu0 0
        %3524 = vmatpush.bf16.msra.mxu0 0
        %3525 = vmatpush.bf16.msra.mxu0 0
        %3526 = vmatpush.bf16.msra.mxu0 0
        %3527 = vmatpush.bf16.msra.mxu0 0
        %3528 = vmatpush.bf16.msra.mxu0 0
        %3529 = vmatpush.bf16.msra.mxu0 %v3520
        %3530 = vmatmul.bf16.gmra.mxu0 %v3517
        %v3531 = vpop.f32.mrf.mxu0
        %v3532 = vadd.f32 0.0, %v3531
        %v3533 = vpop.f32.mrf.mxu0
        %3534 = vdwg.mxu0
        %v3535 = vmul.f32 %v3469, %v3443
        %v3536 = vmul.f32 %v3490, %v3444
        %v3537 = vmul.f32 %v3511, %v3445
        %v3538 = vmul.f32 %v3532, %v3446
        %3540 = vrot.lane.b32.xlu0 %v3536, 8
        %v3541 = vpop.permute.xlu0 %3540
        %3544 = vrot.lane.b32.xlu0 %v3537, 16
        %v3545 = vpop.permute.xlu0 %3544
        %3548 = vrot.lane.b32.xlu0 %v3538, 24
        %v3549 = vpop.permute.xlu0 %3548
        %v3551 = vsel %vm1545, %v3535, %v3541
        %v3552 = vsel %vm1788, %v3551, %v3545
        %v3553 = vsel %vm1790, %v3552, %v3549
        %v3554 = vpack.c.bf16 %v3553, %v3553
        %v3559 = vunpack.c.l.b16 %v3191
        %v3560 = vunpack.c.l.b16 %v3192
        %v3561 = vunpack.c.l.b16 %v3193
        %v3562 = vunpack.c.l.b16 %v3194
        %v3563 = vpack.c.b16 %v3560, %v3559
        %v3564 = vpack.c.b16 %v3562, %v3561
        %v3568 = vsel %vm1501, %v3554, 0
        %3570 = vmatpush.bf16.msra.mxu0 0
        %3571 = vmatpush.bf16.msra.mxu0 0
        %3572 = vmatpush.bf16.msra.mxu0 0
        %3573 = vmatpush.bf16.msra.mxu0 0
        %3574 = vmatpush.bf16.msra.mxu0 0
        %3575 = vmatpush.bf16.msra.mxu0 0
        %3576 = vmatpush.bf16.msra.mxu0 %v3564
        %3577 = vmatpush.bf16.msra.mxu0 %v3563
        %3578 = vmatmul.bf16.gmra.mxu0 %v3568
        %v3579 = vpop.f32.mrf.mxu0
        %v3580 = vadd.f32 0.0, %v3579
        %v3581 = vpop.f32.mrf.mxu0
        %3582 = vdwg.mxu0
        %v3583 = vadd.f32 %v3178, %v3580
        %v3585 = vperm.slane %v3196, 0
        %v3587 = vadd.f32 %v3583, %v3585
        %v3588 = vsel %vm1501, %v3587, 0.0
        %3589 = vadd.xlane.f32.xlu0 %v3588
        %v3590 = vpop.xlane.xlu0 %3589
        %v3591 = vmul.f32 %v3590, %v1391
        %v3592 = vsub.f32 %v3587, %v3591
        %v3593 = vmul.f32 %v3592, %v3592
        %v3594 = vsel %vm1501, %v3593, 0.0
        %3595 = vadd.xlane.f32.xlu0 %v3594
        %v3596 = vpop.xlane.xlu0 %3595
        %v3597 = vmul.f32 %v3596, %v1391
        %v3598 = vadd.f32 %v3597, 1e-05
        %v3599 = vrsqrt.pop %v3598
        %v3600 = vmul.f32 %v3599, %v3598
        %v3601 = vmul.f32 %v3600, %v3599
        %v3602 = vmul.f32 0.5, %v3601
        %v3603 = vsub.f32 1.5, %v3602
        %v3604 = vmul.f32 %v3599, %v3603
        %vm3605 = vweird.f32 %v3598
        %vm3606 = vweird.f32 %v3599
        %vm3607 = vmor %vm3605, %vm3606
        %v3608 = vsel %vm3607, %v3599, %v3604
        %v3609 = vmul.f32 %v3592, %v3608
        %v3611 = vperm.slane %v3198, 0
        %v3613 = vmul.f32 %v3609, %v3611
        %v3615 = vperm.slane %v3200, 0
        %v3617 = vadd.f32 %v3613, %v3615
        %v3618 = vpack.c.bf16 %v3617, %v3617
        %v3620 = vperm.slane %v3207, 0
        %v3626 = vunpack.c.l.b16 %v3202
        %v3627 = vunpack.c.l.b16 %v3203
        %v3628 = vunpack.c.l.b16 %v3204
        %v3629 = vunpack.c.l.b16 %v3205
        %v3630 = vpack.c.b16 %v3627, %v3626
        %v3631 = vpack.c.b16 %v3629, %v3628
        %v3635 = vsel %vm1501, %v3618, 0
        %3637 = vmatpush.bf16.msra.mxu0 0
        %3638 = vmatpush.bf16.msra.mxu0 0
        %3639 = vmatpush.bf16.msra.mxu0 0
        %3640 = vmatpush.bf16.msra.mxu0 0
        %3641 = vmatpush.bf16.msra.mxu0 0
        %3642 = vmatpush.bf16.msra.mxu0 0
        %3643 = vmatpush.bf16.msra.mxu0 %v3631
        %3644 = vmatpush.bf16.msra.mxu0 %v3630
        %3645 = vmatmul.bf16.gmra.mxu0 %v3635
        %v3646 = vpop.f32.mrf.mxu0
        %v3647 = vadd.f32 %v3620, %v3646
        %v3648 = vpop.f32.mrf.mxu0
        %3649 = vdwg.mxu0
        %v3650 = vmul.f32 %v3647, 0.5
        %v3651 = vmul.f32 %v3647, 0.70710677
        %v3652 = vand.u32 2147483647, %v3651
        %v3653 = vmul.f32 %v3652, 0.3275911
        %v3654 = vadd.f32 %v3653, 1.0
        %v3655 = vrcp.pop %v3654
        %v3656 = vmul.f32 %v3655, 1.0614054
        %v3657 = vadd.f32 %v3656, -1.4531521
        %v3658 = vmul.f32 %v3657, %v3655
        %v3659 = vadd.f32 %v3658, 1.4214138
        %v3660 = vmul.f32 %v3659, %v3655
        %v3661 = vadd.f32 %v3660, -0.28449672
        %v3662 = vmul.f32 %v3661, %v3655
        %v3663 = vadd.f32 %v3662, 0.2548296
        %v3664 = vmul.f32 %v3663, %v3655
        %v3665 = vsub.f32 0.0, %v3652
        %v3666 = vmul.f32 %v3665, %v3652
        %v3667 = vmul.f32 %v3666, 1.442695
        %v3668 = vpow.pop %v3667
        %v3669 = vmul.f32 %v3664, %v3668
        %v3670 = vsub.f32 1.0, %v3669
        %vm3671 = vcmp.ge.f32.partialorder %v3651, 0.0
        %v3672 = vsub.f32 0.0, %v3670
        %v3673 = vsel %vm3671, %v3670, %v3672
        %v3674 = vadd.f32 %v3673, 1.0
        %v3675 = vmul.f32 %v3650, %v3674
        %v3676 = vpack.c.bf16 %v3675, %v3675
        %v3678 = vperm.slane %v3226, 0
        %v3696 = vunpack.c.l.b16 %v3209
        %v3697 = vunpack.c.l.b16 %v3210
        %v3698 = vunpack.c.l.b16 %v3211
        %v3699 = vunpack.c.l.b16 %v3212
        %v3700 = vunpack.c.l.b16 %v3213
        %v3701 = vunpack.c.l.b16 %v3214
        %v3702 = vunpack.c.l.b16 %v3215
        %v3703 = vunpack.c.l.b16 %v3216
        %v3704 = vunpack.c.l.b16 %v3217
        %v3705 = vunpack.c.l.b16 %v3218
        %v3706 = vunpack.c.l.b16 %v3219
        %v3707 = vunpack.c.l.b16 %v3220
        %v3708 = vunpack.c.l.b16 %v3221
        %v3709 = vunpack.c.l.b16 %v3222
        %v3710 = vunpack.c.l.b16 %v3223
        %v3711 = vunpack.c.l.b16 %v3224
        %v3712 = vpack.c.b16 %v3697, %v3696
        %v3713 = vpack.c.b16 %v3699, %v3698
        %v3714 = vpack.c.b16 %v3701, %v3700
        %v3715 = vpack.c.b16 %v3703, %v3702
        %v3716 = vpack.c.b16 %v3705, %v3704
        %v3717 = vpack.c.b16 %v3707, %v3706
        %v3718 = vpack.c.b16 %v3709, %v3708
        %v3719 = vpack.c.b16 %v3711, %v3710
        %3728 = vmatpush.bf16.msra.mxu0 %v3719
        %3729 = vmatpush.bf16.msra.mxu0 %v3718
        %3730 = vmatpush.bf16.msra.mxu0 %v3717
        %3731 = vmatpush.bf16.msra.mxu0 %v3716
        %3732 = vmatpush.bf16.msra.mxu0 %v3715
        %3733 = vmatpush.bf16.msra.mxu0 %v3714
        %3734 = vmatpush.bf16.msra.mxu0 %v3713
        %3735 = vmatpush.bf16.msra.mxu0 %v3712
        %3736 = vmatmul.bf16.gmra.mxu0 %v3676
        %v3737 = vpop.f32.mrf.mxu0
        %v3738 = vadd.f32 %v3678, %v3737
        %v3739 = vpop.f32.mrf.mxu0
        %3740 = vdwg.mxu0
        %v3741 = vadd.f32 %v3587, %v3738
        %v3742 = vld [vmem:[%s71] sm:$0x1]
        %v3743 = vld [vmem:[#allocation2] sm:$0x1]
        %vm3744 = vcmask 261124
        %v3745 = vsel %vm3744, %v3741, 0.0
        %3746 = vadd.xlane.f32.xlu0 %v3745
        %v3747 = vpop.xlane.xlu0 %3746
        %v3748 = vmul.f32 %v3747, %v1391
        %v3749 = vsub.f32 %v3741, %v3748
        %v3750 = vmul.f32 %v3749, %v3749
        %v3751 = vsel %vm3744, %v3750, 0.0
        %3752 = vadd.xlane.f32.xlu0 %v3751
        %v3753 = vpop.xlane.xlu0 %3752
        %v3754 = vmul.f32 %v3753, %v1391
        %v3755 = vadd.f32 %v3754, 1e-05
        %v3756 = vrsqrt.pop %v3755
        %v3757 = vmul.f32 %v3756, %v3755
        %v3758 = vmul.f32 %v3757, %v3756
        %v3759 = vmul.f32 0.5, %v3758
        %v3760 = vsub.f32 1.5, %v3759
        %v3761 = vmul.f32 %v3756, %v3760
        %vm3762 = vweird.f32 %v3755
        %vm3763 = vweird.f32 %v3756
        %vm3764 = vmor %vm3762, %vm3763
        %v3765 = vsel %vm3764, %v3756, %v3761
        %v3766 = vmul.f32 %v3749, %v3765
        %v3768 = vperm.slane %v3742, 0
        %v3770 = vmul.f32 %v3766, %v3768
        %v3772 = vperm.slane %v3743, 0
        %v3774 = vadd.f32 %v3770, %v3772
        %v3775 = vpack.c.bf16 %v3774, %v3774
        %v3776 = vld [vmem:[%s75] sm:$0xff]
        %v3777 = vld [vmem:[%s75 + $0x8] sm:$0xff]
        %v3778 = vld [vmem:[%s75 + $0x10] sm:$0xff]
        %v3779 = vld [vmem:[%s75 + $0x18] sm:$0xff]
        %v3780 = vld [vmem:[%s77] sm:$0x3]
        %v3782 = vperm.slane %v3780, 0
        %v3783 = vperm.slane %v3780, 1
        %v3787 = vrot.slane %v3775, 2
        %v3792 = vunpack.c.l.b16 %v3776
        %v3793 = vunpack.c.h.b16 %v3776
        %v3794 = vunpack.c.l.b16 %v3777
        %v3795 = vunpack.c.h.b16 %v3777
        %v3796 = vunpack.c.l.b16 %v3778
        %v3797 = vunpack.c.h.b16 %v3778
        %v3798 = vunpack.c.l.b16 %v3779
        %v3799 = vunpack.c.h.b16 %v3779
        %v3800 = vpack.c.b16 %v3794, %v3792
        %v3801 = vpack.c.b16 %v3795, %v3793
        %v3802 = vpack.c.b16 %v3798, %v3796
        %v3803 = vpack.c.b16 %v3799, %v3797
        %v3809 = vsel %vm1501, %v3787, 0
        %3811 = vmatpush.bf16.msra.mxu0 0
        %3812 = vmatpush.bf16.msra.mxu0 0
        %3813 = vmatpush.bf16.msra.mxu0 0
        %3814 = vmatpush.bf16.msra.mxu0 0
        %3815 = vmatpush.bf16.msra.mxu0 0
        %3816 = vmatpush.bf16.msra.mxu0 0
        %3817 = vmatpush.bf16.msra.mxu0 %v3802
        %3818 = vmatpush.bf16.msra.mxu0 %v3800
        %3819 = vmatmul.bf16.gmra.mxu0 %v3809
        %v3820 = vpop.f32.mrf.mxu0
        %v3821 = vadd.f32 %v3782, %v3820
        %v3822 = vpop.f32.mrf.mxu0
        %3823 = vdwg.mxu0
        %3824 = vmatpush.bf16.msra.mxu0 0
        %3825 = vmatpush.bf16.msra.mxu0 0
        %3826 = vmatpush.bf16.msra.mxu0 0
        %3827 = vmatpush.bf16.msra.mxu0 0
        %3828 = vmatpush.bf16.msra.mxu0 0
        %3829 = vmatpush.bf16.msra.mxu0 0
        %3830 = vmatpush.bf16.msra.mxu0 %v3803
        %3831 = vmatpush.bf16.msra.mxu0 %v3801
        %3832 = vmatmul.bf16.gmra.mxu0 %v3809
        %v3833 = vpop.f32.mrf.mxu0
        %v3834 = vadd.f32 %v3783, %v3833
        %v3835 = vpop.f32.mrf.mxu0
        %3836 = vdwg.mxu0
        %v3839 = vrot.slane %v3834, 4
        %v3840 = vsel %vm2626, %v3821, %v3839
        %vm3842 = vcmask 523268
        %vm3843 = vmor %vm3842, %vm2626
        %3844 = vst.msk [vmem:[%s1229] sm:$0xff] %vm3843, %v3840
        %s3845 = sand.u32 %s941, 1
        %s3846 = scalar_lea.sflag [#allocation4], %s3845
        %s3847 = sand.u32 %s941, 1
        %s3848 = smul.addr %s3847, 8
        %s3849 = scalar_lea.vmem [#allocation5], %s3848
        // Predicated region
        $region181: #{model_forward.1} parent=175 // pred_check
          %p3850 = pneg %p951
        $region182: #{model_forward.1} parent=175 // pred_check_branch
          %3852 = sbr.rel (%p3850) target = $region184
        $region183: #{model_forward.1} parent=175 // pred_region
          %3854 = vsyncadd %s3846, 0
          %s3855 = smul.addr %s94, 2
          %s3856 = smul.addr %s3855, 4
          %s3857 = scalar_lea.hbm %s79, %s3856
          %s3859 = sshll.u32 %s3849, 4
          %s3860 = int_to_ptr.vmem [resolvable:$true] %s3859
          %s3861 = sshll.u32 %s3857, 4
          %s3862 = int_to_ptr.hbm [resolvable:$true] %s3861
          %3864 = dma.vmem_to_hbm [thread:$0]  %s3860, 128, %s3862, %s3846
        $region184: #{model_forward.1} parent=175 // pred_fallthru
          _
      $region176: #{model_forward.1} parent=5 // pred_fallthru
        _
      %p3865 = scmp.le.s32.totalorder 2, %s89
      // Predicated region
      $region185: #{model_forward.1} parent=5 // pred_check
        %p3866 = pneg %p3865
      $region186: #{model_forward.1} parent=5 // pred_check_branch
        %3868 = sbr.rel (%p3866) target = $region188
      $region187: #{model_forward.1} parent=5 // pred_region
        %s3869 = ssub.s32 %s89, 2
        // Predicated region
        $region189: #{model_forward.1} parent=187 // pred_check
          %p3870 = pneg %p957
        $region190: #{model_forward.1} parent=187 // pred_check_branch
          %3872 = sbr.rel (%p3870) target = $region192
        $region191: #{model_forward.1} parent=187 // pred_region
          %s3873 = sand.u32 %s942, 1
          %s3874 = scalar_lea.sflag [#allocation4], %s3873
          %s3875 = sand.u32 %s942, 1
          %s3876 = smul.addr %s3875, 8
          %s3877 = scalar_lea.vmem [#allocation5], %s3876
          %3879 = dma.done %s3874, 128
        $region192: #{model_forward.1} parent=187 // pred_fallthru
          _
      $region188: #{model_forward.1} parent=5 // pred_fallthru
        _
    $region6: #{model_forward.1} parent=1 // loop_footer
      %s93 = sadd.s32 1, %s89
    $region7: #{model_forward.1} parent=1 // loop_footer_branch
      %88 = sbr.rel target = $region3
    $region8: #{model_forward.1} parent=1 // loop_exit
      _
    %3880 = vsyncpa [#allocation3], 1
    %s3881 = scalar_lea.sflag [#allocation3], 1
    %3882 = vsyncpa %s3881, 1
    %3883 = vsyncpa [#allocation4], 1
    %s3884 = scalar_lea.sflag [#allocation4], 1
    %3885 = vsyncpa %s3884, 1

</llo_original>
